<compile_context>
chip_gen: v7x
topology: tpu7x:2x2x1
jax: 0.10.0
libtpu: 0.0.40
codegen_flags: <defaults>
</compile_context>

<pallas_src>
import functools
from itertools import permutations

import jax
import jax.numpy as jnp
from jax import lax
from jax.experimental import pallas as pl
from jax.experimental.pallas import tpu as pltpu


# --------------------------------------------------------------------------
# In-kernel helpers
# --------------------------------------------------------------------------
def _silu(x):
    # x * sigmoid(x); the reciprocal goes to the (otherwise idle) EUP slot.
    return x * pl.reciprocal(1.0 + jnp.exp(-x), approx=True)


def _mlp4d_core(xc, wdT, bd_col, w1, b1, w2, b2):
    """Fused MLP4d hot path on one (B, Cin, F) tile.

    xc     : (B, Cin, F) f32   channel-second layout (torch permute folded in)
    wdT    : (H, Cin)    bf16  dim_fc weight, pre-transposed
    bd_col : (H, 1)      f32
    w1     : (F, 2F) bf16, b1 : (1, 2F) f32
    w2     : (2F, F) bf16, b2 : (1, F)  f32
    returns (B*H, F) f32, rows ordered (b, h)  -- the pre-BatchNorm activations.
    """
    b_sz, _, f_sz = xc.shape
    h_sz = wdT.shape[0]
    wdT_b = jnp.broadcast_to(wdT, (b_sz,) + wdT.shape)                  # (B, H, Cin)
    a = jnp.einsum("bhc,bcf->bhf", wdT_b, xc.astype(jnp.bfloat16),
                   preferred_element_type=jnp.float32)                  # (B, H, F)
    a = _silu(a + bd_col)
    a2 = a.reshape(b_sz * h_sz, f_sz)                                   # (B*H, F)
    h1 = _silu(jnp.dot(a2.astype(jnp.bfloat16), w1,
                       preferred_element_type=jnp.float32) + b1)        # (B*H, 2F)
    h2 = _silu(jnp.dot(h1.astype(jnp.bfloat16), w2,
                       preferred_element_type=jnp.float32) + b2)        # (B*H, F)
    return h2


def _pack_lanes(h2, b_sz, h_sz, f_sz):
    """(B*H, F) -> (B, H*F) lane-dense (lane = h*F + f) via lane concatenation."""
    h3 = h2.reshape(b_sz, h_sz, f_sz)
    return jnp.concatenate([h3[:, h, :] for h in range(h_sz)], axis=-1)


# --------------------------------------------------------------------------
# Kernel 1: edge MLP4d pass 1 -- gather + fused matmuls + streaming BN stats
# --------------------------------------------------------------------------
def _edge_stage1_kernel(row_ref, col_ref,                    # scalar prefetch (used by index maps)
                        xs_ref, xd_ref,                      # gathered node tiles (1, B, C, F)
                        wdT_ref, bd_ref, w1_ref, b1_ref, w2_ref, b2_ref,
                        h2_ref, sum_ref, sumsq_ref):
    del row_ref, col_ref
    xc = jnp.concatenate([xs_ref[0], xd_ref[0]], axis=-2)    # (B, 2C, F) channels [src, dst]
    b_sz, _, f_sz = xc.shape
    h_sz = wdT_ref.shape[0]
    h2 = _mlp4d_core(xc, wdT_ref[...], bd_ref[...], w1_ref[...], b1_ref[...],
                     w2_ref[...], b2_ref[...])               # (B*H, F)
    h2_ref[...] = _pack_lanes(h2, b_sz, h_sz, f_sz)[None]    # (1, B, H*F) lane-dense store

    @pl.when(pl.program_id(0) == 0)
    def _():
        sum_ref[...] = jnp.zeros_like(sum_ref)
        sumsq_ref[...] = jnp.zeros_like(sumsq_ref)

    sum_ref[...] += jnp.sum(h2, axis=0, keepdims=True)
    sumsq_ref[...] += jnp.sum(h2 * h2, axis=0, keepdims=True)


# --------------------------------------------------------------------------
# Kernel 2: edge pass 2 -- BN affine + edges_mask + scatter-mean aggregation
# (edges with the same destination are contiguous groups of nnb)
# --------------------------------------------------------------------------
def _edge_stage2_kernel(h2_ref, mask_ref, scale_ref, shift_ref,
                        msgs_ref, xadj_ref, *, feature_len, hidden_dim):
    y = h2_ref[...] * scale_ref[...] + shift_ref[...]        # (nnb, B, H*F)
    y = y * mask_ref[0][..., None]                           # edges_mask per (edge, batch)
    msgs_ref[...] = y
    nnb = y.shape[0]
    xa = jnp.sum(y, axis=0) * (1.0 / nnb)                    # scatter-mean over neighbors
    parts = [xa[:, h * feature_len:(h + 1) * feature_len] for h in range(hidden_dim)]
    xadj_ref[...] = jnp.stack(parts, axis=1)[None]           # (1, B, H, F)


# --------------------------------------------------------------------------
# Kernel 3: node_edge MLP4d pass 1 (same fused core, concat x || x_adj in VMEM)
# --------------------------------------------------------------------------
def _node_stage1_kernel(x_ref, xadj_ref,
                        wdT_ref, bd_ref, w1_ref, b1_ref, w2_ref, b2_ref,
                        h2_ref, sum_ref, sumsq_ref):
    xc = jnp.concatenate([x_ref[0], xadj_ref[0]], axis=-2)   # (B, C+H, F)
    b_sz, _, f_sz = xc.shape
    h_sz = wdT_ref.shape[0]
    h2 = _mlp4d_core(xc, wdT_ref[...], bd_ref[...], w1_ref[...], b1_ref[...],
                     w2_ref[...], b2_ref[...])               # (B*H, F)
    h2_ref[...] = _pack_lanes(h2, b_sz, h_sz, f_sz)[None]

    @pl.when(pl.program_id(0) == 0)
    def _():
        sum_ref[...] = jnp.zeros_like(sum_ref)
        sumsq_ref[...] = jnp.zeros_like(sumsq_ref)

    sum_ref[...] += jnp.sum(h2, axis=0, keepdims=True)
    sumsq_ref[...] += jnp.sum(h2 * h2, axis=0, keepdims=True)


# --------------------------------------------------------------------------
# Kernel 4: node pass 2 -- BN affine + nodes_mask
# --------------------------------------------------------------------------
def _node_stage2_kernel(h2_ref, mask_ref, scale_ref, shift_ref, out_ref):
    y = h2_ref[...] * scale_ref[...] + shift_ref[...]        # (1, B, H*F)
    out_ref[...] = y * mask_ref[...]                         # (1, B, 1) broadcast


# --------------------------------------------------------------------------
# BN statistics -> affine (training-mode, biased variance), tiny XLA math
# --------------------------------------------------------------------------
def _bn_affine(sum_vec, sumsq_vec, count, gamma, beta, eps=1e-5):
    mean = sum_vec / count
    var = jnp.maximum(sumsq_vec / count - mean * mean, 0.0)
    scale = gamma * lax.rsqrt(var + eps)
    shift = beta - mean * scale
    return scale, shift


# --------------------------------------------------------------------------
# Full forward
# --------------------------------------------------------------------------
def interaction_mlp4d_forward(params, node_feature, edge_feature, nodes_mask, edges_mask):
    del edge_feature                                          # unused by the torch forward too
    B, C, node_num, F = node_feature.shape
    H = params["edge"]["wd"].shape[1]
    assert C == H, "module requires input_dim == hidden_dim"
    nnb = node_num - 1
    E = node_num * nnb
    HF = H * F
    f32, bf16 = jnp.float32, jnp.bfloat16

    perms = list(permutations(range(node_num), 2))
    col = jnp.array([p[0] for p in perms], dtype=jnp.int32)   # aggregation destination
    row = jnp.array([p[1] for p in perms], dtype=jnp.int32)

    # channel-second layout: x_cf[n, b, c, f] == node_feature[b, c, n, f]
    x_cf = jnp.transpose(node_feature, (2, 0, 1, 3)).astype(f32)

    def mlp4d_weights(p):
        return (p["wd"].T.astype(bf16), p["bd"].reshape(H, 1).astype(f32),
                p["w1"].astype(bf16), p["b1"].astype(f32),
                p["w2"].astype(bf16), p["b2"].astype(f32))

    we = mlp4d_weights(params["edge"])
    wn = mlp4d_weights(params["node_edge"])

    # ---------------- edge stage, pass 1 ----------------
    edge1 = pl.pallas_call(
        _edge_stage1_kernel,
        out_shape=(jax.ShapeDtypeStruct((E, B, HF), f32),
                   jax.ShapeDtypeStruct((1, F), f32),
                   jax.ShapeDtypeStruct((1, F), f32)),
        grid_spec=pltpu.PrefetchScalarGridSpec(
            num_scalar_prefetch=2,
            grid=(E,),
            in_specs=[
                pl.BlockSpec((1, B, C, F), lambda e, row, col: (row[e], 0, 0, 0)),
                pl.BlockSpec((1, B, C, F), lambda e, row, col: (col[e], 0, 0, 0)),
                pl.BlockSpec((H, 2 * C), lambda e, row, col: (0, 0)),
                pl.BlockSpec((H, 1), lambda e, row, col: (0, 0)),
                pl.BlockSpec((F, 2 * F), lambda e, row, col: (0, 0)),
                pl.BlockSpec((1, 2 * F), lambda e, row, col: (0, 0)),
                pl.BlockSpec((2 * F, F), lambda e, row, col: (0, 0)),
                pl.BlockSpec((1, F), lambda e, row, col: (0, 0)),
            ],
            out_specs=(
                pl.BlockSpec((1, B, HF), lambda e, row, col: (e, 0, 0)),
                pl.BlockSpec((1, F), lambda e, row, col: (0, 0)),
                pl.BlockSpec((1, F), lambda e, row, col: (0, 0)),
            ),
        ),
        compiler_params=pltpu.CompilerParams(
            dimension_semantics=("arbitrary",),          # stats accumulator revisits
            vmem_limit_bytes=64 * 1024 * 1024),
    )
    h2e, se, sqe = edge1(row, col, x_cf, x_cf, *we)

    scale_e, shift_e = _bn_affine(se[0], sqe[0], float(E * B * H),
                                  params["edge"]["gamma"], params["edge"]["beta"])
    scale_e_l = jnp.tile(scale_e, H).reshape(1, HF)      # lane index = h*F + f
    shift_e_l = jnp.tile(shift_e, H).reshape(1, HF)
    mask_e = jnp.transpose(edges_mask.astype(f32), (1, 0)).reshape(node_num, nnb, B)

    # ---------------- edge stage, pass 2 (BN + mask + aggregate) ----------------
    edge2 = pl.pallas_call(
        functools.partial(_edge_stage2_kernel, feature_len=F, hidden_dim=H),
        out_shape=(jax.ShapeDtypeStruct((E, B, HF), f32),
                   jax.ShapeDtypeStruct((node_num, B, H, F), f32)),
        grid_spec=pltpu.PrefetchScalarGridSpec(
            num_scalar_prefetch=0,
            grid=(node_num,),
            in_specs=[
                pl.BlockSpec((nnb, B, HF), lambda d: (d, 0, 0)),
                pl.BlockSpec((1, nnb, B), lambda d: (d, 0, 0)),
                pl.BlockSpec((1, HF), lambda d: (0, 0)),
                pl.BlockSpec((1, HF), lambda d: (0, 0)),
            ],
            out_specs=(
                pl.BlockSpec((nnb, B, HF), lambda d: (d, 0, 0)),
                pl.BlockSpec((1, B, H, F), lambda d: (d, 0, 0, 0)),
            ),
        ),
        compiler_params=pltpu.CompilerParams(dimension_semantics=("parallel",)),
    )
    msgs_packed, x_adj = edge2(h2e, mask_e, scale_e_l, shift_e_l)
    # torch return layout [E, B, F, H]
    msgs_out = jnp.transpose(msgs_packed.reshape(E, B, H, F), (0, 1, 3, 2))

    # ---------------- node_edge stage, pass 1 ----------------
    node1 = pl.pallas_call(
        _node_stage1_kernel,
        out_shape=(jax.ShapeDtypeStruct((node_num, B, HF), f32),
                   jax.ShapeDtypeStruct((1, F), f32),
                   jax.ShapeDtypeStruct((1, F), f32)),
        grid_spec=pltpu.PrefetchScalarGridSpec(
            num_scalar_prefetch=0,
            grid=(node_num,),
            in_specs=[
                pl.BlockSpec((1, B, C, F), lambda n: (n, 0, 0, 0)),
                pl.BlockSpec((1, B, H, F), lambda n: (n, 0, 0, 0)),
                pl.BlockSpec((H, C + H), lambda n: (0, 0)),
                pl.BlockSpec((H, 1), lambda n: (0, 0)),
                pl.BlockSpec((F, 2 * F), lambda n: (0, 0)),
                pl.BlockSpec((1, 2 * F), lambda n: (0, 0)),
                pl.BlockSpec((2 * F, F), lambda n: (0, 0)),
                pl.BlockSpec((1, F), lambda n: (0, 0)),
            ],
            out_specs=(
                pl.BlockSpec((1, B, HF), lambda n: (n, 0, 0)),
                pl.BlockSpec((1, F), lambda n: (0, 0)),
                pl.BlockSpec((1, F), lambda n: (0, 0)),
            ),
        ),
        compiler_params=pltpu.CompilerParams(
            dimension_semantics=("arbitrary",),
            vmem_limit_bytes=64 * 1024 * 1024),
    )
    h2n, sn, sqn = node1(x_cf, x_adj, *wn)

    scale_n, shift_n = _bn_affine(sn[0], sqn[0], float(node_num * B * H),
                                  params["node_edge"]["gamma"], params["node_edge"]["beta"])
    scale_n_l = jnp.tile(scale_n, H).reshape(1, HF)
    shift_n_l = jnp.tile(shift_n, H).reshape(1, HF)
    mask_n = jnp.transpose(nodes_mask.astype(f32), (1, 0)).reshape(node_num, B, 1)

    # ---------------- node_edge stage, pass 2 (BN + nodes_mask) ----------------
    node2 = pl.pallas_call(
        _node_stage2_kernel,
        out_shape=jax.ShapeDtypeStruct((node_num, B, HF), f32),
        grid_spec=pltpu.PrefetchScalarGridSpec(
            num_scalar_prefetch=0,
            grid=(node_num,),
            in_specs=[
                pl.BlockSpec((1, B, HF), lambda n: (n, 0, 0)),
                pl.BlockSpec((1, B, 1), lambda n: (n, 0, 0)),
                pl.BlockSpec((1, HF), lambda n: (0, 0)),
                pl.BlockSpec((1, HF), lambda n: (0, 0)),
            ],
            out_specs=pl.BlockSpec((1, B, HF), lambda n: (n, 0, 0)),
        ),
        compiler_params=pltpu.CompilerParams(dimension_semantics=("parallel",)),
    )
    out_packed = node2(h2n, mask_n, scale_n_l, shift_n_l)

    out = jnp.transpose(out_packed.reshape(node_num, B, H, F), (1, 2, 0, 3))  # [B,H,node,F]
    return out, msgs_out


# --------------------------------------------------------------------------
# Deterministic parameter init (shapes from MLP4d.__init__)
# --------------------------------------------------------------------------
def _init_linear(key, fan_in, fan_out):
    k1, k2 = jax.random.split(key)
    lim = 1.0 / (fan_in ** 0.5)
    w = jax.random.uniform(k1, (fan_in, fan_out), jnp.float32, -lim, lim)
    b = jax.random.uniform(k2, (1, fan_out), jnp.float32, -lim, lim)
    return w, b


def init_params(key, input_dim, hidden_dim, feature_len):
    ks = jax.random.split(key, 6)

    def mlp4d(k_dim, k_fc1, k_fc2, n_in):
        wd, bd = _init_linear(k_dim, n_in, hidden_dim)
        w1, b1 = _init_linear(k_fc1, feature_len, 2 * feature_len)
        w2, b2 = _init_linear(k_fc2, 2 * feature_len, feature_len)
        return dict(wd=wd, bd=bd, w1=w1, b1=b1, w2=w2, b2=b2,
                    gamma=jnp.ones((feature_len,), jnp.float32),
                    beta=jnp.zeros((feature_len,), jnp.float32))

    return dict(
        edge=mlp4d(ks[0], ks[1], ks[2], 2 * input_dim),
        node_edge=mlp4d(ks[3], ks[4], ks[5], 2 * hidden_dim),
        # TODO(synk): node_block / layer-norm / attention / real_edges branches are never
        # executed with the module's default flags, so they are not materialized.
    )


if __name__ == "__main__":
    node_num, input_dim, hidden_dim, feature_len = 4, 8, 8, 16
    B = 2
    E = node_num * (node_num - 1)

    key = jax.random.PRNGKey(0)
    k1, k2, k3, k4, k5 = jax.random.split(key, 5)
    node_feature = jax.random.normal(k1, (B, input_dim, node_num, feature_len), jnp.float32)
    edge_feature = jax.random.normal(k2, (B, input_dim, E, feature_len), jnp.float32)
    nodes_mask = (jax.random.uniform(k3, (B, node_num)) > 0.2).astype(jnp.float32)
    edges_mask = (jax.random.uniform(k4, (B, E)) > 0.2).astype(jnp.float32)
    params = init_params(k5, input_dim, hidden_dim, feature_len)

    fwd = jax.jit(interaction_mlp4d_forward)
    out, msgs = fwd(params, node_feature, edge_feature, nodes_mask, edges_mask)
    jax.block_until_ready((out, msgs))

    assert out.shape == (B, hidden_dim, node_num, feature_len), out.shape
    assert msgs.shape == (E, B, feature_len, hidden_dim), msgs.shape
    assert bool(jnp.all(jnp.isfinite(out))) and bool(jnp.all(jnp.isfinite(msgs)))
    print("KERNEL_OK")
</pallas_src>

<mosaic_0001>
module attributes {stable_mosaic.version = 11 : i64} {
  func.func @_edge_stage1_kernel(%arg0: i32, %arg1: memref<12xi32, #tpu.memory_space<smem>>, %arg2: memref<12xi32, #tpu.memory_space<smem>>, %arg3: memref<1x2x8x16xf32, #tpu.memory_space<vmem>>, %arg4: memref<1x2x8x16xf32, #tpu.memory_space<vmem>>, %arg5: memref<8x16xbf16, #tpu.memory_space<vmem>>, %arg6: memref<8x1xf32, #tpu.memory_space<vmem>>, %arg7: memref<16x32xbf16, #tpu.memory_space<vmem>>, %arg8: memref<1x32xf32, #tpu.memory_space<vmem>>, %arg9: memref<32x16xbf16, #tpu.memory_space<vmem>>, %arg10: memref<1x16xf32, #tpu.memory_space<vmem>>, %arg11: memref<1x2x128xf32, #tpu.memory_space<vmem>>, %arg12: memref<1x16xf32, #tpu.memory_space<vmem>>, %arg13: memref<1x16xf32, #tpu.memory_space<vmem>>) attributes {dimension_semantics = [#tpu.dimension_semantics<arbitrary>], iteration_bounds = array<i64: 12>, scalar_prefetch = 2 : i64, scratch_operands = 0 : i64, tpu.core_type = #tpu.core_type<tc>, window_params = [{transform_indices = @transform_0, window_bounds = array<i64: 1, 2, 8, 16>}, {transform_indices = @transform_1, window_bounds = array<i64: 1, 2, 8, 16>}, {pipeline_mode = #tpu.pipeline_mode<synchronous>, transform_indices = @transform_2, window_bounds = array<i64: 8, 16>}, {pipeline_mode = #tpu.pipeline_mode<synchronous>, transform_indices = @transform_3, window_bounds = array<i64: 8, 1>}, {pipeline_mode = #tpu.pipeline_mode<synchronous>, transform_indices = @transform_4, window_bounds = array<i64: 16, 32>}, {pipeline_mode = #tpu.pipeline_mode<synchronous>, transform_indices = @transform_5, window_bounds = array<i64: 1, 32>}, {pipeline_mode = #tpu.pipeline_mode<synchronous>, transform_indices = @transform_6, window_bounds = array<i64: 32, 16>}, {pipeline_mode = #tpu.pipeline_mode<synchronous>, transform_indices = @transform_7, window_bounds = array<i64: 1, 16>}, {transform_indices = @transform_8, window_bounds = array<i64: 1, 2, 128>}, {pipeline_mode = #tpu.pipeline_mode<synchronous>, transform_indices = @transform_9, window_bounds = array<i64: 1, 16>}, {pipeline_mode = #tpu.pipeline_mode<synchronous>, transform_indices = @transform_10, window_bounds = array<i64: 1, 16>}]} {
    %c0 = arith.constant 0 : index
    %c0_0 = arith.constant 0 : index
    %c0_1 = arith.constant 0 : index
    %c0_2 = arith.constant 0 : index
    %0 = vector.load %arg3[%c0, %c0_0, %c0_1, %c0_2] : memref<1x2x8x16xf32, #tpu.memory_space<vmem>>, vector<1x2x8x16xf32>
    %1 = vector.shape_cast %0 : vector<1x2x8x16xf32> to vector<2x8x16xf32>
    %c0_3 = arith.constant 0 : index
    %c0_4 = arith.constant 0 : index
    %c0_5 = arith.constant 0 : index
    %c0_6 = arith.constant 0 : index
    %2 = vector.load %arg4[%c0_3, %c0_4, %c0_5, %c0_6] : memref<1x2x8x16xf32, #tpu.memory_space<vmem>>, vector<1x2x8x16xf32>
    %3 = vector.shape_cast %2 : vector<1x2x8x16xf32> to vector<2x8x16xf32>
    %4 = tpu.concatenate %1, %3 in 1 : vector<2x8x16xf32>, vector<2x8x16xf32> -> vector<2x16x16xf32>
    %c0_7 = arith.constant 0 : index
    %c0_8 = arith.constant 0 : index
    %5 = vector.load %arg5[%c0_7, %c0_8] : memref<8x16xbf16, #tpu.memory_space<vmem>>, vector<8x16xbf16>
    %c0_9 = arith.constant 0 : index
    %c0_10 = arith.constant 0 : index
    %6 = vector.load %arg6[%c0_9, %c0_10] : memref<8x1xf32, #tpu.memory_space<vmem>>, vector<8x1xf32>
    %c0_11 = arith.constant 0 : index
    %c0_12 = arith.constant 0 : index
    %7 = vector.load %arg7[%c0_11, %c0_12] : memref<16x32xbf16, #tpu.memory_space<vmem>>, vector<16x32xbf16>
    %c0_13 = arith.constant 0 : index
    %c0_14 = arith.constant 0 : index
    %8 = vector.load %arg8[%c0_13, %c0_14] : memref<1x32xf32, #tpu.memory_space<vmem>>, vector<1x32xf32>
    %c0_15 = arith.constant 0 : index
    %c0_16 = arith.constant 0 : index
    %9 = vector.load %arg9[%c0_15, %c0_16] : memref<32x16xbf16, #tpu.memory_space<vmem>>, vector<32x16xbf16>
    %c0_17 = arith.constant 0 : index
    %c0_18 = arith.constant 0 : index
    %10 = vector.load %arg10[%c0_17, %c0_18] : memref<1x16xf32, #tpu.memory_space<vmem>>, vector<1x16xf32>
    %11 = vector.shape_cast %5 : vector<8x16xbf16> to vector<1x8x16xbf16>
    %12 = vector.broadcast %11 : vector<1x8x16xbf16> to vector<2x8x16xbf16>
    %13 = arith.truncf %4 : vector<2x16x16xf32> to vector<2x16x16xbf16>
    "tpu.trace_start"() <{level = 10 : i32, message = "bhc,bcf->bhf"}> : () -> ()
    %cst = arith.constant dense<0.000000e+00> : vector<2x8x16xf32>
    %14 = tpu.matmul %12, %13, %cst {dimension_numbers = #tpu.dot_dimension_numbers<[2], [1], [1], [2], [0, 0, 0, 1, 1, 2], [0], [0]>} : vector<2x8x16xbf16>, vector<2x16x16xbf16>, vector<2x8x16xf32> -> vector<2x8x16xf32>
    "tpu.trace_stop"() : () -> ()
    %15 = vector.shape_cast %6 : vector<8x1xf32> to vector<1x8x1xf32>
    %16 = vector.broadcast %15 : vector<1x8x1xf32> to vector<2x8x16xf32>
    %17 = arith.addf %14, %16 : vector<2x8x16xf32>
    %cst_19 = arith.constant 0.000000e+00 : f32
    %18 = vector.broadcast %cst_19 : f32 to vector<2x8x16xf32>
    %19 = arith.subf %18, %17 : vector<2x8x16xf32>
    %20 = math.exp %19 : vector<2x8x16xf32>
    %cst_20 = arith.constant 1.000000e+00 : f32
    %21 = vector.broadcast %cst_20 : f32 to vector<2x8x16xf32>
    %22 = arith.addf %21, %20 : vector<2x8x16xf32>
    %23 = tpu.reciprocal %22 {approx = true} : vector<2x8x16xf32> -> vector<2x8x16xf32>
    %24 = arith.mulf %17, %23 : vector<2x8x16xf32>
    %25 = vector.shape_cast %24 : vector<2x8x16xf32> to vector<16x16xf32>
    %26 = arith.truncf %25 : vector<16x16xf32> to vector<16x16xbf16>
    %cst_21 = arith.constant dense<0.000000e+00> : vector<16x32xf32>
    %27 = tpu.matmul %26, %7, %cst_21 {dimension_numbers = #tpu.dot_dimension_numbers<[1], [0], [0], [1], [0, 0, 1, 1], [], []>} : vector<16x16xbf16>, vector<16x32xbf16>, vector<16x32xf32> -> vector<16x32xf32>
    %28 = vector.broadcast %8 : vector<1x32xf32> to vector<16x32xf32>
    %29 = arith.addf %27, %28 : vector<16x32xf32>
    %cst_22 = arith.constant 0.000000e+00 : f32
    %30 = vector.broadcast %cst_22 : f32 to vector<16x32xf32>
    %31 = arith.subf %30, %29 : vector<16x32xf32>
    %32 = math.exp %31 : vector<16x32xf32>
    %cst_23 = arith.constant 1.000000e+00 : f32
    %33 = vector.broadcast %cst_23 : f32 to vector<16x32xf32>
    %34 = arith.addf %33, %32 : vector<16x32xf32>
    %35 = tpu.reciprocal %34 {approx = true} : vector<16x32xf32> -> vector<16x32xf32>
    %36 = arith.mulf %29, %35 : vector<16x32xf32>
    %37 = arith.truncf %36 : vector<16x32xf32> to vector<16x32xbf16>
    %cst_24 = arith.constant dense<0.000000e+00> : vector<16x16xf32>
    %38 = tpu.matmul %37, %9, %cst_24 {dimension_numbers = #tpu.dot_dimension_numbers<[1], [0], [0], [1], [0, 0, 1, 1], [], []>} : vector<16x32xbf16>, vector<32x16xbf16>, vector<16x16xf32> -> vector<16x16xf32>
    %39 = vector.broadcast %10 : vector<1x16xf32> to vector<16x16xf32>
    %40 = arith.addf %38, %39 : vector<16x16xf32>
    %cst_25 = arith.constant 0.000000e+00 : f32
    %41 = vector.broadcast %cst_25 : f32 to vector<16x16xf32>
    %42 = arith.subf %41, %40 : vector<16x16xf32>
    %43 = math.exp %42 : vector<16x16xf32>
    %cst_26 = arith.constant 1.000000e+00 : f32
    %44 = vector.broadcast %cst_26 : f32 to vector<16x16xf32>
    %45 = arith.addf %44, %43 : vector<16x16xf32>
    %46 = tpu.reciprocal %45 {approx = true} : vector<16x16xf32> -> vector<16x16xf32>
    %47 = arith.mulf %40, %46 : vector<16x16xf32>
    %48 = vector.shape_cast %47 : vector<16x16xf32> to vector<2x8x16xf32>
    %49 = vector.extract_strided_slice %48 {offsets = [0, 0, 0], sizes = [2, 1, 16], strides = [1, 1, 1]} : vector<2x8x16xf32> to vector<2x1x16xf32>
    %50 = vector.shape_cast %49 : vector<2x1x16xf32> to vector<2x16xf32>
    %51 = vector.extract_strided_slice %48 {offsets = [0, 1, 0], sizes = [2, 1, 16], strides = [1, 1, 1]} : vector<2x8x16xf32> to vector<2x1x16xf32>
    %52 = vector.shape_cast %51 : vector<2x1x16xf32> to vector<2x16xf32>
    %53 = vector.extract_strided_slice %48 {offsets = [0, 2, 0], sizes = [2, 1, 16], strides = [1, 1, 1]} : vector<2x8x16xf32> to vector<2x1x16xf32>
    %54 = vector.shape_cast %53 : vector<2x1x16xf32> to vector<2x16xf32>
    %55 = vector.extract_strided_slice %48 {offsets = [0, 3, 0], sizes = [2, 1, 16], strides = [1, 1, 1]} : vector<2x8x16xf32> to vector<2x1x16xf32>
    %56 = vector.shape_cast %55 : vector<2x1x16xf32> to vector<2x16xf32>
    %57 = vector.extract_strided_slice %48 {offsets = [0, 4, 0], sizes = [2, 1, 16], strides = [1, 1, 1]} : vector<2x8x16xf32> to vector<2x1x16xf32>
    %58 = vector.shape_cast %57 : vector<2x1x16xf32> to vector<2x16xf32>
    %59 = vector.extract_strided_slice %48 {offsets = [0, 5, 0], sizes = [2, 1, 16], strides = [1, 1, 1]} : vector<2x8x16xf32> to vector<2x1x16xf32>
    %60 = vector.shape_cast %59 : vector<2x1x16xf32> to vector<2x16xf32>
    %61 = vector.extract_strided_slice %48 {offsets = [0, 6, 0], sizes = [2, 1, 16], strides = [1, 1, 1]} : vector<2x8x16xf32> to vector<2x1x16xf32>
    %62 = vector.shape_cast %61 : vector<2x1x16xf32> to vector<2x16xf32>
    %63 = vector.extract_strided_slice %48 {offsets = [0, 7, 0], sizes = [2, 1, 16], strides = [1, 1, 1]} : vector<2x8x16xf32> to vector<2x1x16xf32>
    %64 = vector.shape_cast %63 : vector<2x1x16xf32> to vector<2x16xf32>
    %65 = tpu.concatenate %50, %52, %54, %56, %58, %60, %62, %64 in 1 : vector<2x16xf32>, vector<2x16xf32>, vector<2x16xf32>, vector<2x16xf32>, vector<2x16xf32>, vector<2x16xf32>, vector<2x16xf32>, vector<2x16xf32> -> vector<2x128xf32>
    %66 = vector.shape_cast %65 : vector<2x128xf32> to vector<1x2x128xf32>
    %c0_27 = arith.constant 0 : index
    %c0_28 = arith.constant 0 : index
    %c0_29 = arith.constant 0 : index
    %67 = vector.load %arg11[%c0_27, %c0_28, %c0_29] : memref<1x2x128xf32, #tpu.memory_space<vmem>>, vector<1x2x128xf32>
    tpu.vector_store %arg11[%c0_27, %c0_28, %c0_29], %66 {strides = array<i32>} : memref<1x2x128xf32, #tpu.memory_space<vmem>>, vector<1x2x128xf32>,
    %c0_i32 = arith.constant 0 : i32
    %68 = arith.cmpi eq, %arg0, %c0_i32 : i32
    %69 = arith.extui %68 : i1 to i32
    %c0_i32_30 = arith.constant 0 : i32
    %70 = arith.cmpi ne, %69, %c0_i32_30 : i32
    scf.if %70 {
      %cst_41 = arith.constant 0.000000e+00 : f32
      %82 = vector.broadcast %cst_41 : f32 to vector<1x16xf32>
      %c0_42 = arith.constant 0 : index
      %c0_43 = arith.constant 0 : index
      %83 = vector.load %arg12[%c0_42, %c0_43] : memref<1x16xf32, #tpu.memory_space<vmem>>, vector<1x16xf32>
      tpu.vector_store %arg12[%c0_42, %c0_43], %82 {strides = array<i32>} : memref<1x16xf32, #tpu.memory_space<vmem>>, vector<1x16xf32>,
      %cst_44 = arith.constant 0.000000e+00 : f32
      %84 = vector.broadcast %cst_44 : f32 to vector<1x16xf32>
      %c0_45 = arith.constant 0 : index
      %c0_46 = arith.constant 0 : index
      %85 = vector.load %arg13[%c0_45, %c0_46] : memref<1x16xf32, #tpu.memory_space<vmem>>, vector<1x16xf32>
      tpu.vector_store %arg13[%c0_45, %c0_46], %84 {strides = array<i32>} : memref<1x16xf32, #tpu.memory_space<vmem>>, vector<1x16xf32>,
    } else {
    }
    %c0_31 = arith.constant 0 : index
    %c0_32 = arith.constant 0 : index
    %71 = vector.load %arg12[%c0_31, %c0_32] : memref<1x16xf32, #tpu.memory_space<vmem>>, vector<1x16xf32>
    %cst_33 = arith.constant dense<0.000000e+00> : vector<16xf32>
    %72 = vector.multi_reduction <add>, %47, %cst_33 [0] : vector<16x16xf32> to vector<16xf32>
    %73 = vector.shape_cast %72 : vector<16xf32> to vector<1x16xf32>
    %74 = arith.addf %71, %73 : vector<1x16xf32>
    %c0_34 = arith.constant 0 : index
    %c0_35 = arith.constant 0 : index
    %75 = vector.load %arg12[%c0_34, %c0_35] : memref<1x16xf32, #tpu.memory_space<vmem>>, vector<1x16xf32>
    tpu.vector_store %arg12[%c0_34, %c0_35], %74 {strides = array<i32>} : memref<1x16xf32, #tpu.memory_space<vmem>>, vector<1x16xf32>,
    %c0_36 = arith.constant 0 : index
    %c0_37 = arith.constant 0 : index
    %76 = vector.load %arg13[%c0_36, %c0_37] : memref<1x16xf32, #tpu.memory_space<vmem>>, vector<1x16xf32>
    %77 = arith.mulf %47, %47 : vector<16x16xf32>
    %cst_38 = arith.constant dense<0.000000e+00> : vector<16xf32>
    %78 = vector.multi_reduction <add>, %77, %cst_38 [0] : vector<16x16xf32> to vector<16xf32>
    %79 = vector.shape_cast %78 : vector<16xf32> to vector<1x16xf32>
    %80 = arith.addf %76, %79 : vector<1x16xf32>
    %c0_39 = arith.constant 0 : index
    %c0_40 = arith.constant 0 : index
    %81 = vector.load %arg13[%c0_39, %c0_40] : memref<1x16xf32, #tpu.memory_space<vmem>>, vector<1x16xf32>
    tpu.vector_store %arg13[%c0_39, %c0_40], %80 {strides = array<i32>} : memref<1x16xf32, #tpu.memory_space<vmem>>, vector<1x16xf32>,
    return
  }
  func.func @transform_0(%arg0: i32, %arg1: memref<12xi32, #tpu.memory_space<smem>>, %arg2: memref<12xi32, #tpu.memory_space<smem>>) -> (i32, i32, i32, i32) {
    %0 = arith.index_cast %arg0 : i32 to index
    %1 = memref.load %arg1[%0] : memref<12xi32, #tpu.memory_space<smem>>
    %c0_i32 = arith.constant 0 : i32
    %c0_i32_0 = arith.constant 0 : i32
    %c0_i32_1 = arith.constant 0 : i32
    %c0_i32_2 = arith.constant 0 : i32
    return %1, %c0_i32, %c0_i32_0, %c0_i32_1 : i32, i32, i32, i32
  }
  func.func @transform_1(%arg0: i32, %arg1: memref<12xi32, #tpu.memory_space<smem>>, %arg2: memref<12xi32, #tpu.memory_space<smem>>) -> (i32, i32, i32, i32) {
    %0 = arith.index_cast %arg0 : i32 to index
    %1 = memref.load %arg2[%0] : memref<12xi32, #tpu.memory_space<smem>>
    %c0_i32 = arith.constant 0 : i32
    %c0_i32_0 = arith.constant 0 : i32
    %c0_i32_1 = arith.constant 0 : i32
    %c0_i32_2 = arith.constant 0 : i32
    return %1, %c0_i32, %c0_i32_0, %c0_i32_1 : i32, i32, i32, i32
  }
  func.func @transform_2(%arg0: i32, %arg1: memref<12xi32, #tpu.memory_space<smem>>, %arg2: memref<12xi32, #tpu.memory_space<smem>>) -> (i32, i32) {
    %c0_i32 = arith.constant 0 : i32
    %c0_i32_0 = arith.constant 0 : i32
    %c0_i32_1 = arith.constant 0 : i32
    return %c0_i32, %c0_i32_0 : i32, i32
  }
  func.func @transform_3(%arg0: i32, %arg1: memref<12xi32, #tpu.memory_space<smem>>, %arg2: memref<12xi32, #tpu.memory_space<smem>>) -> (i32, i32) {
    %c0_i32 = arith.constant 0 : i32
    %c0_i32_0 = arith.constant 0 : i32
    %c0_i32_1 = arith.constant 0 : i32
    return %c0_i32, %c0_i32_0 : i32, i32
  }
  func.func @transform_4(%arg0: i32, %arg1: memref<12xi32, #tpu.memory_space<smem>>, %arg2: memref<12xi32, #tpu.memory_space<smem>>) -> (i32, i32) {
    %c0_i32 = arith.constant 0 : i32
    %c0_i32_0 = arith.constant 0 : i32
    %c0_i32_1 = arith.constant 0 : i32
    return %c0_i32, %c0_i32_0 : i32, i32
  }
  func.func @transform_5(%arg0: i32, %arg1: memref<12xi32, #tpu.memory_space<smem>>, %arg2: memref<12xi32, #tpu.memory_space<smem>>) -> (i32, i32) {
    %c0_i32 = arith.constant 0 : i32
    %c0_i32_0 = arith.constant 0 : i32
    %c0_i32_1 = arith.constant 0 : i32
    return %c0_i32, %c0_i32_0 : i32, i32
  }
  func.func @transform_6(%arg0: i32, %arg1: memref<12xi32, #tpu.memory_space<smem>>, %arg2: memref<12xi32, #tpu.memory_space<smem>>) -> (i32, i32) {
    %c0_i32 = arith.constant 0 : i32
    %c0_i32_0 = arith.constant 0 : i32
    %c0_i32_1 = arith.constant 0 : i32
    return %c0_i32, %c0_i32_0 : i32, i32
  }
  func.func @transform_7(%arg0: i32, %arg1: memref<12xi32, #tpu.memory_space<smem>>, %arg2: memref<12xi32, #tpu.memory_space<smem>>) -> (i32, i32) {
    %c0_i32 = arith.constant 0 : i32
    %c0_i32_0 = arith.constant 0 : i32
    %c0_i32_1 = arith.constant 0 : i32
    return %c0_i32, %c0_i32_0 : i32, i32
  }
  func.func @transform_8(%arg0: i32, %arg1: memref<12xi32, #tpu.memory_space<smem>>, %arg2: memref<12xi32, #tpu.memory_space<smem>>) -> (i32, i32, i32) {
    %c0_i32 = arith.constant 0 : i32
    %c0_i32_0 = arith.constant 0 : i32
    %c0_i32_1 = arith.constant 0 : i32
    return %arg0, %c0_i32, %c0_i32_0 : i32, i32, i32
  }
  func.func @transform_9(%arg0: i32, %arg1: memref<12xi32, #tpu.memory_space<smem>>, %arg2: memref<12xi32, #tpu.memory_space<smem>>) -> (i32, i32) {
    %c0_i32 = arith.constant 0 : i32
    %c0_i32_0 = arith.constant 0 : i32
    %c0_i32_1 = arith.constant 0 : i32
    return %c0_i32, %c0_i32_0 : i32, i32
  }
  func.func @transform_10(%arg0: i32, %arg1: memref<12xi32, #tpu.memory_space<smem>>, %arg2: memref<12xi32, #tpu.memory_space<smem>>) -> (i32, i32) {
    %c0_i32 = arith.constant 0 : i32
    %c0_i32_0 = arith.constant 0 : i32
    %c0_i32_1 = arith.constant 0 : i32
    return %c0_i32, %c0_i32_0 : i32, i32
  }
}

module attributes {stable_mosaic.version = 11 : i64} {
  func.func @_edge_stage2_kernel(%arg0: i32, %arg1: memref<3x2x128xf32, #tpu.memory_space<vmem>>, %arg2: memref<1x3x2xf32, #tpu.memory_space<vmem>>, %arg3: memref<1x128xf32, #tpu.memory_space<vmem>>, %arg4: memref<1x128xf32, #tpu.memory_space<vmem>>, %arg5: memref<3x2x128xf32, #tpu.memory_space<vmem>>, %arg6: memref<1x2x8x16xf32, #tpu.memory_space<vmem>>) attributes {dimension_semantics = [#tpu.dimension_semantics<parallel>], iteration_bounds = array<i64: 4>, scalar_prefetch = 0 : i64, scratch_operands = 0 : i64, tpu.core_type = #tpu.core_type<tc>, window_params = [{transform_indices = @transform_0, window_bounds = array<i64: 3, 2, 128>}, {transform_indices = @transform_1, window_bounds = array<i64: 1, 3, 2>}, {pipeline_mode = #tpu.pipeline_mode<synchronous>, transform_indices = @transform_2, window_bounds = array<i64: 1, 128>}, {pipeline_mode = #tpu.pipeline_mode<synchronous>, transform_indices = @transform_3, window_bounds = array<i64: 1, 128>}, {transform_indices = @transform_4, window_bounds = array<i64: 3, 2, 128>}, {transform_indices = @transform_5, window_bounds = array<i64: 1, 2, 8, 16>}]} {
    %c0 = arith.constant 0 : index
    %c0_0 = arith.constant 0 : index
    %c0_1 = arith.constant 0 : index
    %0 = vector.load %arg1[%c0, %c0_0, %c0_1] : memref<3x2x128xf32, #tpu.memory_space<vmem>>, vector<3x2x128xf32>
    %c0_2 = arith.constant 0 : index
    %c0_3 = arith.constant 0 : index
    %1 = vector.load %arg3[%c0_2, %c0_3] : memref<1x128xf32, #tpu.memory_space<vmem>>, vector<1x128xf32>
    %2 = vector.shape_cast %1 : vector<1x128xf32> to vector<1x1x128xf32>
    %3 = vector.broadcast %2 : vector<1x1x128xf32> to vector<3x2x128xf32>
    %4 = arith.mulf %0, %3 : vector<3x2x128xf32>
    %c0_4 = arith.constant 0 : index
    %c0_5 = arith.constant 0 : index
    %5 = vector.load %arg4[%c0_4, %c0_5] : memref<1x128xf32, #tpu.memory_space<vmem>>, vector<1x128xf32>
    %6 = vector.shape_cast %5 : vector<1x128xf32> to vector<1x1x128xf32>
    %7 = vector.broadcast %6 : vector<1x1x128xf32> to vector<3x2x128xf32>
    %8 = arith.addf %4, %7 : vector<3x2x128xf32>
    %c0_6 = arith.constant 0 : index
    %c0_7 = arith.constant 0 : index
    %c0_8 = arith.constant 0 : index
    %9 = vector.load %arg2[%c0_6, %c0_7, %c0_8] : memref<1x3x2xf32, #tpu.memory_space<vmem>>, vector<1x3x2xf32>
    %10 = vector.shape_cast %9 : vector<1x3x2xf32> to vector<3x2xf32>
    %11 = vector.shape_cast %10 : vector<3x2xf32> to vector<3x2x1xf32>
    %12 = vector.broadcast %11 : vector<3x2x1xf32> to vector<3x2x128xf32>
    %13 = arith.mulf %8, %12 : vector<3x2x128xf32>
    %c0_9 = arith.constant 0 : index
    %c0_10 = arith.constant 0 : index
    %c0_11 = arith.constant 0 : index
    %14 = vector.load %arg5[%c0_9, %c0_10, %c0_11] : memref<3x2x128xf32, #tpu.memory_space<vmem>>, vector<3x2x128xf32>
    tpu.vector_store %arg5[%c0_9, %c0_10, %c0_11], %13 {strides = array<i32>} : memref<3x2x128xf32, #tpu.memory_space<vmem>>, vector<3x2x128xf32>,
    %cst = arith.constant dense<0.000000e+00> : vector<2x128xf32>
    %15 = vector.multi_reduction <add>, %13, %cst [0] : vector<3x2x128xf32> to vector<2x128xf32>
    %cst_12 = arith.constant 0.333333343 : f32
    %16 = vector.broadcast %cst_12 : f32 to vector<2x128xf32>
    %17 = arith.mulf %15, %16 : vector<2x128xf32>
    %18 = vector.extract_strided_slice %17 {offsets = [0, 0], sizes = [2, 16], strides = [1, 1]} : vector<2x128xf32> to vector<2x16xf32>
    %19 = vector.extract_strided_slice %17 {offsets = [0, 16], sizes = [2, 16], strides = [1, 1]} : vector<2x128xf32> to vector<2x16xf32>
    %20 = vector.extract_strided_slice %17 {offsets = [0, 32], sizes = [2, 16], strides = [1, 1]} : vector<2x128xf32> to vector<2x16xf32>
    %21 = vector.extract_strided_slice %17 {offsets = [0, 48], sizes = [2, 16], strides = [1, 1]} : vector<2x128xf32> to vector<2x16xf32>
    %22 = vector.extract_strided_slice %17 {offsets = [0, 64], sizes = [2, 16], strides = [1, 1]} : vector<2x128xf32> to vector<2x16xf32>
    %23 = vector.extract_strided_slice %17 {offsets = [0, 80], sizes = [2, 16], strides = [1, 1]} : vector<2x128xf32> to vector<2x16xf32>
    %24 = vector.extract_strided_slice %17 {offsets = [0, 96], sizes = [2, 16], strides = [1, 1]} : vector<2x128xf32> to vector<2x16xf32>
    %25 = vector.extract_strided_slice %17 {offsets = [0, 112], sizes = [2, 16], strides = [1, 1]} : vector<2x128xf32> to vector<2x16xf32>
    %26 = vector.shape_cast %18 : vector<2x16xf32> to vector<2x1x16xf32>
    %27 = vector.shape_cast %19 : vector<2x16xf32> to vector<2x1x16xf32>
    %28 = vector.shape_cast %20 : vector<2x16xf32> to vector<2x1x16xf32>
    %29 = vector.shape_cast %21 : vector<2x16xf32> to vector<2x1x16xf32>
    %30 = vector.shape_cast %22 : vector<2x16xf32> to vector<2x1x16xf32>
    %31 = vector.shape_cast %23 : vector<2x16xf32> to vector<2x1x16xf32>
    %32 = vector.shape_cast %24 : vector<2x16xf32> to vector<2x1x16xf32>
    %33 = vector.shape_cast %25 : vector<2x16xf32> to vector<2x1x16xf32>
    %34 = tpu.concatenate %26, %27, %28, %29, %30, %31, %32, %33 in 1 : vector<2x1x16xf32>, vector<2x1x16xf32>, vector<2x1x16xf32>, vector<2x1x16xf32>, vector<2x1x16xf32>, vector<2x1x16xf32>, vector<2x1x16xf32>, vector<2x1x16xf32> -> vector<2x8x16xf32>
    %35 = vector.shape_cast %34 : vector<2x8x16xf32> to vector<1x2x8x16xf32>
    %c0_13 = arith.constant 0 : index
    %c0_14 = arith.constant 0 : index
    %c0_15 = arith.constant 0 : index
    %c0_16 = arith.constant 0 : index
    %36 = vector.load %arg6[%c0_13, %c0_14, %c0_15, %c0_16] : memref<1x2x8x16xf32, #tpu.memory_space<vmem>>, vector<1x2x8x16xf32>
    tpu.vector_store %arg6[%c0_13, %c0_14, %c0_15, %c0_16], %35 {strides = array<i32>} : memref<1x2x8x16xf32, #tpu.memory_space<vmem>>, vector<1x2x8x16xf32>,
    return
  }
  func.func @transform_0(%arg0: i32) -> (i32, i32, i32) {
    %c0_i32 = arith.constant 0 : i32
    %c0_i32_0 = arith.constant 0 : i32
    %c0_i32_1 = arith.constant 0 : i32
    return %arg0, %c0_i32, %c0_i32_0 : i32, i32, i32
  }
  func.func @transform_1(%arg0: i32) -> (i32, i32, i32) {
    %c0_i32 = arith.constant 0 : i32
    %c0_i32_0 = arith.constant 0 : i32
    %c0_i32_1 = arith.constant 0 : i32
    return %arg0, %c0_i32, %c0_i32_0 : i32, i32, i32
  }
  func.func @transform_2(%arg0: i32) -> (i32, i32) {
    %c0_i32 = arith.constant 0 : i32
    %c0_i32_0 = arith.constant 0 : i32
    %c0_i32_1 = arith.constant 0 : i32
    return %c0_i32, %c0_i32_0 : i32, i32
  }
  func.func @transform_3(%arg0: i32) -> (i32, i32) {
    %c0_i32 = arith.constant 0 : i32
    %c0_i32_0 = arith.constant 0 : i32
    %c0_i32_1 = arith.constant 0 : i32
    return %c0_i32, %c0_i32_0 : i32, i32
  }
  func.func @transform_4(%arg0: i32) -> (i32, i32, i32) {
    %c0_i32 = arith.constant 0 : i32
    %c0_i32_0 = arith.constant 0 : i32
    %c0_i32_1 = arith.constant 0 : i32
    return %arg0, %c0_i32, %c0_i32_0 : i32, i32, i32
  }
  func.func @transform_5(%arg0: i32) -> (i32, i32, i32, i32) {
    %c0_i32 = arith.constant 0 : i32
    %c0_i32_0 = arith.constant 0 : i32
    %c0_i32_1 = arith.constant 0 : i32
    %c0_i32_2 = arith.constant 0 : i32
    return %arg0, %c0_i32, %c0_i32_0, %c0_i32_1 : i32, i32, i32, i32
  }
}

module attributes {stable_mosaic.version = 11 : i64} {
  func.func @_node_stage2_kernel(%arg0: i32, %arg1: memref<1x2x128xf32, #tpu.memory_space<vmem>>, %arg2: memref<1x2x1xf32, #tpu.memory_space<vmem>>, %arg3: memref<1x128xf32, #tpu.memory_space<vmem>>, %arg4: memref<1x128xf32, #tpu.memory_space<vmem>>, %arg5: memref<1x2x128xf32, #tpu.memory_space<vmem>>) attributes {dimension_semantics = [#tpu.dimension_semantics<parallel>], iteration_bounds = array<i64: 4>, scalar_prefetch = 0 : i64, scratch_operands = 0 : i64, tpu.core_type = #tpu.core_type<tc>, window_params = [{transform_indices = @transform_0, window_bounds = array<i64: 1, 2, 128>}, {transform_indices = @transform_1, window_bounds = array<i64: 1, 2, 1>}, {pipeline_mode = #tpu.pipeline_mode<synchronous>, transform_indices = @transform_2, window_bounds = array<i64: 1, 128>}, {pipeline_mode = #tpu.pipeline_mode<synchronous>, transform_indices = @transform_3, window_bounds = array<i64: 1, 128>}, {transform_indices = @transform_4, window_bounds = array<i64: 1, 2, 128>}]} {
    %c0 = arith.constant 0 : index
    %c0_0 = arith.constant 0 : index
    %c0_1 = arith.constant 0 : index
    %0 = vector.load %arg1[%c0, %c0_0, %c0_1] : memref<1x2x128xf32, #tpu.memory_space<vmem>>, vector<1x2x128xf32>
    %c0_2 = arith.constant 0 : index
    %c0_3 = arith.constant 0 : index
    %1 = vector.load %arg3[%c0_2, %c0_3] : memref<1x128xf32, #tpu.memory_space<vmem>>, vector<1x128xf32>
    %2 = vector.shape_cast %1 : vector<1x128xf32> to vector<1x1x128xf32>
    %3 = vector.broadcast %2 : vector<1x1x128xf32> to vector<1x2x128xf32>
    %4 = arith.mulf %0, %3 : vector<1x2x128xf32>
    %c0_4 = arith.constant 0 : index
    %c0_5 = arith.constant 0 : index
    %5 = vector.load %arg4[%c0_4, %c0_5] : memref<1x128xf32, #tpu.memory_space<vmem>>, vector<1x128xf32>
    %6 = vector.shape_cast %5 : vector<1x128xf32> to vector<1x1x128xf32>
    %7 = vector.broadcast %6 : vector<1x1x128xf32> to vector<1x2x128xf32>
    %8 = arith.addf %4, %7 : vector<1x2x128xf32>
    %c0_6 = arith.constant 0 : index
    %c0_7 = arith.constant 0 : index
    %c0_8 = arith.constant 0 : index
    %9 = vector.load %arg2[%c0_6, %c0_7, %c0_8] : memref<1x2x1xf32, #tpu.memory_space<vmem>>, vector<1x2x1xf32>
    %10 = vector.broadcast %9 : vector<1x2x1xf32> to vector<1x2x128xf32>
    %11 = arith.mulf %8, %10 : vector<1x2x128xf32>
    %c0_9 = arith.constant 0 : index
    %c0_10 = arith.constant 0 : index
    %c0_11 = arith.constant 0 : index
    %12 = vector.load %arg5[%c0_9, %c0_10, %c0_11] : memref<1x2x128xf32, #tpu.memory_space<vmem>>, vector<1x2x128xf32>
    tpu.vector_store %arg5[%c0_9, %c0_10, %c0_11], %11 {strides = array<i32>} : memref<1x2x128xf32, #tpu.memory_space<vmem>>, vector<1x2x128xf32>,
    return
  }
  func.func @transform_0(%arg0: i32) -> (i32, i32, i32) {
    %c0_i32 = arith.constant 0 : i32
    %c0_i32_0 = arith.constant 0 : i32
    %c0_i32_1 = arith.constant 0 : i32
    return %arg0, %c0_i32, %c0_i32_0 : i32, i32, i32
  }
  func.func @transform_1(%arg0: i32) -> (i32, i32, i32) {
    %c0_i32 = arith.constant 0 : i32
    %c0_i32_0 = arith.constant 0 : i32
    %c0_i32_1 = arith.constant 0 : i32
    return %arg0, %c0_i32, %c0_i32_0 : i32, i32, i32
  }
  func.func @transform_2(%arg0: i32) -> (i32, i32) {
    %c0_i32 = arith.constant 0 : i32
    %c0_i32_0 = arith.constant 0 : i32
    %c0_i32_1 = arith.constant 0 : i32
    return %c0_i32, %c0_i32_0 : i32, i32
  }
  func.func @transform_3(%arg0: i32) -> (i32, i32) {
    %c0_i32 = arith.constant 0 : i32
    %c0_i32_0 = arith.constant 0 : i32
    %c0_i32_1 = arith.constant 0 : i32
    return %c0_i32, %c0_i32_0 : i32, i32
  }
  func.func @transform_4(%arg0: i32) -> (i32, i32, i32) {
    %c0_i32 = arith.constant 0 : i32
    %c0_i32_0 = arith.constant 0 : i32
    %c0_i32_1 = arith.constant 0 : i32
    return %arg0, %c0_i32, %c0_i32_0 : i32, i32, i32
  }
}

module attributes {stable_mosaic.version = 11 : i64} {
  func.func @_node_stage1_kernel(%arg0: i32, %arg1: memref<1x2x8x16xf32, #tpu.memory_space<vmem>>, %arg2: memref<1x2x8x16xf32, #tpu.memory_space<vmem>>, %arg3: memref<8x16xbf16, #tpu.memory_space<vmem>>, %arg4: memref<8x1xf32, #tpu.memory_space<vmem>>, %arg5: memref<16x32xbf16, #tpu.memory_space<vmem>>, %arg6: memref<1x32xf32, #tpu.memory_space<vmem>>, %arg7: memref<32x16xbf16, #tpu.memory_space<vmem>>, %arg8: memref<1x16xf32, #tpu.memory_space<vmem>>, %arg9: memref<1x2x128xf32, #tpu.memory_space<vmem>>, %arg10: memref<1x16xf32, #tpu.memory_space<vmem>>, %arg11: memref<1x16xf32, #tpu.memory_space<vmem>>) attributes {dimension_semantics = [#tpu.dimension_semantics<arbitrary>], iteration_bounds = array<i64: 4>, scalar_prefetch = 0 : i64, scratch_operands = 0 : i64, tpu.core_type = #tpu.core_type<tc>, window_params = [{transform_indices = @transform_0, window_bounds = array<i64: 1, 2, 8, 16>}, {transform_indices = @transform_1, window_bounds = array<i64: 1, 2, 8, 16>}, {pipeline_mode = #tpu.pipeline_mode<synchronous>, transform_indices = @transform_2, window_bounds = array<i64: 8, 16>}, {pipeline_mode = #tpu.pipeline_mode<synchronous>, transform_indices = @transform_3, window_bounds = array<i64: 8, 1>}, {pipeline_mode = #tpu.pipeline_mode<synchronous>, transform_indices = @transform_4, window_bounds = array<i64: 16, 32>}, {pipeline_mode = #tpu.pipeline_mode<synchronous>, transform_indices = @transform_5, window_bounds = array<i64: 1, 32>}, {pipeline_mode = #tpu.pipeline_mode<synchronous>, transform_indices = @transform_6, window_bounds = array<i64: 32, 16>}, {pipeline_mode = #tpu.pipeline_mode<synchronous>, transform_indices = @transform_7, window_bounds = array<i64: 1, 16>}, {transform_indices = @transform_8, window_bounds = array<i64: 1, 2, 128>}, {pipeline_mode = #tpu.pipeline_mode<synchronous>, transform_indices = @transform_9, window_bounds = array<i64: 1, 16>}, {pipeline_mode = #tpu.pipeline_mode<synchronous>, transform_indices = @transform_10, window_bounds = array<i64: 1, 16>}]} {
    %c0 = arith.constant 0 : index
    %c0_0 = arith.constant 0 : index
    %c0_1 = arith.constant 0 : index
    %c0_2 = arith.constant 0 : index
    %0 = vector.load %arg1[%c0, %c0_0, %c0_1, %c0_2] : memref<1x2x8x16xf32, #tpu.memory_space<vmem>>, vector<1x2x8x16xf32>
    %1 = vector.shape_cast %0 : vector<1x2x8x16xf32> to vector<2x8x16xf32>
    %c0_3 = arith.constant 0 : index
    %c0_4 = arith.constant 0 : index
    %c0_5 = arith.constant 0 : index
    %c0_6 = arith.constant 0 : index
    %2 = vector.load %arg2[%c0_3, %c0_4, %c0_5, %c0_6] : memref<1x2x8x16xf32, #tpu.memory_space<vmem>>, vector<1x2x8x16xf32>
    %3 = vector.shape_cast %2 : vector<1x2x8x16xf32> to vector<2x8x16xf32>
    %4 = tpu.concatenate %1, %3 in 1 : vector<2x8x16xf32>, vector<2x8x16xf32> -> vector<2x16x16xf32>
    %c0_7 = arith.constant 0 : index
    %c0_8 = arith.constant 0 : index
    %5 = vector.load %arg3[%c0_7, %c0_8] : memref<8x16xbf16, #tpu.memory_space<vmem>>, vector<8x16xbf16>
    %c0_9 = arith.constant 0 : index
    %c0_10 = arith.constant 0 : index
    %6 = vector.load %arg4[%c0_9, %c0_10] : memref<8x1xf32, #tpu.memory_space<vmem>>, vector<8x1xf32>
    %c0_11 = arith.constant 0 : index
    %c0_12 = arith.constant 0 : index
    %7 = vector.load %arg5[%c0_11, %c0_12] : memref<16x32xbf16, #tpu.memory_space<vmem>>, vector<16x32xbf16>
    %c0_13 = arith.constant 0 : index
    %c0_14 = arith.constant 0 : index
    %8 = vector.load %arg6[%c0_13, %c0_14] : memref<1x32xf32, #tpu.memory_space<vmem>>, vector<1x32xf32>
    %c0_15 = arith.constant 0 : index
    %c0_16 = arith.constant 0 : index
    %9 = vector.load %arg7[%c0_15, %c0_16] : memref<32x16xbf16, #tpu.memory_space<vmem>>, vector<32x16xbf16>
    %c0_17 = arith.constant 0 : index
    %c0_18 = arith.constant 0 : index
    %10 = vector.load %arg8[%c0_17, %c0_18] : memref<1x16xf32, #tpu.memory_space<vmem>>, vector<1x16xf32>
    %11 = vector.shape_cast %5 : vector<8x16xbf16> to vector<1x8x16xbf16>
    %12 = vector.broadcast %11 : vector<1x8x16xbf16> to vector<2x8x16xbf16>
    %13 = arith.truncf %4 : vector<2x16x16xf32> to vector<2x16x16xbf16>
    "tpu.trace_start"() <{level = 10 : i32, message = "bhc,bcf->bhf"}> : () -> ()
    %cst = arith.constant dense<0.000000e+00> : vector<2x8x16xf32>
    %14 = tpu.matmul %12, %13, %cst {dimension_numbers = #tpu.dot_dimension_numbers<[2], [1], [1], [2], [0, 0, 0, 1, 1, 2], [0], [0]>} : vector<2x8x16xbf16>, vector<2x16x16xbf16>, vector<2x8x16xf32> -> vector<2x8x16xf32>
    "tpu.trace_stop"() : () -> ()
    %15 = vector.shape_cast %6 : vector<8x1xf32> to vector<1x8x1xf32>
    %16 = vector.broadcast %15 : vector<1x8x1xf32> to vector<2x8x16xf32>
    %17 = arith.addf %14, %16 : vector<2x8x16xf32>
    %cst_19 = arith.constant 0.000000e+00 : f32
    %18 = vector.broadcast %cst_19 : f32 to vector<2x8x16xf32>
    %19 = arith.subf %18, %17 : vector<2x8x16xf32>
    %20 = math.exp %19 : vector<2x8x16xf32>
    %cst_20 = arith.constant 1.000000e+00 : f32
    %21 = vector.broadcast %cst_20 : f32 to vector<2x8x16xf32>
    %22 = arith.addf %21, %20 : vector<2x8x16xf32>
    %23 = tpu.reciprocal %22 {approx = true} : vector<2x8x16xf32> -> vector<2x8x16xf32>
    %24 = arith.mulf %17, %23 : vector<2x8x16xf32>
    %25 = vector.shape_cast %24 : vector<2x8x16xf32> to vector<16x16xf32>
    %26 = arith.truncf %25 : vector<16x16xf32> to vector<16x16xbf16>
    %cst_21 = arith.constant dense<0.000000e+00> : vector<16x32xf32>
    %27 = tpu.matmul %26, %7, %cst_21 {dimension_numbers = #tpu.dot_dimension_numbers<[1], [0], [0], [1], [0, 0, 1, 1], [], []>} : vector<16x16xbf16>, vector<16x32xbf16>, vector<16x32xf32> -> vector<16x32xf32>
    %28 = vector.broadcast %8 : vector<1x32xf32> to vector<16x32xf32>
    %29 = arith.addf %27, %28 : vector<16x32xf32>
    %cst_22 = arith.constant 0.000000e+00 : f32
    %30 = vector.broadcast %cst_22 : f32 to vector<16x32xf32>
    %31 = arith.subf %30, %29 : vector<16x32xf32>
    %32 = math.exp %31 : vector<16x32xf32>
    %cst_23 = arith.constant 1.000000e+00 : f32
    %33 = vector.broadcast %cst_23 : f32 to vector<16x32xf32>
    %34 = arith.addf %33, %32 : vector<16x32xf32>
    %35 = tpu.reciprocal %34 {approx = true} : vector<16x32xf32> -> vector<16x32xf32>
    %36 = arith.mulf %29, %35 : vector<16x32xf32>
    %37 = arith.truncf %36 : vector<16x32xf32> to vector<16x32xbf16>
    %cst_24 = arith.constant dense<0.000000e+00> : vector<16x16xf32>
    %38 = tpu.matmul %37, %9, %cst_24 {dimension_numbers = #tpu.dot_dimension_numbers<[1], [0], [0], [1], [0, 0, 1, 1], [], []>} : vector<16x32xbf16>, vector<32x16xbf16>, vector<16x16xf32> -> vector<16x16xf32>
    %39 = vector.broadcast %10 : vector<1x16xf32> to vector<16x16xf32>
    %40 = arith.addf %38, %39 : vector<16x16xf32>
    %cst_25 = arith.constant 0.000000e+00 : f32
    %41 = vector.broadcast %cst_25 : f32 to vector<16x16xf32>
    %42 = arith.subf %41, %40 : vector<16x16xf32>
    %43 = math.exp %42 : vector<16x16xf32>
    %cst_26 = arith.constant 1.000000e+00 : f32
    %44 = vector.broadcast %cst_26 : f32 to vector<16x16xf32>
    %45 = arith.addf %44, %43 : vector<16x16xf32>
    %46 = tpu.reciprocal %45 {approx = true} : vector<16x16xf32> -> vector<16x16xf32>
    %47 = arith.mulf %40, %46 : vector<16x16xf32>
    %48 = vector.shape_cast %47 : vector<16x16xf32> to vector<2x8x16xf32>
    %49 = vector.extract_strided_slice %48 {offsets = [0, 0, 0], sizes = [2, 1, 16], strides = [1, 1, 1]} : vector<2x8x16xf32> to vector<2x1x16xf32>
    %50 = vector.shape_cast %49 : vector<2x1x16xf32> to vector<2x16xf32>
    %51 = vector.extract_strided_slice %48 {offsets = [0, 1, 0], sizes = [2, 1, 16], strides = [1, 1, 1]} : vector<2x8x16xf32> to vector<2x1x16xf32>
    %52 = vector.shape_cast %51 : vector<2x1x16xf32> to vector<2x16xf32>
    %53 = vector.extract_strided_slice %48 {offsets = [0, 2, 0], sizes = [2, 1, 16], strides = [1, 1, 1]} : vector<2x8x16xf32> to vector<2x1x16xf32>
    %54 = vector.shape_cast %53 : vector<2x1x16xf32> to vector<2x16xf32>
    %55 = vector.extract_strided_slice %48 {offsets = [0, 3, 0], sizes = [2, 1, 16], strides = [1, 1, 1]} : vector<2x8x16xf32> to vector<2x1x16xf32>
    %56 = vector.shape_cast %55 : vector<2x1x16xf32> to vector<2x16xf32>
    %57 = vector.extract_strided_slice %48 {offsets = [0, 4, 0], sizes = [2, 1, 16], strides = [1, 1, 1]} : vector<2x8x16xf32> to vector<2x1x16xf32>
    %58 = vector.shape_cast %57 : vector<2x1x16xf32> to vector<2x16xf32>
    %59 = vector.extract_strided_slice %48 {offsets = [0, 5, 0], sizes = [2, 1, 16], strides = [1, 1, 1]} : vector<2x8x16xf32> to vector<2x1x16xf32>
    %60 = vector.shape_cast %59 : vector<2x1x16xf32> to vector<2x16xf32>
    %61 = vector.extract_strided_slice %48 {offsets = [0, 6, 0], sizes = [2, 1, 16], strides = [1, 1, 1]} : vector<2x8x16xf32> to vector<2x1x16xf32>
    %62 = vector.shape_cast %61 : vector<2x1x16xf32> to vector<2x16xf32>
    %63 = vector.extract_strided_slice %48 {offsets = [0, 7, 0], sizes = [2, 1, 16], strides = [1, 1, 1]} : vector<2x8x16xf32> to vector<2x1x16xf32>
    %64 = vector.shape_cast %63 : vector<2x1x16xf32> to vector<2x16xf32>
    %65 = tpu.concatenate %50, %52, %54, %56, %58, %60, %62, %64 in 1 : vector<2x16xf32>, vector<2x16xf32>, vector<2x16xf32>, vector<2x16xf32>, vector<2x16xf32>, vector<2x16xf32>, vector<2x16xf32>, vector<2x16xf32> -> vector<2x128xf32>
    %66 = vector.shape_cast %65 : vector<2x128xf32> to vector<1x2x128xf32>
    %c0_27 = arith.constant 0 : index
    %c0_28 = arith.constant 0 : index
    %c0_29 = arith.constant 0 : index
    %67 = vector.load %arg9[%c0_27, %c0_28, %c0_29] : memref<1x2x128xf32, #tpu.memory_space<vmem>>, vector<1x2x128xf32>
    tpu.vector_store %arg9[%c0_27, %c0_28, %c0_29], %66 {strides = array<i32>} : memref<1x2x128xf32, #tpu.memory_space<vmem>>, vector<1x2x128xf32>,
    %c0_i32 = arith.constant 0 : i32
    %68 = arith.cmpi eq, %arg0, %c0_i32 : i32
    %69 = arith.extui %68 : i1 to i32
    %c0_i32_30 = arith.constant 0 : i32
    %70 = arith.cmpi ne, %69, %c0_i32_30 : i32
    scf.if %70 {
      %cst_41 = arith.constant 0.000000e+00 : f32
      %82 = vector.broadcast %cst_41 : f32 to vector<1x16xf32>
      %c0_42 = arith.constant 0 : index
      %c0_43 = arith.constant 0 : index
      %83 = vector.load %arg10[%c0_42, %c0_43] : memref<1x16xf32, #tpu.memory_space<vmem>>, vector<1x16xf32>
      tpu.vector_store %arg10[%c0_42, %c0_43], %82 {strides = array<i32>} : memref<1x16xf32, #tpu.memory_space<vmem>>, vector<1x16xf32>,
      %cst_44 = arith.constant 0.000000e+00 : f32
      %84 = vector.broadcast %cst_44 : f32 to vector<1x16xf32>
      %c0_45 = arith.constant 0 : index
      %c0_46 = arith.constant 0 : index
      %85 = vector.load %arg11[%c0_45, %c0_46] : memref<1x16xf32, #tpu.memory_space<vmem>>, vector<1x16xf32>
      tpu.vector_store %arg11[%c0_45, %c0_46], %84 {strides = array<i32>} : memref<1x16xf32, #tpu.memory_space<vmem>>, vector<1x16xf32>,
    } else {
    }
    %c0_31 = arith.constant 0 : index
    %c0_32 = arith.constant 0 : index
    %71 = vector.load %arg10[%c0_31, %c0_32] : memref<1x16xf32, #tpu.memory_space<vmem>>, vector<1x16xf32>
    %cst_33 = arith.constant dense<0.000000e+00> : vector<16xf32>
    %72 = vector.multi_reduction <add>, %47, %cst_33 [0] : vector<16x16xf32> to vector<16xf32>
    %73 = vector.shape_cast %72 : vector<16xf32> to vector<1x16xf32>
    %74 = arith.addf %71, %73 : vector<1x16xf32>
    %c0_34 = arith.constant 0 : index
    %c0_35 = arith.constant 0 : index
    %75 = vector.load %arg10[%c0_34, %c0_35] : memref<1x16xf32, #tpu.memory_space<vmem>>, vector<1x16xf32>
    tpu.vector_store %arg10[%c0_34, %c0_35], %74 {strides = array<i32>} : memref<1x16xf32, #tpu.memory_space<vmem>>, vector<1x16xf32>,
    %c0_36 = arith.constant 0 : index
    %c0_37 = arith.constant 0 : index
    %76 = vector.load %arg11[%c0_36, %c0_37] : memref<1x16xf32, #tpu.memory_space<vmem>>, vector<1x16xf32>
    %77 = arith.mulf %47, %47 : vector<16x16xf32>
    %cst_38 = arith.constant dense<0.000000e+00> : vector<16xf32>
    %78 = vector.multi_reduction <add>, %77, %cst_38 [0] : vector<16x16xf32> to vector<16xf32>
    %79 = vector.shape_cast %78 : vector<16xf32> to vector<1x16xf32>
    %80 = arith.addf %76, %79 : vector<1x16xf32>
    %c0_39 = arith.constant 0 : index
    %c0_40 = arith.constant 0 : index
    %81 = vector.load %arg11[%c0_39, %c0_40] : memref<1x16xf32, #tpu.memory_space<vmem>>, vector<1x16xf32>
    tpu.vector_store %arg11[%c0_39, %c0_40], %80 {strides = array<i32>} : memref<1x16xf32, #tpu.memory_space<vmem>>, vector<1x16xf32>,
    return
  }
  func.func @transform_0(%arg0: i32) -> (i32, i32, i32, i32) {
    %c0_i32 = arith.constant 0 : i32
    %c0_i32_0 = arith.constant 0 : i32
    %c0_i32_1 = arith.constant 0 : i32
    %c0_i32_2 = arith.constant 0 : i32
    return %arg0, %c0_i32, %c0_i32_0, %c0_i32_1 : i32, i32, i32, i32
  }
  func.func @transform_1(%arg0: i32) -> (i32, i32, i32, i32) {
    %c0_i32 = arith.constant 0 : i32
    %c0_i32_0 = arith.constant 0 : i32
    %c0_i32_1 = arith.constant 0 : i32
    %c0_i32_2 = arith.constant 0 : i32
    return %arg0, %c0_i32, %c0_i32_0, %c0_i32_1 : i32, i32, i32, i32
  }
  func.func @transform_2(%arg0: i32) -> (i32, i32) {
    %c0_i32 = arith.constant 0 : i32
    %c0_i32_0 = arith.constant 0 : i32
    %c0_i32_1 = arith.constant 0 : i32
    return %c0_i32, %c0_i32_0 : i32, i32
  }
  func.func @transform_3(%arg0: i32) -> (i32, i32) {
    %c0_i32 = arith.constant 0 : i32
    %c0_i32_0 = arith.constant 0 : i32
    %c0_i32_1 = arith.constant 0 : i32
    return %c0_i32, %c0_i32_0 : i32, i32
  }
  func.func @transform_4(%arg0: i32) -> (i32, i32) {
    %c0_i32 = arith.constant 0 : i32
    %c0_i32_0 = arith.constant 0 : i32
    %c0_i32_1 = arith.constant 0 : i32
    return %c0_i32, %c0_i32_0 : i32, i32
  }
  func.func @transform_5(%arg0: i32) -> (i32, i32) {
    %c0_i32 = arith.constant 0 : i32
    %c0_i32_0 = arith.constant 0 : i32
    %c0_i32_1 = arith.constant 0 : i32
    return %c0_i32, %c0_i32_0 : i32, i32
  }
  func.func @transform_6(%arg0: i32) -> (i32, i32) {
    %c0_i32 = arith.constant 0 : i32
    %c0_i32_0 = arith.constant 0 : i32
    %c0_i32_1 = arith.constant 0 : i32
    return %c0_i32, %c0_i32_0 : i32, i32
  }
  func.func @transform_7(%arg0: i32) -> (i32, i32) {
    %c0_i32 = arith.constant 0 : i32
    %c0_i32_0 = arith.constant 0 : i32
    %c0_i32_1 = arith.constant 0 : i32
    return %c0_i32, %c0_i32_0 : i32, i32
  }
  func.func @transform_8(%arg0: i32) -> (i32, i32, i32) {
    %c0_i32 = arith.constant 0 : i32
    %c0_i32_0 = arith.constant 0 : i32
    %c0_i32_1 = arith.constant 0 : i32
    return %arg0, %c0_i32, %c0_i32_0 : i32, i32, i32
  }
  func.func @transform_9(%arg0: i32) -> (i32, i32) {
    %c0_i32 = arith.constant 0 : i32
    %c0_i32_0 = arith.constant 0 : i32
    %c0_i32_1 = arith.constant 0 : i32
    return %c0_i32, %c0_i32_0 : i32, i32
  }
  func.func @transform_10(%arg0: i32) -> (i32, i32) {
    %c0_i32 = arith.constant 0 : i32
    %c0_i32_0 = arith.constant 0 : i32
    %c0_i32_1 = arith.constant 0 : i32
    return %c0_i32, %c0_i32_0 : i32, i32
  }
}

</mosaic_0001>

<llo_original>
// kernel: tile.28
$region0: #{tile.28}
  #allocation0 [shape = 's32[1]{0}', space=sflag, size = 0x4, scoped, tag = 'scoped memory for tile.28']
  %s0 = inlined_call_operand.vmem [shape: f32[16], index: 0, kind: input, shape index: {}]
  %s1 = inlined_call_operand.vmem [shape: f32[8,16], index: 1, kind: output, shape index: {}]
  // Predicated region
  $region2: #{tile.28} parent=0 // pred_check
    _
  $region3: #{tile.28} parent=0 // pred_check_branch
    %3 = sbr.rel (0) target = $region5
  $region4: #{tile.28} parent=0 // pred_region
    _
  $region5: #{tile.28} parent=0 // pred_fallthru
    _
  %v4 = vld [vmem:[%s0] ss:$0 sm:$0xff]
  %5 = vst [vmem:[%s1] sm:$0xff] %v4

// kernel: tile.29
$region0: #{tile.29}
  %s0 = inlined_call_operand.vmem [shape: f32[8,16], index: 0, kind: input, shape index: {}]
  %s1 = inlined_call_operand.vmem [shape: f32[1,128], index: 1, kind: output, shape index: {}]
  $region1: #{tile.29} parent=0
    #allocation0 [shape = 'u8[4096]{0}', space=vmem, size = 0x1000, scoped, tag = 'scoped mem for output reshape']
    %v2 = vld [vmem:[%s0] sm:$0x1]
    %vm3 = vcmask 130048
    %4 = vst.msk [vmem:[#allocation0] sm:$0x1] %vm3, %v2
    %s5 = scalar_lea.vmem %s0, 7
    %v6 = vld [vmem:[%s5] sm:$0x1]
    %7 = vrot.lane.b32.xlu0 %v6, 112
    %v8 = vpop.permute.xlu0 %7
    %vm9 = vcmask 1048448
    %10 = vst.msk [vmem:[#allocation0] sm:$0x1] %vm9, %v8
    %s11 = scalar_lea.vmem %s0, 6
    %v12 = vld [vmem:[%s11] sm:$0x1]
    %13 = vrot.lane.b32.xlu0 %v12, 96
    %v14 = vpop.permute.xlu0 %13
    %vm15 = vcmask 917248
    %16 = vst.msk [vmem:[#allocation0] sm:$0x1] %vm15, %v14
    %s17 = scalar_lea.vmem %s0, 5
    %v18 = vld [vmem:[%s17] sm:$0x1]
    %19 = vrot.lane.b32.xlu0 %v18, 80
    %v20 = vpop.permute.xlu0 %19
    %vm21 = vcmask 786048
    %22 = vst.msk [vmem:[#allocation0] sm:$0x1] %vm21, %v20
    %s23 = scalar_lea.vmem %s0, 4
    %v24 = vld [vmem:[%s23] sm:$0x1]
    %25 = vrot.lane.b32.xlu0 %v24, 64
    %v26 = vpop.permute.xlu0 %25
    %vm27 = vcmask 654848
    %28 = vst.msk [vmem:[#allocation0] sm:$0x1] %vm27, %v26
    %s29 = scalar_lea.vmem %s0, 3
    %v30 = vld [vmem:[%s29] sm:$0x1]
    %31 = vrot.lane.b32.xlu0 %v30, 48
    %v32 = vpop.permute.xlu0 %31
    %vm33 = vcmask 523648
    %34 = vst.msk [vmem:[#allocation0] sm:$0x1] %vm33, %v32
    %s35 = scalar_lea.vmem %s0, 2
    %v36 = vld [vmem:[%s35] sm:$0x1]
    %37 = vrot.lane.b32.xlu0 %v36, 32
    %v38 = vpop.permute.xlu0 %37
    %vm39 = vcmask 392448
    %40 = vst.msk [vmem:[#allocation0] sm:$0x1] %vm39, %v38
    %s41 = scalar_lea.vmem %s0, 1
    %v42 = vld [vmem:[%s41] sm:$0x1]
    %43 = vrot.lane.b32.xlu0 %v42, 16
    %v44 = vpop.permute.xlu0 %43
    %vm45 = vcmask 261248
    %46 = vst.msk [vmem:[#allocation0] sm:$0x1] %vm45, %v44
    %s48 = sshllo.u32 0, 1
    %v50 = vld [vmem:[#allocation0] sm:%s48]
    %s51 = sshllo.u32 0, 1
    %52 = vst [vmem:[%s1] sm:%s51] %v50

// kernel: interaction_mlp4d_forward.7
$region0: #{interaction_mlp4d_forward.7}
  #allocation0 [shape = 'u32[]', space=smem, size = 0x4, offset = 0x4, fixed_abs, tag = 'smem constant byte address 0x4 - core index']
  #allocation1 [shape = 'u32[144,128]{1,0:T(1,128)}', space=vmem, size = 0x12000, scoped, tag = 'internal scratch']
  %s0 = inlined_call_operand.vmem [shape: f32[4,2,128], index: 0, kind: input, shape index: {}]
  %s1 = inlined_call_operand.vmem [shape: f32[4,2,1], index: 1, kind: input, shape index: {}]
  %s2 = inlined_call_operand.vmem [shape: f32[1,128], index: 2, kind: input, shape index: {}]
  %s3 = inlined_call_operand.vmem [shape: f32[1,128], index: 3, kind: input, shape index: {}]
  %s4 = inlined_call_operand.vmem [shape: f32[4,2,128], index: 4, kind: output, shape index: {}]
  %s5 = sld [smem:[#allocation0]]
  $region49: #{interaction_mlp4d_forward.7} parent=0
    _
  %s7 = ssub.s32 1, %s5
  %s8 = scalar_select 0, %s7, %s5
  loop: start=0, step=1, limit=6
  $region2: #{interaction_mlp4d_forward.7} parent=0 // loop_pre_header
    _
  $region3: #{interaction_mlp4d_forward.7} parent=0 // loop_header
    %s10 = sphi 0, %s14
    %p11 = scmp.ge.s32.totalorder %s10, 6
    %s20 = sphi 0, %s22
    %s23 = sphi 0, %s20
    %s24 = sphi 0, %s23
    %s40 = sphi 0, %s24
    %s46 = sphi 0, %s48
    %s49 = sphi 0, %s46
    %s50 = sphi 0, %s49
    %s66 = sphi 0, %s50
    %s70 = sphi 0, %s70
    %s72 = sphi 0, %s70
    %s73 = sphi 0, %s72
    %s87 = sphi 0, %s73
    %s91 = sphi 0, %s91
    %s93 = sphi 0, %s91
    %s94 = sphi 0, %s93
    %s108 = sphi 0, %s94
    %s114 = sphi 0, %s116
    %s117 = sphi 0, %s114
    %s118 = sphi 0, %s117
    %s134 = sphi 0, %s118
  $region4: #{interaction_mlp4d_forward.7} parent=0 // loop_header_branch
    %13 = sbr.rel (%p11) target = $region8
  $region5: #{interaction_mlp4d_forward.7} parent=0 // loop_body
    %s15 = ssub.s32 %s10, 1
    %s16 = ssub.s32 %s10, 2
    %s17 = sadd.s32 %s10, 1
    %s18 = ssub.s32 %s10, %s17
    %p19 = scmp.eq.s32.totalorder %s18, 0
    %s21 = sadd.s32 %s20, 1
    %s22 = scalar_select %p19, %s20, %s21
    %p25 = pneg %p19
    %p26 = scmp.eq.s32.totalorder %s10, 3
    %p27 = por %p25, %p26
    %p28 = scmp.ne.s32.totalorder %s20, %s23
    %p29 = scmp.eq.s32.totalorder %s10, 0
    %p30 = por %p28, %p29
    %p31 = scmp.ne.s32.totalorder %s20, %s23
    %p32 = scmp.eq.s32.totalorder %s15, 3
    %p33 = por %p31, %p32
    %p34 = scmp.ne.s32.totalorder %s23, %s24
    %p35 = scmp.eq.s32.totalorder %s15, 0
    %p36 = por %p34, %p35
    %p37 = scmp.ne.s32.totalorder %s23, %s24
    %p38 = scmp.eq.s32.totalorder %s16, 3
    %p39 = por %p37, %p38
    %p41 = scmp.ne.s32.totalorder %s24, %s40
    %p42 = scmp.eq.s32.totalorder %s16, 0
    %p43 = por %p41, %p42
    %s44 = ssub.s32 %s10, %s17
    %p45 = scmp.eq.s32.totalorder %s44, 0
    %s47 = sadd.s32 %s46, 1
    %s48 = scalar_select %p45, %s46, %s47
    %p51 = pneg %p45
    %p52 = scmp.eq.s32.totalorder %s10, 3
    %p53 = por %p51, %p52
    %p54 = scmp.ne.s32.totalorder %s46, %s49
    %p55 = scmp.eq.s32.totalorder %s10, 0
    %p56 = por %p54, %p55
    %p57 = scmp.ne.s32.totalorder %s46, %s49
    %p58 = scmp.eq.s32.totalorder %s15, 3
    %p59 = por %p57, %p58
    %p60 = scmp.ne.s32.totalorder %s49, %s50
    %p61 = scmp.eq.s32.totalorder %s15, 0
    %p62 = por %p60, %p61
    %p63 = scmp.ne.s32.totalorder %s49, %s50
    %p64 = scmp.eq.s32.totalorder %s16, 3
    %p65 = por %p63, %p64
    %p67 = scmp.ne.s32.totalorder %s50, %s66
    %p68 = scmp.eq.s32.totalorder %s16, 0
    %p69 = por %p67, %p68
    %s71 = sadd.s32 %s70, 1
    %p74 = scmp.eq.s32.totalorder %s10, 3
    %p75 = scmp.ne.s32.totalorder %s70, %s72
    %p76 = scmp.eq.s32.totalorder %s10, 0
    %p77 = por %p75, %p76
    %p78 = scmp.ne.s32.totalorder %s70, %s72
    %p79 = scmp.eq.s32.totalorder %s15, 3
    %p80 = por %p78, %p79
    %p81 = scmp.ne.s32.totalorder %s72, %s73
    %p82 = scmp.eq.s32.totalorder %s15, 0
    %p83 = por %p81, %p82
    %p84 = scmp.ne.s32.totalorder %s72, %s73
    %p85 = scmp.eq.s32.totalorder %s16, 3
    %p86 = por %p84, %p85
    %p88 = scmp.ne.s32.totalorder %s73, %s87
    %p89 = scmp.eq.s32.totalorder %s16, 0
    %p90 = por %p88, %p89
    %s92 = sadd.s32 %s91, 1
    %p95 = scmp.eq.s32.totalorder %s10, 3
    %p96 = scmp.ne.s32.totalorder %s91, %s93
    %p97 = scmp.eq.s32.totalorder %s10, 0
    %p98 = por %p96, %p97
    %p99 = scmp.ne.s32.totalorder %s91, %s93
    %p100 = scmp.eq.s32.totalorder %s15, 3
    %p101 = por %p99, %p100
    %p102 = scmp.ne.s32.totalorder %s93, %s94
    %p103 = scmp.eq.s32.totalorder %s15, 0
    %p104 = por %p102, %p103
    %p105 = scmp.ne.s32.totalorder %s93, %s94
    %p106 = scmp.eq.s32.totalorder %s16, 3
    %p107 = por %p105, %p106
    %p109 = scmp.ne.s32.totalorder %s94, %s108
    %p110 = scmp.eq.s32.totalorder %s16, 0
    %p111 = por %p109, %p110
    %s112 = ssub.s32 %s10, %s17
    %p113 = scmp.eq.s32.totalorder %s112, 0
    %s115 = sadd.s32 %s114, 1
    %s116 = scalar_select %p113, %s114, %s115
    %p119 = pneg %p113
    %p120 = scmp.eq.s32.totalorder %s10, 3
    %p121 = por %p119, %p120
    %p122 = scmp.ne.s32.totalorder %s114, %s117
    %p123 = scmp.eq.s32.totalorder %s10, 0
    %p124 = por %p122, %p123
    %p125 = scmp.ne.s32.totalorder %s114, %s117
    %p126 = scmp.eq.s32.totalorder %s15, 3
    %p127 = por %p125, %p126
    %p128 = scmp.ne.s32.totalorder %s117, %s118
    %p129 = scmp.eq.s32.totalorder %s15, 0
    %p130 = por %p128, %p129
    %p131 = scmp.ne.s32.totalorder %s117, %s118
    %p132 = scmp.eq.s32.totalorder %s16, 3
    %p133 = por %p131, %p132
    %p135 = scmp.ne.s32.totalorder %s118, %s134
    %p136 = scmp.eq.s32.totalorder %s16, 0
    %p137 = por %p135, %p136
    %p138 = scmp.le.s32.totalorder 1, %s10
    %p139 = scmp.lt.s32.totalorder %s10, 5
    %p140 = pnand %p138, %p139
    %p141 = pneg %p140
    // Predicated region
    $region9: #{interaction_mlp4d_forward.7} parent=5 // pred_check
      _
    $region10: #{interaction_mlp4d_forward.7} parent=5 // pred_check_branch
      %143 = sbr.rel (%p140) target = $region12
    $region11: #{interaction_mlp4d_forward.7} parent=5 // pred_region
      %s144 = ssub.s32 %s10, 1
      // Predicated region
      $region13: #{interaction_mlp4d_forward.7} parent=11 // pred_check
        %p145 = pneg %p83
      $region14: #{interaction_mlp4d_forward.7} parent=11 // pred_check_branch
        %147 = sbr.rel (%p145) target = $region16
      $region15: #{interaction_mlp4d_forward.7} parent=11 // pred_region
        _
      $region16: #{interaction_mlp4d_forward.7} parent=11 // pred_fallthru
        _
      // Predicated region
      $region17: #{interaction_mlp4d_forward.7} parent=11 // pred_check
        %p148 = pneg %p104
      $region18: #{interaction_mlp4d_forward.7} parent=11 // pred_check_branch
        %150 = sbr.rel (%p148) target = $region20
      $region19: #{interaction_mlp4d_forward.7} parent=11 // pred_region
        _
      $region20: #{interaction_mlp4d_forward.7} parent=11 // pred_fallthru
        _
    $region12: #{interaction_mlp4d_forward.7} parent=5 // pred_fallthru
      _
    %p151 = scmp.lt.s32.totalorder %s10, 4
    // Predicated region
    $region21: #{interaction_mlp4d_forward.7} parent=5 // pred_check
      %p152 = pneg %p151
    $region22: #{interaction_mlp4d_forward.7} parent=5 // pred_check_branch
      %154 = sbr.rel (%p152) target = $region24
    $region23: #{interaction_mlp4d_forward.7} parent=5 // pred_region
      // Predicated region
      $region25: #{interaction_mlp4d_forward.7} parent=23 // pred_check
        %p155 = pneg %p30
      $region26: #{interaction_mlp4d_forward.7} parent=23 // pred_check_branch
        %157 = sbr.rel (%p155) target = $region28
      $region27: #{interaction_mlp4d_forward.7} parent=23 // pred_region
        %p158 = scmp.lt.s32.totalorder %s10, 3
        %s159 = scalar_select %p158, %s10, 3
        %s160 = smul.addr %s159, 2
        %s161 = scalar_lea.vmem %s0, %s160
      $region28: #{interaction_mlp4d_forward.7} parent=23 // pred_fallthru
        _
      // Predicated region
      $region29: #{interaction_mlp4d_forward.7} parent=23 // pred_check
        %p162 = pneg %p56
      $region30: #{interaction_mlp4d_forward.7} parent=23 // pred_check_branch
        %164 = sbr.rel (%p162) target = $region32
      $region31: #{interaction_mlp4d_forward.7} parent=23 // pred_region
        %p165 = scmp.lt.s32.totalorder %s10, 3
        %s166 = scalar_select %p165, %s10, 3
        %s167 = smul.addr %s166, 2
        %s168 = scalar_lea.vmem %s1, %s167
      $region32: #{interaction_mlp4d_forward.7} parent=23 // pred_fallthru
        _
    $region24: #{interaction_mlp4d_forward.7} parent=5 // pred_fallthru
      _
    %p169 = scmp.le.s32.totalorder 1, %s10
    %p170 = scmp.lt.s32.totalorder %s10, 5
    %p171 = pnand %p169, %p170
    %p172 = pneg %p171
    // Predicated region
    $region33: #{interaction_mlp4d_forward.7} parent=5 // pred_check
      _
    $region34: #{interaction_mlp4d_forward.7} parent=5 // pred_check_branch
      %174 = sbr.rel (%p171) target = $region36
    $region35: #{interaction_mlp4d_forward.7} parent=5 // pred_region
      %s175 = ssub.s32 %s10, 1
      %p176 = scmp.lt.s32.totalorder %s15, 3
      %s177 = scalar_select %p176, %s15, 3
      %s178 = smul.addr %s177, 2
      %s179 = scalar_lea.vmem %s0, %s178
      %p180 = pneg %p36
      %p181 = pneg %p33
      %p182 = scmp.lt.s32.totalorder %s15, 3
      %s183 = scalar_select %p182, %s15, 3
      %s184 = smul.addr %s183, 2
      %s185 = scalar_lea.vmem %s1, %s184
      %p186 = pneg %p62
      %p187 = pneg %p59
      %p188 = pneg %p83
      %p189 = pneg %p80
      %p190 = pneg %p104
      %p191 = pneg %p101
      %p192 = pneg %p130
      %p193 = pneg %p127
      %p194 = scmp.lt.s32.totalorder %s15, 3
      %s195 = scalar_select %p194, %s15, 3
      %s196 = smul.addr %s195, 2
      %s197 = scalar_lea.vmem %s4, %s196
      %p198 = scmp.lt.s32.totalorder %s15, 3
      %s199 = scalar_select %p198, %s15, 3
      %s200 = smul.addr %s199, 2
      %s201 = scalar_lea.vmem %s0, %s200
      %p202 = scmp.lt.s32.totalorder %s15, 3
      %s203 = scalar_select %p202, %s15, 3
      %s204 = smul.addr %s203, 2
      %s205 = scalar_lea.vmem %s1, %s204
      %p206 = scmp.lt.s32.totalorder %s15, 3
      %s207 = scalar_select %p206, %s15, 3
      %s208 = smul.addr %s207, 2
      %s209 = scalar_lea.vmem %s4, %s208
      %v210 = vld [vmem:[%s201] sm:$0x3]
      %v211 = vld [vmem:[%s2] sm:$0x1]
      %v213 = vlaneseq
      %v214 = vshrl.u32 %v213, 7
      %v215 = vsub.s32 0, %v214
      %v216 = vrot.slane %v211, %v215
      %v218 = vmul.f32 %v210, %v216
      %v219 = vld [vmem:[%s3] sm:$0x1]
      %v221 = vlaneseq
      %v222 = vshrl.u32 %v221, 7
      %v223 = vsub.s32 0, %v222
      %v224 = vrot.slane %v219, %v223
      %v226 = vadd.f32 %v218, %v224
      %v227 = vld [vmem:[%s205] sm:$0x3]
      %229 = vset.pattern.permute.xlu0 0
      %230 = vperm.xlu0 %229, %v227
      %v231 = vpop.permute.xlu0 %230
      %v233 = vmul.f32 %v226, %v231
      %234 = vst [vmem:[%s209] sm:$0x3] %v233
      %p235 = scmp.lt.s32.totalorder %s15, 3
      %s236 = scalar_select %p235, %s15, 3
      %s237 = smul.addr %s236, 2
      %s238 = scalar_lea.vmem %s4, %s237
      // Predicated region
      $region37: #{interaction_mlp4d_forward.7} parent=35 // pred_check
        %p239 = pneg %p127
      $region38: #{interaction_mlp4d_forward.7} parent=35 // pred_check_branch
        %241 = sbr.rel (%p239) target = $region40
      $region39: #{interaction_mlp4d_forward.7} parent=35 // pred_region
        _
      $region40: #{interaction_mlp4d_forward.7} parent=35 // pred_fallthru
        _
    $region36: #{interaction_mlp4d_forward.7} parent=5 // pred_fallthru
      _
    %p242 = scmp.le.s32.totalorder 2, %s10
    // Predicated region
    $region41: #{interaction_mlp4d_forward.7} parent=5 // pred_check
      %p243 = pneg %p242
    $region42: #{interaction_mlp4d_forward.7} parent=5 // pred_check_branch
      %245 = sbr.rel (%p243) target = $region44
    $region43: #{interaction_mlp4d_forward.7} parent=5 // pred_region
      %s246 = ssub.s32 %s10, 2
      // Predicated region
      $region45: #{interaction_mlp4d_forward.7} parent=43 // pred_check
        %p247 = pneg %p133
      $region46: #{interaction_mlp4d_forward.7} parent=43 // pred_check_branch
        %249 = sbr.rel (%p247) target = $region48
      $region47: #{interaction_mlp4d_forward.7} parent=43 // pred_region
        %p250 = scmp.lt.s32.totalorder %s16, 3
        %s251 = scalar_select %p250, %s16, 3
        %s252 = smul.addr %s251, 2
        %s253 = scalar_lea.vmem %s4, %s252
      $region48: #{interaction_mlp4d_forward.7} parent=43 // pred_fallthru
        _
    $region44: #{interaction_mlp4d_forward.7} parent=5 // pred_fallthru
      _
  $region6: #{interaction_mlp4d_forward.7} parent=0 // loop_footer
    %s14 = sadd.s32 1, %s10
  $region7: #{interaction_mlp4d_forward.7} parent=0 // loop_footer_branch
    %9 = sbr.rel target = $region3
  $region8: #{interaction_mlp4d_forward.7} parent=0 // loop_exit
    _

// kernel: interaction_mlp4d_forward.5
$region0: #{interaction_mlp4d_forward.5}
  #allocation0 [shape = 'u32[]', space=smem, size = 0x4, offset = 0x4, fixed_abs, tag = 'smem constant byte address 0x4 - core index']
  #allocation1 [shape = 'u32[144,128]{1,0:T(1,128)}', space=vmem, size = 0x12000, scoped, tag = 'internal scratch']
  %s0 = inlined_call_operand.vmem [shape: f32[12,2,128], index: 0, kind: input, shape index: {}]
  %s1 = inlined_call_operand.vmem [shape: f32[4,3,2], index: 1, kind: input, shape index: {}]
  %s2 = inlined_call_operand.vmem [shape: f32[1,128], index: 2, kind: input, shape index: {}]
  %s3 = inlined_call_operand.vmem [shape: f32[1,128], index: 3, kind: input, shape index: {}]
  %s4 = inlined_call_operand.hbm [shape: f32[12,2,128], index: 4, kind: output, shape index: {0}]
  %s5 = inlined_call_operand.hbm [shape: f32[4,2,8,16], index: 5, kind: output, shape index: {1}]
  %6 = xla_tuple %s4, %s5
  %s7 = sld [smem:[#allocation0]]
  $region57: #{interaction_mlp4d_forward.5} parent=0
    _
  %s9 = ssub.s32 1, %s7
  %s10 = scalar_select 0, %s9, %s7
  $region1: #{interaction_mlp4d_forward.5} parent=0
    #allocation2 [shape = 'u8[6144]{0}', space=vmem, size = 0x1800, scoped, tag = 'output window, operand 0']
    #allocation3 [shape = 's32[2]{0}', space=sflag, size = 0x8, scoped, tag = 'scoped memory for interaction_mlp4d_forward.5']
    #allocation4 [shape = 'u8[16384]{0}', space=vmem, size = 0x4000, scoped, tag = 'output window, operand 1']
    #allocation5 [shape = 's32[2]{0}', space=sflag, size = 0x8, scoped, tag = 'scoped memory for interaction_mlp4d_forward.5']
    %11 = vsyncpa [#allocation3], 0
    %s12 = scalar_lea.sflag [#allocation3], 1
    %13 = vsyncpa %s12, 0
    %14 = vsyncpa [#allocation5], 0
    %s15 = scalar_lea.sflag [#allocation5], 1
    %16 = vsyncpa %s15, 0
    loop: start=0, step=1, limit=6
    $region2: #{interaction_mlp4d_forward.5} parent=1 // loop_pre_header
      _
    $region3: #{interaction_mlp4d_forward.5} parent=1 // loop_header
      %s18 = sphi 0, %s22
      %p19 = scmp.ge.s32.totalorder %s18, 6
      %s28 = sphi 0, %s30
      %s31 = sphi 0, %s28
      %s32 = sphi 0, %s31
      %s48 = sphi 0, %s32
      %s54 = sphi 0, %s56
      %s57 = sphi 0, %s54
      %s58 = sphi 0, %s57
      %s74 = sphi 0, %s58
      %s78 = sphi 0, %s78
      %s80 = sphi 0, %s78
      %s81 = sphi 0, %s80
      %s95 = sphi 0, %s81
      %s99 = sphi 0, %s99
      %s101 = sphi 0, %s99
      %s102 = sphi 0, %s101
      %s116 = sphi 0, %s102
      %s122 = sphi 0, %s124
      %s125 = sphi 0, %s122
      %s126 = sphi 0, %s125
      %s142 = sphi 0, %s126
      %s148 = sphi 0, %s150
      %s151 = sphi 0, %s148
      %s152 = sphi 0, %s151
      %s168 = sphi 0, %s152
    $region4: #{interaction_mlp4d_forward.5} parent=1 // loop_header_branch
      %21 = sbr.rel (%p19) target = $region8
    $region5: #{interaction_mlp4d_forward.5} parent=1 // loop_body
      %s23 = ssub.s32 %s18, 1
      %s24 = ssub.s32 %s18, 2
      %s25 = sadd.s32 %s18, 1
      %s26 = ssub.s32 %s18, %s25
      %p27 = scmp.eq.s32.totalorder %s26, 0
      %s29 = sadd.s32 %s28, 1
      %s30 = scalar_select %p27, %s28, %s29
      %p33 = pneg %p27
      %p34 = scmp.eq.s32.totalorder %s18, 3
      %p35 = por %p33, %p34
      %p36 = scmp.ne.s32.totalorder %s28, %s31
      %p37 = scmp.eq.s32.totalorder %s18, 0
      %p38 = por %p36, %p37
      %p39 = scmp.ne.s32.totalorder %s28, %s31
      %p40 = scmp.eq.s32.totalorder %s23, 3
      %p41 = por %p39, %p40
      %p42 = scmp.ne.s32.totalorder %s31, %s32
      %p43 = scmp.eq.s32.totalorder %s23, 0
      %p44 = por %p42, %p43
      %p45 = scmp.ne.s32.totalorder %s31, %s32
      %p46 = scmp.eq.s32.totalorder %s24, 3
      %p47 = por %p45, %p46
      %p49 = scmp.ne.s32.totalorder %s32, %s48
      %p50 = scmp.eq.s32.totalorder %s24, 0
      %p51 = por %p49, %p50
      %s52 = ssub.s32 %s18, %s25
      %p53 = scmp.eq.s32.totalorder %s52, 0
      %s55 = sadd.s32 %s54, 1
      %s56 = scalar_select %p53, %s54, %s55
      %p59 = pneg %p53
      %p60 = scmp.eq.s32.totalorder %s18, 3
      %p61 = por %p59, %p60
      %p62 = scmp.ne.s32.totalorder %s54, %s57
      %p63 = scmp.eq.s32.totalorder %s18, 0
      %p64 = por %p62, %p63
      %p65 = scmp.ne.s32.totalorder %s54, %s57
      %p66 = scmp.eq.s32.totalorder %s23, 3
      %p67 = por %p65, %p66
      %p68 = scmp.ne.s32.totalorder %s57, %s58
      %p69 = scmp.eq.s32.totalorder %s23, 0
      %p70 = por %p68, %p69
      %p71 = scmp.ne.s32.totalorder %s57, %s58
      %p72 = scmp.eq.s32.totalorder %s24, 3
      %p73 = por %p71, %p72
      %p75 = scmp.ne.s32.totalorder %s58, %s74
      %p76 = scmp.eq.s32.totalorder %s24, 0
      %p77 = por %p75, %p76
      %s79 = sadd.s32 %s78, 1
      %p82 = scmp.eq.s32.totalorder %s18, 3
      %p83 = scmp.ne.s32.totalorder %s78, %s80
      %p84 = scmp.eq.s32.totalorder %s18, 0
      %p85 = por %p83, %p84
      %p86 = scmp.ne.s32.totalorder %s78, %s80
      %p87 = scmp.eq.s32.totalorder %s23, 3
      %p88 = por %p86, %p87
      %p89 = scmp.ne.s32.totalorder %s80, %s81
      %p90 = scmp.eq.s32.totalorder %s23, 0
      %p91 = por %p89, %p90
      %p92 = scmp.ne.s32.totalorder %s80, %s81
      %p93 = scmp.eq.s32.totalorder %s24, 3
      %p94 = por %p92, %p93
      %p96 = scmp.ne.s32.totalorder %s81, %s95
      %p97 = scmp.eq.s32.totalorder %s24, 0
      %p98 = por %p96, %p97
      %s100 = sadd.s32 %s99, 1
      %p103 = scmp.eq.s32.totalorder %s18, 3
      %p104 = scmp.ne.s32.totalorder %s99, %s101
      %p105 = scmp.eq.s32.totalorder %s18, 0
      %p106 = por %p104, %p105
      %p107 = scmp.ne.s32.totalorder %s99, %s101
      %p108 = scmp.eq.s32.totalorder %s23, 3
      %p109 = por %p107, %p108
      %p110 = scmp.ne.s32.totalorder %s101, %s102
      %p111 = scmp.eq.s32.totalorder %s23, 0
      %p112 = por %p110, %p111
      %p113 = scmp.ne.s32.totalorder %s101, %s102
      %p114 = scmp.eq.s32.totalorder %s24, 3
      %p115 = por %p113, %p114
      %p117 = scmp.ne.s32.totalorder %s102, %s116
      %p118 = scmp.eq.s32.totalorder %s24, 0
      %p119 = por %p117, %p118
      %s120 = ssub.s32 %s18, %s25
      %p121 = scmp.eq.s32.totalorder %s120, 0
      %s123 = sadd.s32 %s122, 1
      %s124 = scalar_select %p121, %s122, %s123
      %p127 = pneg %p121
      %p128 = scmp.eq.s32.totalorder %s18, 3
      %p129 = por %p127, %p128
      %p130 = scmp.ne.s32.totalorder %s122, %s125
      %p131 = scmp.eq.s32.totalorder %s18, 0
      %p132 = por %p130, %p131
      %p133 = scmp.ne.s32.totalorder %s122, %s125
      %p134 = scmp.eq.s32.totalorder %s23, 3
      %p135 = por %p133, %p134
      %p136 = scmp.ne.s32.totalorder %s125, %s126
      %p137 = scmp.eq.s32.totalorder %s23, 0
      %p138 = por %p136, %p137
      %p139 = scmp.ne.s32.totalorder %s125, %s126
      %p140 = scmp.eq.s32.totalorder %s24, 3
      %p141 = por %p139, %p140
      %p143 = scmp.ne.s32.totalorder %s126, %s142
      %p144 = scmp.eq.s32.totalorder %s24, 0
      %p145 = por %p143, %p144
      %s146 = ssub.s32 %s18, %s25
      %p147 = scmp.eq.s32.totalorder %s146, 0
      %s149 = sadd.s32 %s148, 1
      %s150 = scalar_select %p147, %s148, %s149
      %p153 = pneg %p147
      %p154 = scmp.eq.s32.totalorder %s18, 3
      %p155 = por %p153, %p154
      %p156 = scmp.ne.s32.totalorder %s148, %s151
      %p157 = scmp.eq.s32.totalorder %s18, 0
      %p158 = por %p156, %p157
      %p159 = scmp.ne.s32.totalorder %s148, %s151
      %p160 = scmp.eq.s32.totalorder %s23, 3
      %p161 = por %p159, %p160
      %p162 = scmp.ne.s32.totalorder %s151, %s152
      %p163 = scmp.eq.s32.totalorder %s23, 0
      %p164 = por %p162, %p163
      %p165 = scmp.ne.s32.totalorder %s151, %s152
      %p166 = scmp.eq.s32.totalorder %s24, 3
      %p167 = por %p165, %p166
      %p169 = scmp.ne.s32.totalorder %s152, %s168
      %p170 = scmp.eq.s32.totalorder %s24, 0
      %p171 = por %p169, %p170
      %p172 = scmp.le.s32.totalorder 1, %s18
      %p173 = scmp.lt.s32.totalorder %s18, 5
      %p174 = pnand %p172, %p173
      %p175 = pneg %p174
      // Predicated region
      $region9: #{interaction_mlp4d_forward.5} parent=5 // pred_check
        _
      $region10: #{interaction_mlp4d_forward.5} parent=5 // pred_check_branch
        %177 = sbr.rel (%p174) target = $region12
      $region11: #{interaction_mlp4d_forward.5} parent=5 // pred_region
        %s178 = ssub.s32 %s18, 1
        // Predicated region
        $region13: #{interaction_mlp4d_forward.5} parent=11 // pred_check
          %p179 = pneg %p91
        $region14: #{interaction_mlp4d_forward.5} parent=11 // pred_check_branch
          %181 = sbr.rel (%p179) target = $region16
        $region15: #{interaction_mlp4d_forward.5} parent=11 // pred_region
          _
        $region16: #{interaction_mlp4d_forward.5} parent=11 // pred_fallthru
          _
        // Predicated region
        $region17: #{interaction_mlp4d_forward.5} parent=11 // pred_check
          %p182 = pneg %p112
        $region18: #{interaction_mlp4d_forward.5} parent=11 // pred_check_branch
          %184 = sbr.rel (%p182) target = $region20
        $region19: #{interaction_mlp4d_forward.5} parent=11 // pred_region
          _
        $region20: #{interaction_mlp4d_forward.5} parent=11 // pred_fallthru
          _
      $region12: #{interaction_mlp4d_forward.5} parent=5 // pred_fallthru
        _
      %p185 = scmp.lt.s32.totalorder %s18, 4
      // Predicated region
      $region21: #{interaction_mlp4d_forward.5} parent=5 // pred_check
        %p186 = pneg %p185
      $region22: #{interaction_mlp4d_forward.5} parent=5 // pred_check_branch
        %188 = sbr.rel (%p186) target = $region24
      $region23: #{interaction_mlp4d_forward.5} parent=5 // pred_region
        // Predicated region
        $region25: #{interaction_mlp4d_forward.5} parent=23 // pred_check
          %p189 = pneg %p38
        $region26: #{interaction_mlp4d_forward.5} parent=23 // pred_check_branch
          %191 = sbr.rel (%p189) target = $region28
        $region27: #{interaction_mlp4d_forward.5} parent=23 // pred_region
          %s192 = smul.u32 3, %s18
          %p193 = scmp.lt.s32.totalorder %s192, 11
          %s194 = scalar_select %p193, %s192, 11
          %s195 = smul.addr %s194, 2
          %s196 = scalar_lea.vmem %s0, %s195
          %s197 = smul.u32 3, %s18
        $region28: #{interaction_mlp4d_forward.5} parent=23 // pred_fallthru
          _
        // Predicated region
        $region29: #{interaction_mlp4d_forward.5} parent=23 // pred_check
          %p198 = pneg %p64
        $region30: #{interaction_mlp4d_forward.5} parent=23 // pred_check_branch
          %200 = sbr.rel (%p198) target = $region32
        $region31: #{interaction_mlp4d_forward.5} parent=23 // pred_region
          %p201 = scmp.lt.s32.totalorder %s18, 3
          %s202 = scalar_select %p201, %s18, 3
          %s203 = smul.addr %s202, 4
          %s204 = scalar_lea.vmem %s1, %s203
        $region32: #{interaction_mlp4d_forward.5} parent=23 // pred_fallthru
          _
      $region24: #{interaction_mlp4d_forward.5} parent=5 // pred_fallthru
        _
      %p205 = scmp.le.s32.totalorder 1, %s18
      %p206 = scmp.lt.s32.totalorder %s18, 5
      %p207 = pnand %p205, %p206
      %p208 = pneg %p207
      // Predicated region
      $region33: #{interaction_mlp4d_forward.5} parent=5 // pred_check
        _
      $region34: #{interaction_mlp4d_forward.5} parent=5 // pred_check_branch
        %210 = sbr.rel (%p207) target = $region36
      $region35: #{interaction_mlp4d_forward.5} parent=5 // pred_region
        %s211 = ssub.s32 %s18, 1
        %s212 = smul.u32 3, %s23
        %p213 = scmp.lt.s32.totalorder %s212, 11
        %s214 = scalar_select %p213, %s212, 11
        %s215 = smul.addr %s214, 2
        %s216 = scalar_lea.vmem %s0, %s215
        %p217 = pneg %p44
        %p218 = pneg %p41
        %p219 = scmp.lt.s32.totalorder %s23, 3
        %s220 = scalar_select %p219, %s23, 3
        %s221 = smul.addr %s220, 4
        %s222 = scalar_lea.vmem %s1, %s221
        %p223 = pneg %p70
        %p224 = pneg %p67
        %p225 = pneg %p91
        %p226 = pneg %p88
        %p227 = pneg %p112
        %p228 = pneg %p109
        %p229 = pneg %p138
        %p230 = pneg %p135
        %s231 = sand.u32 %s125, 1
        %s232 = scalar_lea.sflag [#allocation3], %s231
        %s233 = sand.u32 %s125, 1
        %s234 = smul.addr %s233, 6
        %s235 = scalar_lea.vmem [#allocation2], %s234
        %p236 = pneg %p164
        %p237 = pneg %p161
        %s238 = sand.u32 %s151, 1
        %s239 = scalar_lea.sflag [#allocation5], %s238
        %s240 = sand.u32 %s151, 1
        %s241 = smul.addr %s240, 16
        %s242 = scalar_lea.vmem [#allocation4], %s241
        %s243 = smul.u32 3, %s23
        %p244 = scmp.lt.s32.totalorder %s243, 11
        %s245 = scalar_select %p244, %s243, 11
        %s246 = smul.addr %s245, 2
        %s247 = scalar_lea.vmem %s0, %s246
        %s248 = smul.u32 3, %s23
        %p249 = scmp.lt.s32.totalorder %s23, 3
        %s250 = scalar_select %p249, %s23, 3
        %s251 = smul.addr %s250, 4
        %s252 = scalar_lea.vmem %s1, %s251
        %s253 = smul.u32 3, %s23
        %v254 = vld [vmem:[%s247] sm:$0x3]
        %v255 = vld [vmem:[%s247 + $0x2] sm:$0x3]
        %v256 = vld [vmem:[%s247 + $0x4] sm:$0x3]
        %v257 = vld [vmem:[%s2] sm:$0x1]
        %v259 = vlaneseq
        %v260 = vshrl.u32 %v259, 7
        %v261 = vsub.s32 0, %v260
        %v262 = vrot.slane %v257, %v261
        %v264 = vmul.f32 %v254, %v262
        %v265 = vmul.f32 %v255, %v262
        %v266 = vmul.f32 %v256, %v262
        %v267 = vld [vmem:[%s3] sm:$0x1]
        %v269 = vlaneseq
        %v270 = vshrl.u32 %v269, 7
        %v271 = vsub.s32 0, %v270
        %v272 = vrot.slane %v267, %v271
        %v274 = vadd.f32 %v264, %v272
        %v275 = vadd.f32 %v265, %v272
        %v276 = vadd.f32 %v266, %v272
        %v277 = vld [vmem:[%s252] sm:$0x7]
        %v278 = vlaneseq
        %v279 = vshrl.u32 %v278, 7
        %v280 = vsub.s32 0, %v279
        %v281 = vrot.slane %v277, %v280
        %283 = vbcast.lane.b32.xlu0 %v281, 256
        %v284 = vpop.permute.xlu0 %283
        %v285 = vlaneseq
        %v286 = vshrl.u32 %v285, 7
        %v287 = vsub.s32 1, %v286
        %v288 = vrot.slane %v277, %v287
        %290 = vbcast.lane.b32.xlu0 %v288, 256
        %v291 = vpop.permute.xlu0 %290
        %v292 = vlaneseq
        %v293 = vshrl.u32 %v292, 7
        %v294 = vsub.s32 2, %v293
        %v295 = vrot.slane %v277, %v294
        %297 = vbcast.lane.b32.xlu0 %v295, 256
        %v298 = vpop.permute.xlu0 %297
        %v299 = vmul.f32 %v274, %v284
        %v300 = vmul.f32 %v275, %v291
        %v301 = vmul.f32 %v276, %v298
        %302 = vst [vmem:[%s235] sm:$0x3] %v299
        %303 = vst [vmem:[%s235 + $0x2] sm:$0x3] %v300
        %304 = vst [vmem:[%s235 + $0x4] sm:$0x3] %v301
        %vm305 = vcmask 1041408
        %v306 = vsel %vm305, %v299, 0.0
        %v307 = vsel %vm305, %v300, 0.0
        %v308 = vadd.f32 %v306, %v307
        %v309 = vsel %vm305, %v301, 0.0
        %v310 = vadd.f32 %v308, %v309
        %v311 = vmul.f32 %v310, 0.33333334
        %v314 = vunpack.c.l.s4 1966171168
        %v315 = vunpack.c.0.s8 %v314
        %v316 = vlaneseq
        %v317 = vshrl.u32 %v316, 7
        %v318 = vsub.s32 %v315, %v317
        %v319 = vrot.slane %v311, %v318
        %v320 = vcombine.high %v319, %v319
        %v322 = vunpack.c.l.s4 1966171168
        %v323 = vunpack.c.0.s8 %v322
        %v324 = vlaneseq
        %v325 = vshrl.u32 %v324, 7
        %v326 = vsub.s32 %v323, %v325
        %v327 = vrot.slane %v319, %v326
        %v329 = vunpack.c.l.s4 1966171168
        %v330 = vunpack.c.0.s8 %v329
        %v331 = vlaneseq
        %v332 = vshrl.u32 %v331, 7
        %v333 = vsub.s32 %v330, %v332
        %v334 = vrot.slane %v320, %v333
        %v337 = vlaneseq
        %v338 = vshrl.u32 %v337, 7
        %v339 = vsub.s32 0, %v338
        %v340 = vrot.slane %v327, %v339
        %v341 = vlaneseq
        %v342 = vshrl.u32 %v341, 7
        %v343 = vsub.s32 0, %v342
        %v344 = vrot.slane %v334, %v343
        %345 = vrot.lane.b32.xlu0 %v340, 112
        %v346 = vpop.permute.xlu0 %345
        %347 = vrot.lane.b32.xlu0 %v344, 112
        %v348 = vpop.permute.xlu0 %347
        %351 = vrot.lane.b32.xlu0 %v340, 96
        %v352 = vpop.permute.xlu0 %351
        %353 = vrot.lane.b32.xlu0 %v344, 96
        %v354 = vpop.permute.xlu0 %353
        %357 = vrot.lane.b32.xlu0 %v340, 80
        %v358 = vpop.permute.xlu0 %357
        %359 = vrot.lane.b32.xlu0 %v344, 80
        %v360 = vpop.permute.xlu0 %359
        %363 = vrot.lane.b32.xlu0 %v340, 64
        %v364 = vpop.permute.xlu0 %363
        %365 = vrot.lane.b32.xlu0 %v344, 64
        %v366 = vpop.permute.xlu0 %365
        %369 = vrot.lane.b32.xlu0 %v340, 48
        %v370 = vpop.permute.xlu0 %369
        %371 = vrot.lane.b32.xlu0 %v344, 48
        %v372 = vpop.permute.xlu0 %371
        %375 = vrot.lane.b32.xlu0 %v340, 32
        %v376 = vpop.permute.xlu0 %375
        %377 = vrot.lane.b32.xlu0 %v344, 32
        %v378 = vpop.permute.xlu0 %377
        %381 = vrot.lane.b32.xlu0 %v340, 16
        %v382 = vpop.permute.xlu0 %381
        %383 = vrot.lane.b32.xlu0 %v344, 16
        %v384 = vpop.permute.xlu0 %383
        %vm387 = vcmask 1040384
        %v388 = vsel %vm387, %v327, %v346
        %v389 = vsel %vm387, %v334, %v348
        %v390 = vsel %vm305, %v388, %v352
        %v391 = vsel %vm305, %v389, %v354
        %vm392 = vcmask 1042432
        %v393 = vsel %vm392, %v390, %v358
        %v394 = vsel %vm392, %v391, %v360
        %vm395 = vcmask 1043456
        %v396 = vsel %vm395, %v393, %v364
        %v397 = vsel %vm395, %v394, %v366
        %vm398 = vcmask 1044480
        %v399 = vsel %vm398, %v396, %v370
        %v400 = vsel %vm398, %v397, %v372
        %vm401 = vcmask 1045504
        %v402 = vsel %vm401, %v399, %v376
        %v403 = vsel %vm401, %v400, %v378
        %vm404 = vcmask 1046528
        %v405 = vsel %vm404, %v402, %v382
        %v406 = vsel %vm404, %v403, %v384
        %vm407 = vcmask 130048
        %408 = vst.msk [vmem:[%s242] sm:$0xff] %vm407, %v405
        %409 = vst.msk [vmem:[%s242 + $0x8] sm:$0xff] %vm407, %v406
        %s410 = sand.u32 %s125, 1
        %s411 = scalar_lea.sflag [#allocation3], %s410
        %s412 = sand.u32 %s125, 1
        %s413 = smul.addr %s412, 6
        %s414 = scalar_lea.vmem [#allocation2], %s413
        %s415 = sand.u32 %s151, 1
        %s416 = scalar_lea.sflag [#allocation5], %s415
        %s417 = sand.u32 %s151, 1
        %s418 = smul.addr %s417, 16
        %s419 = scalar_lea.vmem [#allocation4], %s418
        // Predicated region
        $region37: #{interaction_mlp4d_forward.5} parent=35 // pred_check
          %p420 = pneg %p135
        $region38: #{interaction_mlp4d_forward.5} parent=35 // pred_check_branch
          %422 = sbr.rel (%p420) target = $region40
        $region39: #{interaction_mlp4d_forward.5} parent=35 // pred_region
          %s423 = smul.u32 3, %s23
          %s425 = ssub.s32 96, 96
          %426 = vsyncadd %s411, %s425
          %s427 = smul.addr %s423, 32
          %s428 = scalar_lea.hbm %s4, %s427
          %s429 = sshll.u32 %s414, 4
          %s430 = int_to_ptr.vmem [resolvable:$true] %s429
          %435 = dma.vmem_to_hbm [thread:$0]  %s430, 96, %s428, %s411, 32, 32, 2
        $region40: #{interaction_mlp4d_forward.5} parent=35 // pred_fallthru
          _
        // Predicated region
        $region41: #{interaction_mlp4d_forward.5} parent=35 // pred_check
          %p436 = pneg %p161
        $region42: #{interaction_mlp4d_forward.5} parent=35 // pred_check_branch
          %438 = sbr.rel (%p436) target = $region44
        $region43: #{interaction_mlp4d_forward.5} parent=35 // pred_region
          %s440 = ssub.s32 256, 256
          %441 = vsyncadd %s416, %s440
          %s442 = smul.addr %s23, 2
          %s443 = smul.addr %s442, 128
          %s444 = scalar_lea.hbm %s5, %s443
          %s445 = sshll.u32 %s419, 4
          %s446 = int_to_ptr.vmem [resolvable:$true] %s445
          %451 = dma.vmem_to_hbm [thread:$0]  %s446, 256, %s444, %s416, 128, 128, 8
        $region44: #{interaction_mlp4d_forward.5} parent=35 // pred_fallthru
          _
      $region36: #{interaction_mlp4d_forward.5} parent=5 // pred_fallthru
        _
      %p452 = scmp.le.s32.totalorder 2, %s18
      // Predicated region
      $region45: #{interaction_mlp4d_forward.5} parent=5 // pred_check
        %p453 = pneg %p452
      $region46: #{interaction_mlp4d_forward.5} parent=5 // pred_check_branch
        %455 = sbr.rel (%p453) target = $region48
      $region47: #{interaction_mlp4d_forward.5} parent=5 // pred_region
        %s456 = ssub.s32 %s18, 2
        // Predicated region
        $region49: #{interaction_mlp4d_forward.5} parent=47 // pred_check
          %p457 = pneg %p141
        $region50: #{interaction_mlp4d_forward.5} parent=47 // pred_check_branch
          %459 = sbr.rel (%p457) target = $region52
        $region51: #{interaction_mlp4d_forward.5} parent=47 // pred_region
          %s460 = sand.u32 %s126, 1
          %s461 = scalar_lea.sflag [#allocation3], %s460
          %s462 = sand.u32 %s126, 1
          %s463 = smul.addr %s462, 6
          %s464 = scalar_lea.vmem [#allocation2], %s463
          %465 = dma.done %s461, 96
        $region52: #{interaction_mlp4d_forward.5} parent=47 // pred_fallthru
          _
        // Predicated region
        $region53: #{interaction_mlp4d_forward.5} parent=47 // pred_check
          %p466 = pneg %p167
        $region54: #{interaction_mlp4d_forward.5} parent=47 // pred_check_branch
          %468 = sbr.rel (%p466) target = $region56
        $region55: #{interaction_mlp4d_forward.5} parent=47 // pred_region
          %s469 = sand.u32 %s152, 1
          %s470 = scalar_lea.sflag [#allocation5], %s469
          %s471 = sand.u32 %s152, 1
          %s472 = smul.addr %s471, 16
          %s473 = scalar_lea.vmem [#allocation4], %s472
          %474 = dma.done %s470, 256
        $region56: #{interaction_mlp4d_forward.5} parent=47 // pred_fallthru
          _
      $region48: #{interaction_mlp4d_forward.5} parent=5 // pred_fallthru
        _
    $region6: #{interaction_mlp4d_forward.5} parent=1 // loop_footer
      %s22 = sadd.s32 1, %s18
    $region7: #{interaction_mlp4d_forward.5} parent=1 // loop_footer_branch
      %17 = sbr.rel target = $region3
    $region8: #{interaction_mlp4d_forward.5} parent=1 // loop_exit
      _
    %475 = vsyncpa [#allocation3], 1
    %s476 = scalar_lea.sflag [#allocation3], 1
    %477 = vsyncpa %s476, 1
    %478 = vsyncpa [#allocation5], 1
    %s479 = scalar_lea.sflag [#allocation5], 1
    %480 = vsyncpa %s479, 1

// kernel: interaction_mlp4d_forward.4
$region0: #{interaction_mlp4d_forward.4}
  #allocation0 [shape = 'u32[]', space=smem, size = 0x4, offset = 0x4, fixed_abs, tag = 'smem constant byte address 0x4 - core index']
  #allocation1 [shape = 'u32[144,128]{1,0:T(1,128)}', space=vmem, size = 0x12000, scoped, tag = 'internal scratch']
  #allocation2 [shape = 's32[1]{0}', space=sflag, size = 0x4, scoped, tag = 'scoped memory for interaction_mlp4d_forward.4']
  #allocation3 [shape = 'u8[512]{0}', space=smem, size = 0x200, scoped, tag = 'prefetched SMEM operand 0']
  #allocation4 [shape = 'u8[512]{0}', space=smem, size = 0x200, scoped, tag = 'prefetched SMEM operand 1']
  %s0 = inlined_call_operand.hbm [shape: s32[12], index: 0, kind: input, shape index: {}]
  %s1 = inlined_call_operand.hbm [shape: s32[12], index: 1, kind: input, shape index: {}]
  %s2 = inlined_call_operand.hbm [shape: f32[4,2,8,16], index: 2, kind: input, shape index: {}, may-alias: {2,3}]
  %s3 = inlined_call_operand.hbm [shape: f32[4,2,8,16], index: 3, kind: input, shape index: {}, may-alias: {2,3}]
  %s4 = inlined_call_operand.hbm [shape: bf16[8,16], index: 4, kind: input, shape index: {}]
  %s5 = inlined_call_operand.hbm [shape: f32[8,1], index: 5, kind: input, shape index: {}]
  %s6 = inlined_call_operand.hbm [shape: bf16[16,32], index: 6, kind: input, shape index: {}]
  %s7 = inlined_call_operand.hbm [shape: f32[1,32], index: 7, kind: input, shape index: {}]
  %s8 = inlined_call_operand.hbm [shape: bf16[32,16], index: 8, kind: input, shape index: {}]
  %s9 = inlined_call_operand.hbm [shape: f32[1,16], index: 9, kind: input, shape index: {}]
  %s10 = inlined_call_operand.hbm [shape: f32[12,2,128], index: 10, kind: output, shape index: {0}]
  %s11 = inlined_call_operand.hbm [shape: f32[1,16], index: 11, kind: output, shape index: {1}]
  %s12 = inlined_call_operand.hbm [shape: f32[1,16], index: 12, kind: output, shape index: {2}]
  %13 = xla_tuple %s10, %s11, %s12
  %s14 = sld [smem:[#allocation0]]
  $region117: #{interaction_mlp4d_forward.4} parent=0
    _
  %s16 = ssub.s32 1, %s14
  %s17 = scalar_select 0, %s16, %s14
  %19 = dma.hbm_to_smem %s0, 16, [#allocation3], [#allocation2]
  %21 = dma.hbm_to_smem %s1, 16, [#allocation4], [#allocation2]
  %22 = dma.done [#allocation2], 32
  %23 = sfence
  $region1: #{interaction_mlp4d_forward.4} parent=0
    #allocation5 [shape = 'u8[16384]{0}', space=vmem, size = 0x4000, scoped, tag = 'input window, operand 2']
    #allocation6 [shape = 's32[2]{0}', space=sflag, size = 0x8, scoped, tag = 'scoped memory for interaction_mlp4d_forward.4']
    #allocation7 [shape = 's32[2]{0}', space=sflag, size = 0x8, scoped, tag = 'scoped memory for interaction_mlp4d_forward.4']
    #allocation8 [shape = 'u8[16384]{0}', space=vmem, size = 0x4000, scoped, tag = 'input window, operand 3']
    #allocation9 [shape = 's32[2]{0}', space=sflag, size = 0x8, scoped, tag = 'scoped memory for interaction_mlp4d_forward.4']
    #allocation10 [shape = 'u8[2048]{0}', space=vmem, size = 0x800, scoped, tag = 'input window, operand 4, single buffered']
    #allocation11 [shape = 'u8[4096]{0}', space=vmem, size = 0x1000, scoped, tag = 'input window, operand 5, single buffered']
    #allocation12 [shape = 's32[1]{0}', space=sflag, size = 0x4, scoped, tag = 'scoped memory for interaction_mlp4d_forward.4']
    #allocation13 [shape = 'u8[4096]{0}', space=vmem, size = 0x1000, scoped, tag = 'input window, operand 6, single buffered']
    #allocation14 [shape = 'u8[512]{0}', space=vmem, size = 0x400, scoped, tag = 'input window, operand 7, single buffered']
    #allocation15 [shape = 's32[1]{0}', space=sflag, size = 0x4, scoped, tag = 'scoped memory for interaction_mlp4d_forward.4']
    #allocation16 [shape = 'u8[8192]{0}', space=vmem, size = 0x2000, scoped, tag = 'input window, operand 8, single buffered']
    #allocation17 [shape = 'u8[512]{0}', space=vmem, size = 0x400, scoped, tag = 'input window, operand 9, single buffered']
    #allocation18 [shape = 's32[1]{0}', space=sflag, size = 0x4, scoped, tag = 'scoped memory for interaction_mlp4d_forward.4']
    #allocation19 [shape = 'u8[2048]{0}', space=vmem, size = 0x800, scoped, tag = 'output window, operand 0']
    #allocation20 [shape = 'u8[512]{0}', space=vmem, size = 0x400, scoped, tag = 'output window, operand 1, single buffered']
    #allocation21 [shape = 's32[1]{0}', space=sflag, size = 0x4, scoped, tag = 'scoped memory for interaction_mlp4d_forward.4']
    #allocation22 [shape = 'u8[512]{0}', space=vmem, size = 0x400, scoped, tag = 'output window, operand 2, single buffered']
    %24 = vsyncpa [#allocation6], 0
    %s25 = scalar_lea.sflag [#allocation6], 1
    %26 = vsyncpa %s25, 0
    %27 = vsyncpa [#allocation9], 0
    %s28 = scalar_lea.sflag [#allocation9], 1
    %29 = vsyncpa %s28, 0
    %30 = vsyncpa [#allocation12], 0
    %31 = vsyncpa [#allocation15], 0
    %32 = vsyncpa [#allocation18], 0
    %33 = vsyncpa [#allocation7], 0
    %s34 = scalar_lea.sflag [#allocation7], 1
    %35 = vsyncpa %s34, 0
    %36 = vsyncpa [#allocation21], 0
    loop: start=0, step=1, limit=14
    $region2: #{interaction_mlp4d_forward.4} parent=1 // loop_pre_header
      _
    $region3: #{interaction_mlp4d_forward.4} parent=1 // loop_header
      %s38 = sphi 0, %s42
      %p39 = scmp.ge.s32.totalorder %s38, 14
      %s50 = sphi 0, %s52
      %s53 = sphi 0, %s50
      %s54 = sphi 0, %s53
      %s70 = sphi 0, %s54
      %s78 = sphi 0, %s80
      %s81 = sphi 0, %s78
      %s82 = sphi 0, %s81
      %s98 = sphi 0, %s82
      %s102 = sphi 0, %s102
      %s104 = sphi 0, %s102
      %s105 = sphi 0, %s104
      %s119 = sphi 0, %s105
      %s123 = sphi 0, %s123
      %s125 = sphi 0, %s123
      %s126 = sphi 0, %s125
      %s140 = sphi 0, %s126
      %s144 = sphi 0, %s144
      %s146 = sphi 0, %s144
      %s147 = sphi 0, %s146
      %s161 = sphi 0, %s147
      %s165 = sphi 0, %s165
      %s167 = sphi 0, %s165
      %s168 = sphi 0, %s167
      %s182 = sphi 0, %s168
      %s186 = sphi 0, %s186
      %s188 = sphi 0, %s186
      %s189 = sphi 0, %s188
      %s203 = sphi 0, %s189
      %s207 = sphi 0, %s207
      %s209 = sphi 0, %s207
      %s210 = sphi 0, %s209
      %s224 = sphi 0, %s210
      %s230 = sphi 0, %s232
      %s233 = sphi 0, %s230
      %s234 = sphi 0, %s233
      %s250 = sphi 0, %s234
      %s254 = sphi 0, %s254
      %s256 = sphi 0, %s254
      %s257 = sphi 0, %s256
      %s271 = sphi 0, %s257
      %s275 = sphi 0, %s275
      %s277 = sphi 0, %s275
      %s278 = sphi 0, %s277
      %s292 = sphi 0, %s278
    $region4: #{interaction_mlp4d_forward.4} parent=1 // loop_header_branch
      %41 = sbr.rel (%p39) target = $region8
    $region5: #{interaction_mlp4d_forward.4} parent=1 // loop_body
      %s43 = ssub.s32 %s38, 1
      %s44 = ssub.s32 %s38, 2
      %s45 = sadd.s32 %s38, 1
      %s46 = sld [smem:[#allocation3 + %s38]]
      %s47 = sld [smem:[#allocation3 + %s45]]
      %s48 = ssub.s32 %s46, %s47
      %p49 = scmp.eq.s32.totalorder %s48, 0
      %s51 = sadd.s32 %s50, 1
      %s52 = scalar_select %p49, %s50, %s51
      %p55 = pneg %p49
      %p56 = scmp.eq.s32.totalorder %s38, 11
      %p57 = por %p55, %p56
      %p58 = scmp.ne.s32.totalorder %s50, %s53
      %p59 = scmp.eq.s32.totalorder %s38, 0
      %p60 = por %p58, %p59
      %p61 = scmp.ne.s32.totalorder %s50, %s53
      %p62 = scmp.eq.s32.totalorder %s43, 11
      %p63 = por %p61, %p62
      %p64 = scmp.ne.s32.totalorder %s53, %s54
      %p65 = scmp.eq.s32.totalorder %s43, 0
      %p66 = por %p64, %p65
      %p67 = scmp.ne.s32.totalorder %s53, %s54
      %p68 = scmp.eq.s32.totalorder %s44, 11
      %p69 = por %p67, %p68
      %p71 = scmp.ne.s32.totalorder %s54, %s70
      %p72 = scmp.eq.s32.totalorder %s44, 0
      %p73 = por %p71, %p72
      %s74 = sld [smem:[#allocation4 + %s38]]
      %s75 = sld [smem:[#allocation4 + %s45]]
      %s76 = ssub.s32 %s74, %s75
      %p77 = scmp.eq.s32.totalorder %s76, 0
      %s79 = sadd.s32 %s78, 1
      %s80 = scalar_select %p77, %s78, %s79
      %p83 = pneg %p77
      %p84 = scmp.eq.s32.totalorder %s38, 11
      %p85 = por %p83, %p84
      %p86 = scmp.ne.s32.totalorder %s78, %s81
      %p87 = scmp.eq.s32.totalorder %s38, 0
      %p88 = por %p86, %p87
      %p89 = scmp.ne.s32.totalorder %s78, %s81
      %p90 = scmp.eq.s32.totalorder %s43, 11
      %p91 = por %p89, %p90
      %p92 = scmp.ne.s32.totalorder %s81, %s82
      %p93 = scmp.eq.s32.totalorder %s43, 0
      %p94 = por %p92, %p93
      %p95 = scmp.ne.s32.totalorder %s81, %s82
      %p96 = scmp.eq.s32.totalorder %s44, 11
      %p97 = por %p95, %p96
      %p99 = scmp.ne.s32.totalorder %s82, %s98
      %p100 = scmp.eq.s32.totalorder %s44, 0
      %p101 = por %p99, %p100
      %s103 = sadd.s32 %s102, 1
      %p106 = scmp.eq.s32.totalorder %s38, 11
      %p107 = scmp.ne.s32.totalorder %s102, %s104
      %p108 = scmp.eq.s32.totalorder %s38, 0
      %p109 = por %p107, %p108
      %p110 = scmp.ne.s32.totalorder %s102, %s104
      %p111 = scmp.eq.s32.totalorder %s43, 11
      %p112 = por %p110, %p111
      %p113 = scmp.ne.s32.totalorder %s104, %s105
      %p114 = scmp.eq.s32.totalorder %s43, 0
      %p115 = por %p113, %p114
      %p116 = scmp.ne.s32.totalorder %s104, %s105
      %p117 = scmp.eq.s32.totalorder %s44, 11
      %p118 = por %p116, %p117
      %p120 = scmp.ne.s32.totalorder %s105, %s119
      %p121 = scmp.eq.s32.totalorder %s44, 0
      %p122 = por %p120, %p121
      %s124 = sadd.s32 %s123, 1
      %p127 = scmp.eq.s32.totalorder %s38, 11
      %p128 = scmp.ne.s32.totalorder %s123, %s125
      %p129 = scmp.eq.s32.totalorder %s38, 0
      %p130 = por %p128, %p129
      %p131 = scmp.ne.s32.totalorder %s123, %s125
      %p132 = scmp.eq.s32.totalorder %s43, 11
      %p133 = por %p131, %p132
      %p134 = scmp.ne.s32.totalorder %s125, %s126
      %p135 = scmp.eq.s32.totalorder %s43, 0
      %p136 = por %p134, %p135
      %p137 = scmp.ne.s32.totalorder %s125, %s126
      %p138 = scmp.eq.s32.totalorder %s44, 11
      %p139 = por %p137, %p138
      %p141 = scmp.ne.s32.totalorder %s126, %s140
      %p142 = scmp.eq.s32.totalorder %s44, 0
      %p143 = por %p141, %p142
      %s145 = sadd.s32 %s144, 1
      %p148 = scmp.eq.s32.totalorder %s38, 11
      %p149 = scmp.ne.s32.totalorder %s144, %s146
      %p150 = scmp.eq.s32.totalorder %s38, 0
      %p151 = por %p149, %p150
      %p152 = scmp.ne.s32.totalorder %s144, %s146
      %p153 = scmp.eq.s32.totalorder %s43, 11
      %p154 = por %p152, %p153
      %p155 = scmp.ne.s32.totalorder %s146, %s147
      %p156 = scmp.eq.s32.totalorder %s43, 0
      %p157 = por %p155, %p156
      %p158 = scmp.ne.s32.totalorder %s146, %s147
      %p159 = scmp.eq.s32.totalorder %s44, 11
      %p160 = por %p158, %p159
      %p162 = scmp.ne.s32.totalorder %s147, %s161
      %p163 = scmp.eq.s32.totalorder %s44, 0
      %p164 = por %p162, %p163
      %s166 = sadd.s32 %s165, 1
      %p169 = scmp.eq.s32.totalorder %s38, 11
      %p170 = scmp.ne.s32.totalorder %s165, %s167
      %p171 = scmp.eq.s32.totalorder %s38, 0
      %p172 = por %p170, %p171
      %p173 = scmp.ne.s32.totalorder %s165, %s167
      %p174 = scmp.eq.s32.totalorder %s43, 11
      %p175 = por %p173, %p174
      %p176 = scmp.ne.s32.totalorder %s167, %s168
      %p177 = scmp.eq.s32.totalorder %s43, 0
      %p178 = por %p176, %p177
      %p179 = scmp.ne.s32.totalorder %s167, %s168
      %p180 = scmp.eq.s32.totalorder %s44, 11
      %p181 = por %p179, %p180
      %p183 = scmp.ne.s32.totalorder %s168, %s182
      %p184 = scmp.eq.s32.totalorder %s44, 0
      %p185 = por %p183, %p184
      %s187 = sadd.s32 %s186, 1
      %p190 = scmp.eq.s32.totalorder %s38, 11
      %p191 = scmp.ne.s32.totalorder %s186, %s188
      %p192 = scmp.eq.s32.totalorder %s38, 0
      %p193 = por %p191, %p192
      %p194 = scmp.ne.s32.totalorder %s186, %s188
      %p195 = scmp.eq.s32.totalorder %s43, 11
      %p196 = por %p194, %p195
      %p197 = scmp.ne.s32.totalorder %s188, %s189
      %p198 = scmp.eq.s32.totalorder %s43, 0
      %p199 = por %p197, %p198
      %p200 = scmp.ne.s32.totalorder %s188, %s189
      %p201 = scmp.eq.s32.totalorder %s44, 11
      %p202 = por %p200, %p201
      %p204 = scmp.ne.s32.totalorder %s189, %s203
      %p205 = scmp.eq.s32.totalorder %s44, 0
      %p206 = por %p204, %p205
      %s208 = sadd.s32 %s207, 1
      %p211 = scmp.eq.s32.totalorder %s38, 11
      %p212 = scmp.ne.s32.totalorder %s207, %s209
      %p213 = scmp.eq.s32.totalorder %s38, 0
      %p214 = por %p212, %p213
      %p215 = scmp.ne.s32.totalorder %s207, %s209
      %p216 = scmp.eq.s32.totalorder %s43, 11
      %p217 = por %p215, %p216
      %p218 = scmp.ne.s32.totalorder %s209, %s210
      %p219 = scmp.eq.s32.totalorder %s43, 0
      %p220 = por %p218, %p219
      %p221 = scmp.ne.s32.totalorder %s209, %s210
      %p222 = scmp.eq.s32.totalorder %s44, 11
      %p223 = por %p221, %p222
      %p225 = scmp.ne.s32.totalorder %s210, %s224
      %p226 = scmp.eq.s32.totalorder %s44, 0
      %p227 = por %p225, %p226
      %s228 = ssub.s32 %s38, %s45
      %p229 = scmp.eq.s32.totalorder %s228, 0
      %s231 = sadd.s32 %s230, 1
      %s232 = scalar_select %p229, %s230, %s231
      %p235 = pneg %p229
      %p236 = scmp.eq.s32.totalorder %s38, 11
      %p237 = por %p235, %p236
      %p238 = scmp.ne.s32.totalorder %s230, %s233
      %p239 = scmp.eq.s32.totalorder %s38, 0
      %p240 = por %p238, %p239
      %p241 = scmp.ne.s32.totalorder %s230, %s233
      %p242 = scmp.eq.s32.totalorder %s43, 11
      %p243 = por %p241, %p242
      %p244 = scmp.ne.s32.totalorder %s233, %s234
      %p245 = scmp.eq.s32.totalorder %s43, 0
      %p246 = por %p244, %p245
      %p247 = scmp.ne.s32.totalorder %s233, %s234
      %p248 = scmp.eq.s32.totalorder %s44, 11
      %p249 = por %p247, %p248
      %p251 = scmp.ne.s32.totalorder %s234, %s250
      %p252 = scmp.eq.s32.totalorder %s44, 0
      %p253 = por %p251, %p252
      %s255 = sadd.s32 %s254, 1
      %p258 = scmp.eq.s32.totalorder %s38, 11
      %p259 = scmp.ne.s32.totalorder %s254, %s256
      %p260 = scmp.eq.s32.totalorder %s38, 0
      %p261 = por %p259, %p260
      %p262 = scmp.ne.s32.totalorder %s254, %s256
      %p263 = scmp.eq.s32.totalorder %s43, 11
      %p264 = por %p262, %p263
      %p265 = scmp.ne.s32.totalorder %s256, %s257
      %p266 = scmp.eq.s32.totalorder %s43, 0
      %p267 = por %p265, %p266
      %p268 = scmp.ne.s32.totalorder %s256, %s257
      %p269 = scmp.eq.s32.totalorder %s44, 11
      %p270 = por %p268, %p269
      %p272 = scmp.ne.s32.totalorder %s257, %s271
      %p273 = scmp.eq.s32.totalorder %s44, 0
      %p274 = por %p272, %p273
      %s276 = sadd.s32 %s275, 1
      %p279 = scmp.eq.s32.totalorder %s38, 11
      %p280 = scmp.ne.s32.totalorder %s275, %s277
      %p281 = scmp.eq.s32.totalorder %s38, 0
      %p282 = por %p280, %p281
      %p283 = scmp.ne.s32.totalorder %s275, %s277
      %p284 = scmp.eq.s32.totalorder %s43, 11
      %p285 = por %p283, %p284
      %p286 = scmp.ne.s32.totalorder %s277, %s278
      %p287 = scmp.eq.s32.totalorder %s43, 0
      %p288 = por %p286, %p287
      %p289 = scmp.ne.s32.totalorder %s277, %s278
      %p290 = scmp.eq.s32.totalorder %s44, 11
      %p291 = por %p289, %p290
      %p293 = scmp.ne.s32.totalorder %s278, %s292
      %p294 = scmp.eq.s32.totalorder %s44, 0
      %p295 = por %p293, %p294
      %p296 = scmp.le.s32.totalorder 1, %s38
      %p297 = scmp.lt.s32.totalorder %s38, 13
      %p298 = pnand %p296, %p297
      %p299 = pneg %p298
      // Predicated region
      $region9: #{interaction_mlp4d_forward.4} parent=5 // pred_check
        _
      $region10: #{interaction_mlp4d_forward.4} parent=5 // pred_check_branch
        %301 = sbr.rel (%p298) target = $region12
      $region11: #{interaction_mlp4d_forward.4} parent=5 // pred_region
        %s302 = ssub.s32 %s38, 1
        // Predicated region
        $region13: #{interaction_mlp4d_forward.4} parent=11 // pred_check
          %p303 = pneg %p115
        $region14: #{interaction_mlp4d_forward.4} parent=11 // pred_check_branch
          %305 = sbr.rel (%p303) target = $region16
        $region15: #{interaction_mlp4d_forward.4} parent=11 // pred_region
          %s307 = ssub.s32 64, 64
          %308 = vsyncadd [#allocation9], %s307
          %s310 = sshll.u32 [#allocation10], 4
          %s311 = int_to_ptr.vmem [resolvable:$true] %s310
          %313 = dma.hbm_to_vmem [thread:$0]  %s4, 64, %s311, [#allocation9]
        $region16: #{interaction_mlp4d_forward.4} parent=11 // pred_fallthru
          _
        // Predicated region
        $region17: #{interaction_mlp4d_forward.4} parent=11 // pred_check
          %p314 = pneg %p136
        $region18: #{interaction_mlp4d_forward.4} parent=11 // pred_check_branch
          %316 = sbr.rel (%p314) target = $region20
        $region19: #{interaction_mlp4d_forward.4} parent=11 // pred_region
          %s318 = ssub.s32 128, 128
          %319 = vsyncadd [#allocation12], %s318
          %s321 = sshll.u32 [#allocation11], 4
          %s322 = int_to_ptr.vmem [resolvable:$true] %s321
          %324 = dma.hbm_to_vmem [thread:$0]  %s5, 128, %s322, [#allocation12]
        $region20: #{interaction_mlp4d_forward.4} parent=11 // pred_fallthru
          _
        // Predicated region
        $region21: #{interaction_mlp4d_forward.4} parent=11 // pred_check
          %p325 = pneg %p157
        $region22: #{interaction_mlp4d_forward.4} parent=11 // pred_check_branch
          %327 = sbr.rel (%p325) target = $region24
        $region23: #{interaction_mlp4d_forward.4} parent=11 // pred_region
          %s329 = ssub.s32 128, 128
          %330 = vsyncadd [#allocation12], %s329
          %s331 = sshll.u32 [#allocation13], 4
          %s332 = int_to_ptr.vmem [resolvable:$true] %s331
          %337 = dma.hbm_to_vmem [thread:$0]  %s6, 128, %s332, [#allocation12], 64, 64, 4
        $region24: #{interaction_mlp4d_forward.4} parent=11 // pred_fallthru
          _
        // Predicated region
        $region25: #{interaction_mlp4d_forward.4} parent=11 // pred_check
          %p338 = pneg %p178
        $region26: #{interaction_mlp4d_forward.4} parent=11 // pred_check_branch
          %340 = sbr.rel (%p338) target = $region28
        $region27: #{interaction_mlp4d_forward.4} parent=11 // pred_region
          %s342 = ssub.s32 16, 16
          %343 = vsyncadd [#allocation15], %s342
          %s345 = sshll.u32 [#allocation14], 4
          %s346 = int_to_ptr.vmem [resolvable:$true] %s345
          %348 = dma.hbm_to_vmem [thread:$0]  %s7, 16, %s346, [#allocation15]
        $region28: #{interaction_mlp4d_forward.4} parent=11 // pred_fallthru
          _
        // Predicated region
        $region29: #{interaction_mlp4d_forward.4} parent=11 // pred_check
          %p349 = pneg %p199
        $region30: #{interaction_mlp4d_forward.4} parent=11 // pred_check_branch
          %351 = sbr.rel (%p349) target = $region32
        $region31: #{interaction_mlp4d_forward.4} parent=11 // pred_region
          %s353 = ssub.s32 256, 256
          %354 = vsyncadd [#allocation15], %s353
          %s355 = sshll.u32 [#allocation16], 4
          %s356 = int_to_ptr.vmem [resolvable:$true] %s355
          %361 = dma.hbm_to_vmem [thread:$0]  %s8, 256, %s356, [#allocation15], 64, 64, 4
        $region32: #{interaction_mlp4d_forward.4} parent=11 // pred_fallthru
          _
        // Predicated region
        $region33: #{interaction_mlp4d_forward.4} parent=11 // pred_check
          %p362 = pneg %p220
        $region34: #{interaction_mlp4d_forward.4} parent=11 // pred_check_branch
          %364 = sbr.rel (%p362) target = $region36
        $region35: #{interaction_mlp4d_forward.4} parent=11 // pred_region
          %s366 = ssub.s32 16, 16
          %367 = vsyncadd [#allocation18], %s366
          %s369 = sshll.u32 [#allocation17], 4
          %s370 = int_to_ptr.vmem [resolvable:$true] %s369
          %372 = dma.hbm_to_vmem [thread:$0]  %s9, 16, %s370, [#allocation18]
        $region36: #{interaction_mlp4d_forward.4} parent=11 // pred_fallthru
          _
      $region12: #{interaction_mlp4d_forward.4} parent=5 // pred_fallthru
        _
      %p373 = scmp.lt.s32.totalorder %s38, 12
      // Predicated region
      $region37: #{interaction_mlp4d_forward.4} parent=5 // pred_check
        %p374 = pneg %p373
      $region38: #{interaction_mlp4d_forward.4} parent=5 // pred_check_branch
        %376 = sbr.rel (%p374) target = $region40
      $region39: #{interaction_mlp4d_forward.4} parent=5 // pred_region
        // Predicated region
        $region41: #{interaction_mlp4d_forward.4} parent=39 // pred_check
          %p377 = pneg %p60
        $region42: #{interaction_mlp4d_forward.4} parent=39 // pred_check_branch
          %379 = sbr.rel (%p377) target = $region44
        $region43: #{interaction_mlp4d_forward.4} parent=39 // pred_region
          %s380 = sand.u32 %s50, 1
          %s381 = scalar_lea.sflag [#allocation6], %s380
          %s382 = sand.u32 %s50, 1
          %s383 = smul.addr %s382, 16
          %s384 = scalar_lea.vmem [#allocation5], %s383
          %s385 = sld [smem:[#allocation3 + %s38]]
          %s387 = ssub.s32 256, 256
          %388 = vsyncadd %s381, %s387
          %s389 = smul.addr %s385, 2
          %s390 = smul.addr %s389, 128
          %s391 = scalar_lea.hbm %s2, %s390
          %s392 = sshll.u32 %s384, 4
          %s393 = int_to_ptr.vmem [resolvable:$true] %s392
          %398 = dma.hbm_to_vmem [thread:$0]  %s391, 256, %s393, %s381, 128, 128, 8
        $region44: #{interaction_mlp4d_forward.4} parent=39 // pred_fallthru
          _
        // Predicated region
        $region45: #{interaction_mlp4d_forward.4} parent=39 // pred_check
          %p399 = pneg %p88
        $region46: #{interaction_mlp4d_forward.4} parent=39 // pred_check_branch
          %401 = sbr.rel (%p399) target = $region48
        $region47: #{interaction_mlp4d_forward.4} parent=39 // pred_region
          %s402 = sand.u32 %s38, 1
          %s403 = scalar_lea.sflag [#allocation9], %s402
          %s404 = sand.u32 %s78, 1
          %s405 = smul.addr %s404, 16
          %s406 = scalar_lea.vmem [#allocation8], %s405
          %s407 = sld [smem:[#allocation4 + %s38]]
          %s409 = ssub.s32 256, 256
          %410 = vsyncadd %s403, %s409
          %s411 = smul.addr %s407, 2
          %s412 = smul.addr %s411, 128
          %s413 = scalar_lea.hbm %s3, %s412
          %s414 = sshll.u32 %s406, 4
          %s415 = int_to_ptr.vmem [resolvable:$true] %s414
          %420 = dma.hbm_to_vmem [thread:$0]  %s413, 256, %s415, %s403, 128, 128, 8
        $region48: #{interaction_mlp4d_forward.4} parent=39 // pred_fallthru
          _
      $region40: #{interaction_mlp4d_forward.4} parent=5 // pred_fallthru
        _
      %p421 = scmp.le.s32.totalorder 1, %s38
      %p422 = scmp.lt.s32.totalorder %s38, 13
      %p423 = pnand %p421, %p422
      %p424 = pneg %p423
      // Predicated region
      $region49: #{interaction_mlp4d_forward.4} parent=5 // pred_check
        _
      $region50: #{interaction_mlp4d_forward.4} parent=5 // pred_check_branch
        %426 = sbr.rel (%p423) target = $region52
      $region51: #{interaction_mlp4d_forward.4} parent=5 // pred_region
        %s427 = ssub.s32 %s38, 1
        %s428 = sand.u32 %s53, 1
        %s429 = scalar_lea.sflag [#allocation6], %s428
        %s430 = sand.u32 %s53, 1
        %s431 = smul.addr %s430, 16
        %s432 = scalar_lea.vmem [#allocation5], %s431
        // Predicated region
        $region53: #{interaction_mlp4d_forward.4} parent=51 // pred_check
          %p433 = pneg %p66
        $region54: #{interaction_mlp4d_forward.4} parent=51 // pred_check_branch
          %435 = sbr.rel (%p433) target = $region56
        $region55: #{interaction_mlp4d_forward.4} parent=51 // pred_region
          %436 = dma.done %s429, 256
        $region56: #{interaction_mlp4d_forward.4} parent=51 // pred_fallthru
          _
        %s437 = sand.u32 %s43, 1
        %s438 = scalar_lea.sflag [#allocation9], %s437
        %s439 = sand.u32 %s81, 1
        %s440 = smul.addr %s439, 16
        %s441 = scalar_lea.vmem [#allocation8], %s440
        // Predicated region
        $region57: #{interaction_mlp4d_forward.4} parent=51 // pred_check
          %p442 = pneg %p94
        $region58: #{interaction_mlp4d_forward.4} parent=51 // pred_check_branch
          %444 = sbr.rel (%p442) target = $region60
        $region59: #{interaction_mlp4d_forward.4} parent=51 // pred_region
          %445 = dma.done %s438, 256
        $region60: #{interaction_mlp4d_forward.4} parent=51 // pred_fallthru
          _
        // Predicated region
        $region61: #{interaction_mlp4d_forward.4} parent=51 // pred_check
          %p446 = pneg %p115
        $region62: #{interaction_mlp4d_forward.4} parent=51 // pred_check_branch
          %448 = sbr.rel (%p446) target = $region64
        $region63: #{interaction_mlp4d_forward.4} parent=51 // pred_region
          %449 = dma.done [#allocation9], 64
        $region64: #{interaction_mlp4d_forward.4} parent=51 // pred_fallthru
          _
        // Predicated region
        $region65: #{interaction_mlp4d_forward.4} parent=51 // pred_check
          %p450 = pneg %p136
        $region66: #{interaction_mlp4d_forward.4} parent=51 // pred_check_branch
          %452 = sbr.rel (%p450) target = $region68
        $region67: #{interaction_mlp4d_forward.4} parent=51 // pred_region
          %453 = dma.done [#allocation12], 128
        $region68: #{interaction_mlp4d_forward.4} parent=51 // pred_fallthru
          _
        // Predicated region
        $region69: #{interaction_mlp4d_forward.4} parent=51 // pred_check
          %p454 = pneg %p157
        $region70: #{interaction_mlp4d_forward.4} parent=51 // pred_check_branch
          %456 = sbr.rel (%p454) target = $region72
        $region71: #{interaction_mlp4d_forward.4} parent=51 // pred_region
          %457 = dma.done [#allocation12], 128
        $region72: #{interaction_mlp4d_forward.4} parent=51 // pred_fallthru
          _
        // Predicated region
        $region73: #{interaction_mlp4d_forward.4} parent=51 // pred_check
          %p458 = pneg %p178
        $region74: #{interaction_mlp4d_forward.4} parent=51 // pred_check_branch
          %460 = sbr.rel (%p458) target = $region76
        $region75: #{interaction_mlp4d_forward.4} parent=51 // pred_region
          %461 = dma.done [#allocation15], 16
        $region76: #{interaction_mlp4d_forward.4} parent=51 // pred_fallthru
          _
        // Predicated region
        $region77: #{interaction_mlp4d_forward.4} parent=51 // pred_check
          %p462 = pneg %p199
        $region78: #{interaction_mlp4d_forward.4} parent=51 // pred_check_branch
          %464 = sbr.rel (%p462) target = $region80
        $region79: #{interaction_mlp4d_forward.4} parent=51 // pred_region
          %465 = dma.done [#allocation15], 256
        $region80: #{interaction_mlp4d_forward.4} parent=51 // pred_fallthru
          _
        // Predicated region
        $region81: #{interaction_mlp4d_forward.4} parent=51 // pred_check
          %p466 = pneg %p220
        $region82: #{interaction_mlp4d_forward.4} parent=51 // pred_check_branch
          %468 = sbr.rel (%p466) target = $region84
        $region83: #{interaction_mlp4d_forward.4} parent=51 // pred_region
          %469 = dma.done [#allocation18], 16
        $region84: #{interaction_mlp4d_forward.4} parent=51 // pred_fallthru
          _
        %s470 = sand.u32 %s53, 1
        %s471 = scalar_lea.sflag [#allocation6], %s470
        %s472 = sand.u32 %s53, 1
        %s473 = smul.addr %s472, 16
        %s474 = scalar_lea.vmem [#allocation5], %s473
        %p475 = pneg %p66
        %p476 = pneg %p63
        %s477 = sand.u32 %s43, 1
        %s478 = scalar_lea.sflag [#allocation9], %s477
        %s479 = sand.u32 %s81, 1
        %s480 = smul.addr %s479, 16
        %s481 = scalar_lea.vmem [#allocation8], %s480
        %p482 = pneg %p94
        %p483 = pneg %p91
        %p484 = pneg %p115
        %p485 = pneg %p112
        %p486 = pneg %p136
        %p487 = pneg %p133
        %p488 = pneg %p157
        %p489 = pneg %p154
        %p490 = pneg %p178
        %p491 = pneg %p175
        %p492 = pneg %p199
        %p493 = pneg %p196
        %p494 = pneg %p220
        %p495 = pneg %p217
        %p496 = pneg %p246
        %p497 = pneg %p243
        %s498 = sand.u32 %s233, 1
        %s499 = scalar_lea.sflag [#allocation7], %s498
        %s500 = sand.u32 %s233, 1
        %s501 = smul.addr %s500, 2
        %s502 = scalar_lea.vmem [#allocation19], %s501
        %p503 = pneg %p267
        %p504 = pneg %p264
        %p505 = pneg %p288
        %p506 = pneg %p285
        %s507 = sld [smem:[#allocation3 + %s43]]
        %s508 = sld [smem:[#allocation4 + %s43]]
        %v510 = vld [vmem:[%s432] sm:$0xff]
        %v511 = vld [vmem:[%s432 + $0x8] sm:$0xff]
        %v512 = vld [vmem:[%s441] sm:$0xff]
        %v513 = vld [vmem:[%s441 + $0x8] sm:$0xff]
        %v514 = vld [vmem:[#allocation10] sm:$0xf]
        %v515 = vld [vmem:[#allocation11] sm:$0xff]
        %v516 = vld [vmem:[#allocation13] sm:$0xf]
        %v517 = vld [vmem:[#allocation13 + $0x4] sm:$0xf]
        %v518 = vld [vmem:[#allocation14] sm:$0x1]
        %v519 = vld [vmem:[#allocation16] sm:$0xf]
        %v520 = vld [vmem:[#allocation16 + $0x4] sm:$0xf]
        %v521 = vld [vmem:[#allocation16 + $0x8] sm:$0xf]
        %v522 = vld [vmem:[#allocation16 + $0xc] sm:$0xf]
        %v523 = vld [vmem:[#allocation17] sm:$0x1]
        %v524 = vpack.c.bf16 %v512, %v510
        %v525 = vpack.c.bf16 %v513, %v511
        %527 = vset.pattern.permute.xlu0 0
        %528 = vperm.xlu0 %527, %v515
        %v529 = vpop.permute.xlu0 %528
        %vm531 = vcmask 130048
        %v533 = vsel %vm531, %v514, 0
        %535 = vmatprep.subr.bf16.mxu0 0
        %536 = vmatpush1.bf16.msra.mxu0 %v524
        %537 = vmatprep.subr.bf16.mxu0 0
        %538 = vmatpush1.bf16.msra.mxu0 0
        %539 = vmatprep.subr.bf16.mxu0 0
        %540 = vmatpush1.bf16.msra.mxu0 0
        %541 = vmatprep.subr.bf16.mxu0 0
        %542 = vmatpush1.bf16.msra.mxu0 0
        %543 = vmatprep.subr.bf16.mxu0 0
        %544 = vmatpush1.bf16.msra.mxu0 0
        %545 = vmatprep.subr.bf16.mxu0 0
        %546 = vmatpush1.bf16.msra.mxu0 0
        %547 = vmatprep.subr.bf16.mxu0 0
        %548 = vmatpush1.bf16.msra.mxu0 0
        %549 = vmatprep.subr.bf16.mxu0 0
        %550 = vmatpush1.bf16.msra.mxu0 0
        %551 = vmatprep.subr.bf16.mxu0 0
        %552 = vmatpush1.bf16.msra.mxu0 0
        %553 = vmatprep.subr.bf16.mxu0 0
        %554 = vmatpush1.bf16.msra.mxu0 0
        %555 = vmatprep.subr.bf16.mxu0 0
        %556 = vmatpush1.bf16.msra.mxu0 0
        %557 = vmatprep.subr.bf16.mxu0 0
        %558 = vmatpush1.bf16.msra.mxu0 0
        %559 = vmatprep.subr.bf16.mxu0 0
        %560 = vmatpush1.bf16.msra.mxu0 0
        %561 = vmatprep.subr.bf16.mxu0 0
        %562 = vmatpush1.bf16.msra.mxu0 0
        %563 = vmatprep.subr.bf16.mxu0 0
        %564 = vmatpush1.bf16.msra.mxu0 0
        %565 = vmatprep.subr.bf16.mxu0 0
        %566 = vmatpush1.bf16.msra.mxu0 0
        %567 = vmatprep.mubr.bf16.mxu0 0
        %568 = vmatmul.mubr.bf16.gmra.mrb[0].mxu0 %v533
        %v569 = vpop.f32.mrb[0].mxu0
        %v570 = vadd.f32 %v529, %v569
        %v571 = vpop.f32.mrb[0].mxu0
        %v572 = vpop.f32.mrb[0].mxu0
        %v573 = vpop.f32.mrb[0].mxu0
        %574 = vdwg.mxu0
        %575 = vmatprep.subr.bf16.mxu0 0
        %576 = vmatpush1.bf16.msra.mxu0 %v525
        %577 = vmatprep.subr.bf16.mxu0 0
        %578 = vmatpush1.bf16.msra.mxu0 0
        %579 = vmatprep.subr.bf16.mxu0 0
        %580 = vmatpush1.bf16.msra.mxu0 0
        %581 = vmatprep.subr.bf16.mxu0 0
        %582 = vmatpush1.bf16.msra.mxu0 0
        %583 = vmatprep.subr.bf16.mxu0 0
        %584 = vmatpush1.bf16.msra.mxu0 0
        %585 = vmatprep.subr.bf16.mxu0 0
        %586 = vmatpush1.bf16.msra.mxu0 0
        %587 = vmatprep.subr.bf16.mxu0 0
        %588 = vmatpush1.bf16.msra.mxu0 0
        %589 = vmatprep.subr.bf16.mxu0 0
        %590 = vmatpush1.bf16.msra.mxu0 0
        %591 = vmatprep.subr.bf16.mxu0 0
        %592 = vmatpush1.bf16.msra.mxu0 0
        %593 = vmatprep.subr.bf16.mxu0 0
        %594 = vmatpush1.bf16.msra.mxu0 0
        %595 = vmatprep.subr.bf16.mxu0 0
        %596 = vmatpush1.bf16.msra.mxu0 0
        %597 = vmatprep.subr.bf16.mxu0 0
        %598 = vmatpush1.bf16.msra.mxu0 0
        %599 = vmatprep.subr.bf16.mxu0 0
        %600 = vmatpush1.bf16.msra.mxu0 0
        %601 = vmatprep.subr.bf16.mxu0 0
        %602 = vmatpush1.bf16.msra.mxu0 0
        %603 = vmatprep.subr.bf16.mxu0 0
        %604 = vmatpush1.bf16.msra.mxu0 0
        %605 = vmatprep.subr.bf16.mxu0 0
        %606 = vmatpush1.bf16.msra.mxu0 0
        %607 = vmatprep.mubr.bf16.mxu0 0
        %608 = vmatmul.mubr.bf16.gmra.mrb[0].mxu0 %v533
        %v609 = vpop.f32.mrb[0].mxu0
        %v610 = vadd.f32 %v529, %v609
        %v611 = vpop.f32.mrb[0].mxu0
        %v612 = vpop.f32.mrb[0].mxu0
        %v613 = vpop.f32.mrb[0].mxu0
        %614 = vdwg.mxu0
        %v615 = vsub.f32 0.0, %v570
        %v616 = vsub.f32 0.0, %v610
        %v617 = vmul.f32 %v615, 1.442695
        %v618 = vpow.pop %v617
        %v619 = vmul.f32 %v616, 1.442695
        %v620 = vpow.pop %v619
        %v621 = vadd.f32 %v618, 1.0
        %v622 = vadd.f32 %v620, 1.0
        %v623 = vrcp.pop %v621
        %v624 = vrcp.pop %v622
        %v625 = vmul.f32 %v570, %v623
        %v626 = vmul.f32 %v610, %v624
        %v627 = vpack.c.bf16 %v626, %v625
        %v629 = vlaneseq
        %v630 = vshrl.u32 %v629, 7
        %v631 = vsub.s32 0, %v630
        %v632 = vrot.slane %v518, %v631
        %v636 = vunpack.c.l.b16 %v516
        %v637 = vunpack.c.l.b16 %v517
        %v638 = vpack.c.b16 %v637, %v636
        %v641 = vsel %vm531, %v627, 0
        %643 = vmatprep.subr.bf16.mxu0 0
        %644 = vmatpush1.bf16.msra.mxu0 %v638
        %645 = vmatprep.subr.bf16.mxu0 0
        %646 = vmatpush1.bf16.msra.mxu0 0
        %647 = vmatprep.subr.bf16.mxu0 0
        %648 = vmatpush1.bf16.msra.mxu0 0
        %649 = vmatprep.subr.bf16.mxu0 0
        %650 = vmatpush1.bf16.msra.mxu0 0
        %651 = vmatprep.subr.bf16.mxu0 0
        %652 = vmatpush1.bf16.msra.mxu0 0
        %653 = vmatprep.subr.bf16.mxu0 0
        %654 = vmatpush1.bf16.msra.mxu0 0
        %655 = vmatprep.subr.bf16.mxu0 0
        %656 = vmatpush1.bf16.msra.mxu0 0
        %657 = vmatprep.subr.bf16.mxu0 0
        %658 = vmatpush1.bf16.msra.mxu0 0
        %659 = vmatprep.subr.bf16.mxu0 0
        %660 = vmatpush1.bf16.msra.mxu0 0
        %661 = vmatprep.subr.bf16.mxu0 0
        %662 = vmatpush1.bf16.msra.mxu0 0
        %663 = vmatprep.subr.bf16.mxu0 0
        %664 = vmatpush1.bf16.msra.mxu0 0
        %665 = vmatprep.subr.bf16.mxu0 0
        %666 = vmatpush1.bf16.msra.mxu0 0
        %667 = vmatprep.subr.bf16.mxu0 0
        %668 = vmatpush1.bf16.msra.mxu0 0
        %669 = vmatprep.subr.bf16.mxu0 0
        %670 = vmatpush1.bf16.msra.mxu0 0
        %671 = vmatprep.subr.bf16.mxu0 0
        %672 = vmatpush1.bf16.msra.mxu0 0
        %673 = vmatprep.subr.bf16.mxu0 0
        %674 = vmatpush1.bf16.msra.mxu0 0
        %675 = vmatprep.mubr.bf16.mxu0 0
        %676 = vmatmul.mubr.bf16.gmra.mrb[0].mxu0 %v641
        %v677 = vpop.f32.mrb[0].mxu0
        %v678 = vadd.f32 %v632, %v677
        %v679 = vpop.f32.mrb[0].mxu0
        %v680 = vpop.f32.mrb[0].mxu0
        %v681 = vadd.f32 %v632, %v680
        %v682 = vpop.f32.mrb[0].mxu0
        %683 = vdwg.mxu0
        %v684 = vsub.f32 0.0, %v678
        %v685 = vsub.f32 0.0, %v681
        %v686 = vmul.f32 %v684, 1.442695
        %v687 = vpow.pop %v686
        %v688 = vmul.f32 %v685, 1.442695
        %v689 = vpow.pop %v688
        %v690 = vadd.f32 %v687, 1.0
        %v691 = vadd.f32 %v689, 1.0
        %v692 = vrcp.pop %v690
        %v693 = vrcp.pop %v691
        %v694 = vmul.f32 %v678, %v692
        %v695 = vmul.f32 %v681, %v693
        %v696 = vpack.c.bf16 %v695, %v694
        %v698 = vlaneseq
        %v699 = vshrl.u32 %v698, 7
        %v700 = vsub.s32 0, %v699
        %v701 = vrot.slane %v523, %v700
        %v707 = vunpack.c.l.b16 %v519
        %v708 = vunpack.c.l.b16 %v520
        %v709 = vunpack.c.l.b16 %v521
        %v710 = vunpack.c.l.b16 %v522
        %v711 = vpack.c.b16 %v708, %v707
        %v712 = vpack.c.b16 %v710, %v709
        %vm715 = vcmask 261120
        %v717 = vsel %vm715, %v696, 0
        %719 = vmatprep.subr.bf16.mxu0 0
        %720 = vmatpush1.bf16.msra.mxu0 %v711
        %721 = vmatprep.subr.bf16.mxu0 0
        %722 = vmatpush1.bf16.msra.mxu0 %v712
        %723 = vmatprep.subr.bf16.mxu0 0
        %724 = vmatpush1.bf16.msra.mxu0 0
        %725 = vmatprep.subr.bf16.mxu0 0
        %726 = vmatpush1.bf16.msra.mxu0 0
        %727 = vmatprep.subr.bf16.mxu0 0
        %728 = vmatpush1.bf16.msra.mxu0 0
        %729 = vmatprep.subr.bf16.mxu0 0
        %730 = vmatpush1.bf16.msra.mxu0 0
        %731 = vmatprep.subr.bf16.mxu0 0
        %732 = vmatpush1.bf16.msra.mxu0 0
        %733 = vmatprep.subr.bf16.mxu0 0
        %734 = vmatpush1.bf16.msra.mxu0 0
        %735 = vmatprep.subr.bf16.mxu0 0
        %736 = vmatpush1.bf16.msra.mxu0 0
        %737 = vmatprep.subr.bf16.mxu0 0
        %738 = vmatpush1.bf16.msra.mxu0 0
        %739 = vmatprep.subr.bf16.mxu0 0
        %740 = vmatpush1.bf16.msra.mxu0 0
        %741 = vmatprep.subr.bf16.mxu0 0
        %742 = vmatpush1.bf16.msra.mxu0 0
        %743 = vmatprep.subr.bf16.mxu0 0
        %744 = vmatpush1.bf16.msra.mxu0 0
        %745 = vmatprep.subr.bf16.mxu0 0
        %746 = vmatpush1.bf16.msra.mxu0 0
        %747 = vmatprep.subr.bf16.mxu0 0
        %748 = vmatpush1.bf16.msra.mxu0 0
        %749 = vmatprep.subr.bf16.mxu0 0
        %750 = vmatpush1.bf16.msra.mxu0 0
        %751 = vmatprep.mubr.bf16.mxu0 0
        %752 = vmatmul.mubr.bf16.gmra.mrb[0].mxu0 %v717
        %v753 = vpop.f32.mrb[0].mxu0
        %v754 = vadd.f32 %v701, %v753
        %v755 = vpop.f32.mrb[0].mxu0
        %v756 = vpop.f32.mrb[0].mxu0
        %v757 = vadd.f32 %v701, %v756
        %v758 = vpop.f32.mrb[0].mxu0
        %759 = vdwg.mxu0
        %v760 = vsub.f32 0.0, %v754
        %v761 = vsub.f32 0.0, %v757
        %v762 = vmul.f32 %v760, 1.442695
        %v763 = vpow.pop %v762
        %v764 = vmul.f32 %v761, 1.442695
        %v765 = vpow.pop %v764
        %v766 = vadd.f32 %v763, 1.0
        %v767 = vadd.f32 %v765, 1.0
        %v768 = vrcp.pop %v766
        %v769 = vrcp.pop %v767
        %v770 = vmul.f32 %v754, %v768
        %v771 = vmul.f32 %v757, %v769
        %v774 = vrot.slane %v771, 7
        %vm775 = vcmask 1041409
        %v776 = vsel %vm775, %v774, %v770
        %v778 = vrot.slane %v770, 1
        %v779 = vsel %vm775, %v771, %v778
        %780 = vrot.lane.b32.xlu0 %v779, 16
        %v781 = vpop.permute.xlu0 %780
        %v783 = vrot.slane %v770, 2
        %v784 = vrot.slane %v771, 1
        %v785 = vsel %vm775, %v784, %v783
        %786 = vrot.lane.b32.xlu0 %v785, 32
        %v787 = vpop.permute.xlu0 %786
        %v789 = vrot.slane %v770, 3
        %v790 = vrot.slane %v771, 2
        %v791 = vsel %vm775, %v790, %v789
        %792 = vrot.lane.b32.xlu0 %v791, 48
        %v793 = vpop.permute.xlu0 %792
        %v795 = vrot.slane %v770, 4
        %v796 = vrot.slane %v771, 3
        %v797 = vsel %vm775, %v796, %v795
        %798 = vrot.lane.b32.xlu0 %v797, 64
        %v799 = vpop.permute.xlu0 %798
        %v801 = vrot.slane %v770, 5
        %v802 = vrot.slane %v771, 4
        %v803 = vsel %vm775, %v802, %v801
        %804 = vrot.lane.b32.xlu0 %v803, 80
        %v805 = vpop.permute.xlu0 %804
        %v807 = vrot.slane %v770, 6
        %v808 = vrot.slane %v771, 5
        %v809 = vsel %vm775, %v808, %v807
        %810 = vrot.lane.b32.xlu0 %v809, 96
        %v811 = vpop.permute.xlu0 %810
        %v813 = vrot.slane %v770, 7
        %v814 = vrot.slane %v771, 6
        %v815 = vsel %vm775, %v814, %v813
        %816 = vrot.lane.b32.xlu0 %v815, 112
        %v817 = vpop.permute.xlu0 %816
        %v819 = vsel %vm531, %v776, %v781
        %v820 = vsel %vm715, %v819, %v787
        %vm821 = vcmask 392192
        %v822 = vsel %vm821, %v820, %v793
        %vm823 = vcmask 523264
        %v824 = vsel %vm823, %v822, %v799
        %vm825 = vcmask 654336
        %v826 = vsel %vm825, %v824, %v805
        %vm827 = vcmask 785408
        %v828 = vsel %vm827, %v826, %v811
        %vm829 = vcmask 916480
        %v830 = vsel %vm829, %v828, %v817
        %831 = vst [vmem:[%s502] sm:$0x3] %v830
        %p832 = scmp.eq.s32.totalorder %s43, 0
        // Predicated region
        $region85: #{interaction_mlp4d_forward.4} parent=51 // pred_check
          %p833 = pneg %p832
        $region86: #{interaction_mlp4d_forward.4} parent=51 // pred_check_branch
          %835 = sbr.rel (%p833) target = $region88
        $region87: #{interaction_mlp4d_forward.4} parent=51 // pred_region
          %vm836 = vcmask 122880
          %837 = vst.msk [vmem:[#allocation20] sm:$0x1] %vm836, 0.0
          %838 = vst.msk [vmem:[#allocation22] sm:$0x1] %vm836, 0.0
        $region88: #{interaction_mlp4d_forward.4} parent=51 // pred_fallthru
          _
        %v839 = vld [vmem:[#allocation20] sm:$0x1]
        %v840 = vsel %vm531, %v770, 0.0
        %v841 = vsel %vm531, %v771, 0.0
        %v842 = vadd.f32 %v840, %v841
        %v843 = vrot.slane %v842, 4
        %v844 = vadd.f32 %v842, %v843
        %v845 = vrot.slane %v844, 2
        %v846 = vadd.f32 %v844, %v845
        %v847 = vrot.slane %v846, 1
        %v848 = vadd.f32 %v846, %v847
        %v849 = vadd.f32 %v839, %v848
        %vm850 = vcmask 122880
        %851 = vst.msk [vmem:[#allocation20] sm:$0x1] %vm850, %v849
        %v852 = vld [vmem:[#allocation22] sm:$0x1]
        %v853 = vmul.f32 %v770, %v770
        %v854 = vmul.f32 %v771, %v771
        %v855 = vsel %vm531, %v853, 0.0
        %v856 = vsel %vm531, %v854, 0.0
        %v857 = vadd.f32 %v855, %v856
        %v858 = vrot.slane %v857, 4
        %v859 = vadd.f32 %v857, %v858
        %v860 = vrot.slane %v859, 2
        %v861 = vadd.f32 %v859, %v860
        %v862 = vrot.slane %v861, 1
        %v863 = vadd.f32 %v861, %v862
        %v864 = vadd.f32 %v852, %v863
        %865 = vst.msk [vmem:[#allocation22] sm:$0x1] %vm850, %v864
        %s866 = sand.u32 %s233, 1
        %s867 = scalar_lea.sflag [#allocation7], %s866
        %s868 = sand.u32 %s233, 1
        %s869 = smul.addr %s868, 2
        %s870 = scalar_lea.vmem [#allocation19], %s869
        // Predicated region
        $region89: #{interaction_mlp4d_forward.4} parent=51 // pred_check
          %p871 = pneg %p243
        $region90: #{interaction_mlp4d_forward.4} parent=51 // pred_check_branch
          %873 = sbr.rel (%p871) target = $region92
        $region91: #{interaction_mlp4d_forward.4} parent=51 // pred_region
          %s875 = ssub.s32 32, 32
          %876 = vsyncadd %s867, %s875
          %s877 = smul.addr %s43, 32
          %s878 = scalar_lea.hbm %s10, %s877
          %s880 = sshll.u32 %s870, 4
          %s881 = int_to_ptr.vmem [resolvable:$true] %s880
          %883 = dma.vmem_to_hbm [thread:$0]  %s881, 32, %s878, %s867
        $region92: #{interaction_mlp4d_forward.4} parent=51 // pred_fallthru
          _
        // Predicated region
        $region93: #{interaction_mlp4d_forward.4} parent=51 // pred_check
          %p884 = pneg %p264
        $region94: #{interaction_mlp4d_forward.4} parent=51 // pred_check_branch
          %886 = sbr.rel (%p884) target = $region96
        $region95: #{interaction_mlp4d_forward.4} parent=51 // pred_region
          %s888 = ssub.s32 16, 16
          %889 = vsyncadd [#allocation21], %s888
          %s891 = sshll.u32 [#allocation20], 4
          %s892 = int_to_ptr.vmem [resolvable:$true] %s891
          %894 = dma.vmem_to_hbm [thread:$0]  %s892, 16, %s11, [#allocation21]
        $region96: #{interaction_mlp4d_forward.4} parent=51 // pred_fallthru
          _
        // Predicated region
        $region97: #{interaction_mlp4d_forward.4} parent=51 // pred_check
          %p895 = pneg %p285
        $region98: #{interaction_mlp4d_forward.4} parent=51 // pred_check_branch
          %897 = sbr.rel (%p895) target = $region100
        $region99: #{interaction_mlp4d_forward.4} parent=51 // pred_region
          %s899 = ssub.s32 16, 16
          %900 = vsyncadd [#allocation21], %s899
          %s902 = sshll.u32 [#allocation22], 4
          %s903 = int_to_ptr.vmem [resolvable:$true] %s902
          %905 = dma.vmem_to_hbm [thread:$0]  %s903, 16, %s12, [#allocation21]
        $region100: #{interaction_mlp4d_forward.4} parent=51 // pred_fallthru
          _
        // Predicated region
        $region101: #{interaction_mlp4d_forward.4} parent=51 // pred_check
          %p906 = pneg %p264
        $region102: #{interaction_mlp4d_forward.4} parent=51 // pred_check_branch
          %908 = sbr.rel (%p906) target = $region104
        $region103: #{interaction_mlp4d_forward.4} parent=51 // pred_region
          %909 = dma.done [#allocation21], 16
        $region104: #{interaction_mlp4d_forward.4} parent=51 // pred_fallthru
          _
        // Predicated region
        $region105: #{interaction_mlp4d_forward.4} parent=51 // pred_check
          %p910 = pneg %p285
        $region106: #{interaction_mlp4d_forward.4} parent=51 // pred_check_branch
          %912 = sbr.rel (%p910) target = $region108
        $region107: #{interaction_mlp4d_forward.4} parent=51 // pred_region
          %913 = dma.done [#allocation21], 16
        $region108: #{interaction_mlp4d_forward.4} parent=51 // pred_fallthru
          _
      $region52: #{interaction_mlp4d_forward.4} parent=5 // pred_fallthru
        _
      %p914 = scmp.le.s32.totalorder 2, %s38
      // Predicated region
      $region109: #{interaction_mlp4d_forward.4} parent=5 // pred_check
        %p915 = pneg %p914
      $region110: #{interaction_mlp4d_forward.4} parent=5 // pred_check_branch
        %917 = sbr.rel (%p915) target = $region112
      $region111: #{interaction_mlp4d_forward.4} parent=5 // pred_region
        %s918 = ssub.s32 %s38, 2
        // Predicated region
        $region113: #{interaction_mlp4d_forward.4} parent=111 // pred_check
          %p919 = pneg %p249
        $region114: #{interaction_mlp4d_forward.4} parent=111 // pred_check_branch
          %921 = sbr.rel (%p919) target = $region116
        $region115: #{interaction_mlp4d_forward.4} parent=111 // pred_region
          %s922 = sand.u32 %s234, 1
          %s923 = scalar_lea.sflag [#allocation7], %s922
          %s924 = sand.u32 %s234, 1
          %s925 = smul.addr %s924, 2
          %s926 = scalar_lea.vmem [#allocation19], %s925
          %927 = dma.done %s923, 32
        $region116: #{interaction_mlp4d_forward.4} parent=111 // pred_fallthru
          _
      $region112: #{interaction_mlp4d_forward.4} parent=5 // pred_fallthru
        _
    $region6: #{interaction_mlp4d_forward.4} parent=1 // loop_footer
      %s42 = sadd.s32 1, %s38
    $region7: #{interaction_mlp4d_forward.4} parent=1 // loop_footer_branch
      %37 = sbr.rel target = $region3
    $region8: #{interaction_mlp4d_forward.4} parent=1 // loop_exit
      _
    %928 = vsyncpa [#allocation6], 1
    %s929 = scalar_lea.sflag [#allocation6], 1
    %930 = vsyncpa %s929, 1
    %931 = vsyncpa [#allocation9], 1
    %s932 = scalar_lea.sflag [#allocation9], 1
    %933 = vsyncpa %s932, 1
    %934 = vsyncpa [#allocation12], 1
    %935 = vsyncpa [#allocation15], 1
    %936 = vsyncpa [#allocation18], 1
    %937 = vsyncpa [#allocation7], 1
    %s938 = scalar_lea.sflag [#allocation7], 1
    %939 = vsyncpa %s938, 1
    %940 = vsyncpa [#allocation21], 1

// kernel: interaction_mlp4d_forward.6
$region0: #{interaction_mlp4d_forward.6}
  #allocation0 [shape = 'u32[]', space=smem, size = 0x4, offset = 0x4, fixed_abs, tag = 'smem constant byte address 0x4 - core index']
  #allocation1 [shape = 'u32[144,128]{1,0:T(1,128)}', space=vmem, size = 0x12000, scoped, tag = 'internal scratch']
  %s0 = inlined_call_operand.hbm [shape: f32[4,2,8,16], index: 0, kind: input, shape index: {}]
  %s1 = inlined_call_operand.hbm [shape: f32[4,2,8,16], index: 1, kind: input, shape index: {}]
  %s2 = inlined_call_operand.hbm [shape: bf16[8,16], index: 2, kind: input, shape index: {}]
  %s3 = inlined_call_operand.hbm [shape: f32[8,1], index: 3, kind: input, shape index: {}]
  %s4 = inlined_call_operand.hbm [shape: bf16[16,32], index: 4, kind: input, shape index: {}]
  %s5 = inlined_call_operand.hbm [shape: f32[1,32], index: 5, kind: input, shape index: {}]
  %s6 = inlined_call_operand.hbm [shape: bf16[32,16], index: 6, kind: input, shape index: {}]
  %s7 = inlined_call_operand.hbm [shape: f32[1,16], index: 7, kind: input, shape index: {}]
  %s8 = inlined_call_operand.hbm [shape: f32[4,2,128], index: 8, kind: output, shape index: {0}]
  %s9 = inlined_call_operand.hbm [shape: f32[1,16], index: 9, kind: output, shape index: {1}]
  %s10 = inlined_call_operand.hbm [shape: f32[1,16], index: 10, kind: output, shape index: {2}]
  %11 = xla_tuple %s8, %s9, %s10
  %s12 = sld [smem:[#allocation0]]
  $region117: #{interaction_mlp4d_forward.6} parent=0
    _
  %s14 = ssub.s32 1, %s12
  %s15 = scalar_select 0, %s14, %s12
  $region1: #{interaction_mlp4d_forward.6} parent=0
    #allocation2 [shape = 'u8[16384]{0}', space=vmem, size = 0x4000, scoped, tag = 'input window, operand 0']
    #allocation3 [shape = 's32[2]{0}', space=sflag, size = 0x8, scoped, tag = 'scoped memory for interaction_mlp4d_forward.6']
    #allocation4 [shape = 's32[2]{0}', space=sflag, size = 0x8, scoped, tag = 'scoped memory for interaction_mlp4d_forward.6']
    #allocation5 [shape = 'u8[16384]{0}', space=vmem, size = 0x4000, scoped, tag = 'input window, operand 1']
    #allocation6 [shape = 's32[2]{0}', space=sflag, size = 0x8, scoped, tag = 'scoped memory for interaction_mlp4d_forward.6']
    #allocation7 [shape = 'u8[2048]{0}', space=vmem, size = 0x800, scoped, tag = 'input window, operand 2, single buffered']
    #allocation8 [shape = 'u8[4096]{0}', space=vmem, size = 0x1000, scoped, tag = 'input window, operand 3, single buffered']
    #allocation9 [shape = 's32[1]{0}', space=sflag, size = 0x4, scoped, tag = 'scoped memory for interaction_mlp4d_forward.6']
    #allocation10 [shape = 'u8[4096]{0}', space=vmem, size = 0x1000, scoped, tag = 'input window, operand 4, single buffered']
    #allocation11 [shape = 'u8[512]{0}', space=vmem, size = 0x400, scoped, tag = 'input window, operand 5, single buffered']
    #allocation12 [shape = 's32[1]{0}', space=sflag, size = 0x4, scoped, tag = 'scoped memory for interaction_mlp4d_forward.6']
    #allocation13 [shape = 'u8[8192]{0}', space=vmem, size = 0x2000, scoped, tag = 'input window, operand 6, single buffered']
    #allocation14 [shape = 'u8[512]{0}', space=vmem, size = 0x400, scoped, tag = 'input window, operand 7, single buffered']
    #allocation15 [shape = 's32[1]{0}', space=sflag, size = 0x4, scoped, tag = 'scoped memory for interaction_mlp4d_forward.6']
    #allocation16 [shape = 'u8[2048]{0}', space=vmem, size = 0x800, scoped, tag = 'output window, operand 0']
    #allocation17 [shape = 'u8[512]{0}', space=vmem, size = 0x400, scoped, tag = 'output window, operand 1, single buffered']
    #allocation18 [shape = 's32[1]{0}', space=sflag, size = 0x4, scoped, tag = 'scoped memory for interaction_mlp4d_forward.6']
    #allocation19 [shape = 'u8[512]{0}', space=vmem, size = 0x400, scoped, tag = 'output window, operand 2, single buffered']
    %16 = vsyncpa [#allocation3], 0
    %s17 = scalar_lea.sflag [#allocation3], 1
    %18 = vsyncpa %s17, 0
    %19 = vsyncpa [#allocation6], 0
    %s20 = scalar_lea.sflag [#allocation6], 1
    %21 = vsyncpa %s20, 0
    %22 = vsyncpa [#allocation9], 0
    %23 = vsyncpa [#allocation12], 0
    %24 = vsyncpa [#allocation15], 0
    %25 = vsyncpa [#allocation4], 0
    %s26 = scalar_lea.sflag [#allocation4], 1
    %27 = vsyncpa %s26, 0
    %28 = vsyncpa [#allocation18], 0
    loop: start=0, step=1, limit=6
    $region2: #{interaction_mlp4d_forward.6} parent=1 // loop_pre_header
      _
    $region3: #{interaction_mlp4d_forward.6} parent=1 // loop_header
      %s30 = sphi 0, %s34
      %p31 = scmp.ge.s32.totalorder %s30, 6
      %s40 = sphi 0, %s42
      %s43 = sphi 0, %s40
      %s44 = sphi 0, %s43
      %s60 = sphi 0, %s44
      %s66 = sphi 0, %s68
      %s69 = sphi 0, %s66
      %s70 = sphi 0, %s69
      %s86 = sphi 0, %s70
      %s90 = sphi 0, %s90
      %s92 = sphi 0, %s90
      %s93 = sphi 0, %s92
      %s107 = sphi 0, %s93
      %s111 = sphi 0, %s111
      %s113 = sphi 0, %s111
      %s114 = sphi 0, %s113
      %s128 = sphi 0, %s114
      %s132 = sphi 0, %s132
      %s134 = sphi 0, %s132
      %s135 = sphi 0, %s134
      %s149 = sphi 0, %s135
      %s153 = sphi 0, %s153
      %s155 = sphi 0, %s153
      %s156 = sphi 0, %s155
      %s170 = sphi 0, %s156
      %s174 = sphi 0, %s174
      %s176 = sphi 0, %s174
      %s177 = sphi 0, %s176
      %s191 = sphi 0, %s177
      %s195 = sphi 0, %s195
      %s197 = sphi 0, %s195
      %s198 = sphi 0, %s197
      %s212 = sphi 0, %s198
      %s218 = sphi 0, %s220
      %s221 = sphi 0, %s218
      %s222 = sphi 0, %s221
      %s238 = sphi 0, %s222
      %s242 = sphi 0, %s242
      %s244 = sphi 0, %s242
      %s245 = sphi 0, %s244
      %s259 = sphi 0, %s245
      %s263 = sphi 0, %s263
      %s265 = sphi 0, %s263
      %s266 = sphi 0, %s265
      %s280 = sphi 0, %s266
    $region4: #{interaction_mlp4d_forward.6} parent=1 // loop_header_branch
      %33 = sbr.rel (%p31) target = $region8
    $region5: #{interaction_mlp4d_forward.6} parent=1 // loop_body
      %s35 = ssub.s32 %s30, 1
      %s36 = ssub.s32 %s30, 2
      %s37 = sadd.s32 %s30, 1
      %s38 = ssub.s32 %s30, %s37
      %p39 = scmp.eq.s32.totalorder %s38, 0
      %s41 = sadd.s32 %s40, 1
      %s42 = scalar_select %p39, %s40, %s41
      %p45 = pneg %p39
      %p46 = scmp.eq.s32.totalorder %s30, 3
      %p47 = por %p45, %p46
      %p48 = scmp.ne.s32.totalorder %s40, %s43
      %p49 = scmp.eq.s32.totalorder %s30, 0
      %p50 = por %p48, %p49
      %p51 = scmp.ne.s32.totalorder %s40, %s43
      %p52 = scmp.eq.s32.totalorder %s35, 3
      %p53 = por %p51, %p52
      %p54 = scmp.ne.s32.totalorder %s43, %s44
      %p55 = scmp.eq.s32.totalorder %s35, 0
      %p56 = por %p54, %p55
      %p57 = scmp.ne.s32.totalorder %s43, %s44
      %p58 = scmp.eq.s32.totalorder %s36, 3
      %p59 = por %p57, %p58
      %p61 = scmp.ne.s32.totalorder %s44, %s60
      %p62 = scmp.eq.s32.totalorder %s36, 0
      %p63 = por %p61, %p62
      %s64 = ssub.s32 %s30, %s37
      %p65 = scmp.eq.s32.totalorder %s64, 0
      %s67 = sadd.s32 %s66, 1
      %s68 = scalar_select %p65, %s66, %s67
      %p71 = pneg %p65
      %p72 = scmp.eq.s32.totalorder %s30, 3
      %p73 = por %p71, %p72
      %p74 = scmp.ne.s32.totalorder %s66, %s69
      %p75 = scmp.eq.s32.totalorder %s30, 0
      %p76 = por %p74, %p75
      %p77 = scmp.ne.s32.totalorder %s66, %s69
      %p78 = scmp.eq.s32.totalorder %s35, 3
      %p79 = por %p77, %p78
      %p80 = scmp.ne.s32.totalorder %s69, %s70
      %p81 = scmp.eq.s32.totalorder %s35, 0
      %p82 = por %p80, %p81
      %p83 = scmp.ne.s32.totalorder %s69, %s70
      %p84 = scmp.eq.s32.totalorder %s36, 3
      %p85 = por %p83, %p84
      %p87 = scmp.ne.s32.totalorder %s70, %s86
      %p88 = scmp.eq.s32.totalorder %s36, 0
      %p89 = por %p87, %p88
      %s91 = sadd.s32 %s90, 1
      %p94 = scmp.eq.s32.totalorder %s30, 3
      %p95 = scmp.ne.s32.totalorder %s90, %s92
      %p96 = scmp.eq.s32.totalorder %s30, 0
      %p97 = por %p95, %p96
      %p98 = scmp.ne.s32.totalorder %s90, %s92
      %p99 = scmp.eq.s32.totalorder %s35, 3
      %p100 = por %p98, %p99
      %p101 = scmp.ne.s32.totalorder %s92, %s93
      %p102 = scmp.eq.s32.totalorder %s35, 0
      %p103 = por %p101, %p102
      %p104 = scmp.ne.s32.totalorder %s92, %s93
      %p105 = scmp.eq.s32.totalorder %s36, 3
      %p106 = por %p104, %p105
      %p108 = scmp.ne.s32.totalorder %s93, %s107
      %p109 = scmp.eq.s32.totalorder %s36, 0
      %p110 = por %p108, %p109
      %s112 = sadd.s32 %s111, 1
      %p115 = scmp.eq.s32.totalorder %s30, 3
      %p116 = scmp.ne.s32.totalorder %s111, %s113
      %p117 = scmp.eq.s32.totalorder %s30, 0
      %p118 = por %p116, %p117
      %p119 = scmp.ne.s32.totalorder %s111, %s113
      %p120 = scmp.eq.s32.totalorder %s35, 3
      %p121 = por %p119, %p120
      %p122 = scmp.ne.s32.totalorder %s113, %s114
      %p123 = scmp.eq.s32.totalorder %s35, 0
      %p124 = por %p122, %p123
      %p125 = scmp.ne.s32.totalorder %s113, %s114
      %p126 = scmp.eq.s32.totalorder %s36, 3
      %p127 = por %p125, %p126
      %p129 = scmp.ne.s32.totalorder %s114, %s128
      %p130 = scmp.eq.s32.totalorder %s36, 0
      %p131 = por %p129, %p130
      %s133 = sadd.s32 %s132, 1
      %p136 = scmp.eq.s32.totalorder %s30, 3
      %p137 = scmp.ne.s32.totalorder %s132, %s134
      %p138 = scmp.eq.s32.totalorder %s30, 0
      %p139 = por %p137, %p138
      %p140 = scmp.ne.s32.totalorder %s132, %s134
      %p141 = scmp.eq.s32.totalorder %s35, 3
      %p142 = por %p140, %p141
      %p143 = scmp.ne.s32.totalorder %s134, %s135
      %p144 = scmp.eq.s32.totalorder %s35, 0
      %p145 = por %p143, %p144
      %p146 = scmp.ne.s32.totalorder %s134, %s135
      %p147 = scmp.eq.s32.totalorder %s36, 3
      %p148 = por %p146, %p147
      %p150 = scmp.ne.s32.totalorder %s135, %s149
      %p151 = scmp.eq.s32.totalorder %s36, 0
      %p152 = por %p150, %p151
      %s154 = sadd.s32 %s153, 1
      %p157 = scmp.eq.s32.totalorder %s30, 3
      %p158 = scmp.ne.s32.totalorder %s153, %s155
      %p159 = scmp.eq.s32.totalorder %s30, 0
      %p160 = por %p158, %p159
      %p161 = scmp.ne.s32.totalorder %s153, %s155
      %p162 = scmp.eq.s32.totalorder %s35, 3
      %p163 = por %p161, %p162
      %p164 = scmp.ne.s32.totalorder %s155, %s156
      %p165 = scmp.eq.s32.totalorder %s35, 0
      %p166 = por %p164, %p165
      %p167 = scmp.ne.s32.totalorder %s155, %s156
      %p168 = scmp.eq.s32.totalorder %s36, 3
      %p169 = por %p167, %p168
      %p171 = scmp.ne.s32.totalorder %s156, %s170
      %p172 = scmp.eq.s32.totalorder %s36, 0
      %p173 = por %p171, %p172
      %s175 = sadd.s32 %s174, 1
      %p178 = scmp.eq.s32.totalorder %s30, 3
      %p179 = scmp.ne.s32.totalorder %s174, %s176
      %p180 = scmp.eq.s32.totalorder %s30, 0
      %p181 = por %p179, %p180
      %p182 = scmp.ne.s32.totalorder %s174, %s176
      %p183 = scmp.eq.s32.totalorder %s35, 3
      %p184 = por %p182, %p183
      %p185 = scmp.ne.s32.totalorder %s176, %s177
      %p186 = scmp.eq.s32.totalorder %s35, 0
      %p187 = por %p185, %p186
      %p188 = scmp.ne.s32.totalorder %s176, %s177
      %p189 = scmp.eq.s32.totalorder %s36, 3
      %p190 = por %p188, %p189
      %p192 = scmp.ne.s32.totalorder %s177, %s191
      %p193 = scmp.eq.s32.totalorder %s36, 0
      %p194 = por %p192, %p193
      %s196 = sadd.s32 %s195, 1
      %p199 = scmp.eq.s32.totalorder %s30, 3
      %p200 = scmp.ne.s32.totalorder %s195, %s197
      %p201 = scmp.eq.s32.totalorder %s30, 0
      %p202 = por %p200, %p201
      %p203 = scmp.ne.s32.totalorder %s195, %s197
      %p204 = scmp.eq.s32.totalorder %s35, 3
      %p205 = por %p203, %p204
      %p206 = scmp.ne.s32.totalorder %s197, %s198
      %p207 = scmp.eq.s32.totalorder %s35, 0
      %p208 = por %p206, %p207
      %p209 = scmp.ne.s32.totalorder %s197, %s198
      %p210 = scmp.eq.s32.totalorder %s36, 3
      %p211 = por %p209, %p210
      %p213 = scmp.ne.s32.totalorder %s198, %s212
      %p214 = scmp.eq.s32.totalorder %s36, 0
      %p215 = por %p213, %p214
      %s216 = ssub.s32 %s30, %s37
      %p217 = scmp.eq.s32.totalorder %s216, 0
      %s219 = sadd.s32 %s218, 1
      %s220 = scalar_select %p217, %s218, %s219
      %p223 = pneg %p217
      %p224 = scmp.eq.s32.totalorder %s30, 3
      %p225 = por %p223, %p224
      %p226 = scmp.ne.s32.totalorder %s218, %s221
      %p227 = scmp.eq.s32.totalorder %s30, 0
      %p228 = por %p226, %p227
      %p229 = scmp.ne.s32.totalorder %s218, %s221
      %p230 = scmp.eq.s32.totalorder %s35, 3
      %p231 = por %p229, %p230
      %p232 = scmp.ne.s32.totalorder %s221, %s222
      %p233 = scmp.eq.s32.totalorder %s35, 0
      %p234 = por %p232, %p233
      %p235 = scmp.ne.s32.totalorder %s221, %s222
      %p236 = scmp.eq.s32.totalorder %s36, 3
      %p237 = por %p235, %p236
      %p239 = scmp.ne.s32.totalorder %s222, %s238
      %p240 = scmp.eq.s32.totalorder %s36, 0
      %p241 = por %p239, %p240
      %s243 = sadd.s32 %s242, 1
      %p246 = scmp.eq.s32.totalorder %s30, 3
      %p247 = scmp.ne.s32.totalorder %s242, %s244
      %p248 = scmp.eq.s32.totalorder %s30, 0
      %p249 = por %p247, %p248
      %p250 = scmp.ne.s32.totalorder %s242, %s244
      %p251 = scmp.eq.s32.totalorder %s35, 3
      %p252 = por %p250, %p251
      %p253 = scmp.ne.s32.totalorder %s244, %s245
      %p254 = scmp.eq.s32.totalorder %s35, 0
      %p255 = por %p253, %p254
      %p256 = scmp.ne.s32.totalorder %s244, %s245
      %p257 = scmp.eq.s32.totalorder %s36, 3
      %p258 = por %p256, %p257
      %p260 = scmp.ne.s32.totalorder %s245, %s259
      %p261 = scmp.eq.s32.totalorder %s36, 0
      %p262 = por %p260, %p261
      %s264 = sadd.s32 %s263, 1
      %p267 = scmp.eq.s32.totalorder %s30, 3
      %p268 = scmp.ne.s32.totalorder %s263, %s265
      %p269 = scmp.eq.s32.totalorder %s30, 0
      %p270 = por %p268, %p269
      %p271 = scmp.ne.s32.totalorder %s263, %s265
      %p272 = scmp.eq.s32.totalorder %s35, 3
      %p273 = por %p271, %p272
      %p274 = scmp.ne.s32.totalorder %s265, %s266
      %p275 = scmp.eq.s32.totalorder %s35, 0
      %p276 = por %p274, %p275
      %p277 = scmp.ne.s32.totalorder %s265, %s266
      %p278 = scmp.eq.s32.totalorder %s36, 3
      %p279 = por %p277, %p278
      %p281 = scmp.ne.s32.totalorder %s266, %s280
      %p282 = scmp.eq.s32.totalorder %s36, 0
      %p283 = por %p281, %p282
      %p284 = scmp.le.s32.totalorder 1, %s30
      %p285 = scmp.lt.s32.totalorder %s30, 5
      %p286 = pnand %p284, %p285
      %p287 = pneg %p286
      // Predicated region
      $region9: #{interaction_mlp4d_forward.6} parent=5 // pred_check
        _
      $region10: #{interaction_mlp4d_forward.6} parent=5 // pred_check_branch
        %289 = sbr.rel (%p286) target = $region12
      $region11: #{interaction_mlp4d_forward.6} parent=5 // pred_region
        %s290 = ssub.s32 %s30, 1
        // Predicated region
        $region13: #{interaction_mlp4d_forward.6} parent=11 // pred_check
          %p291 = pneg %p103
        $region14: #{interaction_mlp4d_forward.6} parent=11 // pred_check_branch
          %293 = sbr.rel (%p291) target = $region16
        $region15: #{interaction_mlp4d_forward.6} parent=11 // pred_region
          %s295 = ssub.s32 64, 64
          %296 = vsyncadd [#allocation6], %s295
          %s298 = sshll.u32 [#allocation7], 4
          %s299 = int_to_ptr.vmem [resolvable:$true] %s298
          %301 = dma.hbm_to_vmem [thread:$0]  %s2, 64, %s299, [#allocation6]
        $region16: #{interaction_mlp4d_forward.6} parent=11 // pred_fallthru
          _
        // Predicated region
        $region17: #{interaction_mlp4d_forward.6} parent=11 // pred_check
          %p302 = pneg %p124
        $region18: #{interaction_mlp4d_forward.6} parent=11 // pred_check_branch
          %304 = sbr.rel (%p302) target = $region20
        $region19: #{interaction_mlp4d_forward.6} parent=11 // pred_region
          %s306 = ssub.s32 128, 128
          %307 = vsyncadd [#allocation9], %s306
          %s309 = sshll.u32 [#allocation8], 4
          %s310 = int_to_ptr.vmem [resolvable:$true] %s309
          %312 = dma.hbm_to_vmem [thread:$0]  %s3, 128, %s310, [#allocation9]
        $region20: #{interaction_mlp4d_forward.6} parent=11 // pred_fallthru
          _
        // Predicated region
        $region21: #{interaction_mlp4d_forward.6} parent=11 // pred_check
          %p313 = pneg %p145
        $region22: #{interaction_mlp4d_forward.6} parent=11 // pred_check_branch
          %315 = sbr.rel (%p313) target = $region24
        $region23: #{interaction_mlp4d_forward.6} parent=11 // pred_region
          %s317 = ssub.s32 128, 128
          %318 = vsyncadd [#allocation9], %s317
          %s319 = sshll.u32 [#allocation10], 4
          %s320 = int_to_ptr.vmem [resolvable:$true] %s319
          %325 = dma.hbm_to_vmem [thread:$0]  %s4, 128, %s320, [#allocation9], 64, 64, 4
        $region24: #{interaction_mlp4d_forward.6} parent=11 // pred_fallthru
          _
        // Predicated region
        $region25: #{interaction_mlp4d_forward.6} parent=11 // pred_check
          %p326 = pneg %p166
        $region26: #{interaction_mlp4d_forward.6} parent=11 // pred_check_branch
          %328 = sbr.rel (%p326) target = $region28
        $region27: #{interaction_mlp4d_forward.6} parent=11 // pred_region
          %s330 = ssub.s32 16, 16
          %331 = vsyncadd [#allocation12], %s330
          %s333 = sshll.u32 [#allocation11], 4
          %s334 = int_to_ptr.vmem [resolvable:$true] %s333
          %336 = dma.hbm_to_vmem [thread:$0]  %s5, 16, %s334, [#allocation12]
        $region28: #{interaction_mlp4d_forward.6} parent=11 // pred_fallthru
          _
        // Predicated region
        $region29: #{interaction_mlp4d_forward.6} parent=11 // pred_check
          %p337 = pneg %p187
        $region30: #{interaction_mlp4d_forward.6} parent=11 // pred_check_branch
          %339 = sbr.rel (%p337) target = $region32
        $region31: #{interaction_mlp4d_forward.6} parent=11 // pred_region
          %s341 = ssub.s32 256, 256
          %342 = vsyncadd [#allocation12], %s341
          %s343 = sshll.u32 [#allocation13], 4
          %s344 = int_to_ptr.vmem [resolvable:$true] %s343
          %349 = dma.hbm_to_vmem [thread:$0]  %s6, 256, %s344, [#allocation12], 64, 64, 4
        $region32: #{interaction_mlp4d_forward.6} parent=11 // pred_fallthru
          _
        // Predicated region
        $region33: #{interaction_mlp4d_forward.6} parent=11 // pred_check
          %p350 = pneg %p208
        $region34: #{interaction_mlp4d_forward.6} parent=11 // pred_check_branch
          %352 = sbr.rel (%p350) target = $region36
        $region35: #{interaction_mlp4d_forward.6} parent=11 // pred_region
          %s354 = ssub.s32 16, 16
          %355 = vsyncadd [#allocation15], %s354
          %s357 = sshll.u32 [#allocation14], 4
          %s358 = int_to_ptr.vmem [resolvable:$true] %s357
          %360 = dma.hbm_to_vmem [thread:$0]  %s7, 16, %s358, [#allocation15]
        $region36: #{interaction_mlp4d_forward.6} parent=11 // pred_fallthru
          _
      $region12: #{interaction_mlp4d_forward.6} parent=5 // pred_fallthru
        _
      %p361 = scmp.lt.s32.totalorder %s30, 4
      // Predicated region
      $region37: #{interaction_mlp4d_forward.6} parent=5 // pred_check
        %p362 = pneg %p361
      $region38: #{interaction_mlp4d_forward.6} parent=5 // pred_check_branch
        %364 = sbr.rel (%p362) target = $region40
      $region39: #{interaction_mlp4d_forward.6} parent=5 // pred_region
        // Predicated region
        $region41: #{interaction_mlp4d_forward.6} parent=39 // pred_check
          %p365 = pneg %p50
        $region42: #{interaction_mlp4d_forward.6} parent=39 // pred_check_branch
          %367 = sbr.rel (%p365) target = $region44
        $region43: #{interaction_mlp4d_forward.6} parent=39 // pred_region
          %s368 = sand.u32 %s40, 1
          %s369 = scalar_lea.sflag [#allocation3], %s368
          %s370 = sand.u32 %s40, 1
          %s371 = smul.addr %s370, 16
          %s372 = scalar_lea.vmem [#allocation2], %s371
          %s374 = ssub.s32 256, 256
          %375 = vsyncadd %s369, %s374
          %s376 = smul.addr %s30, 2
          %s377 = smul.addr %s376, 128
          %s378 = scalar_lea.hbm %s0, %s377
          %s379 = sshll.u32 %s372, 4
          %s380 = int_to_ptr.vmem [resolvable:$true] %s379
          %385 = dma.hbm_to_vmem [thread:$0]  %s378, 256, %s380, %s369, 128, 128, 8
        $region44: #{interaction_mlp4d_forward.6} parent=39 // pred_fallthru
          _
        // Predicated region
        $region45: #{interaction_mlp4d_forward.6} parent=39 // pred_check
          %p386 = pneg %p76
        $region46: #{interaction_mlp4d_forward.6} parent=39 // pred_check_branch
          %388 = sbr.rel (%p386) target = $region48
        $region47: #{interaction_mlp4d_forward.6} parent=39 // pred_region
          %s389 = sand.u32 %s30, 1
          %s390 = scalar_lea.sflag [#allocation6], %s389
          %s391 = sand.u32 %s66, 1
          %s392 = smul.addr %s391, 16
          %s393 = scalar_lea.vmem [#allocation5], %s392
          %s395 = ssub.s32 256, 256
          %396 = vsyncadd %s390, %s395
          %s397 = smul.addr %s30, 2
          %s398 = smul.addr %s397, 128
          %s399 = scalar_lea.hbm %s1, %s398
          %s400 = sshll.u32 %s393, 4
          %s401 = int_to_ptr.vmem [resolvable:$true] %s400
          %406 = dma.hbm_to_vmem [thread:$0]  %s399, 256, %s401, %s390, 128, 128, 8
        $region48: #{interaction_mlp4d_forward.6} parent=39 // pred_fallthru
          _
      $region40: #{interaction_mlp4d_forward.6} parent=5 // pred_fallthru
        _
      %p407 = scmp.le.s32.totalorder 1, %s30
      %p408 = scmp.lt.s32.totalorder %s30, 5
      %p409 = pnand %p407, %p408
      %p410 = pneg %p409
      // Predicated region
      $region49: #{interaction_mlp4d_forward.6} parent=5 // pred_check
        _
      $region50: #{interaction_mlp4d_forward.6} parent=5 // pred_check_branch
        %412 = sbr.rel (%p409) target = $region52
      $region51: #{interaction_mlp4d_forward.6} parent=5 // pred_region
        %s413 = ssub.s32 %s30, 1
        %s414 = sand.u32 %s43, 1
        %s415 = scalar_lea.sflag [#allocation3], %s414
        %s416 = sand.u32 %s43, 1
        %s417 = smul.addr %s416, 16
        %s418 = scalar_lea.vmem [#allocation2], %s417
        // Predicated region
        $region53: #{interaction_mlp4d_forward.6} parent=51 // pred_check
          %p419 = pneg %p56
        $region54: #{interaction_mlp4d_forward.6} parent=51 // pred_check_branch
          %421 = sbr.rel (%p419) target = $region56
        $region55: #{interaction_mlp4d_forward.6} parent=51 // pred_region
          %422 = dma.done %s415, 256
        $region56: #{interaction_mlp4d_forward.6} parent=51 // pred_fallthru
          _
        %s423 = sand.u32 %s35, 1
        %s424 = scalar_lea.sflag [#allocation6], %s423
        %s425 = sand.u32 %s69, 1
        %s426 = smul.addr %s425, 16
        %s427 = scalar_lea.vmem [#allocation5], %s426
        // Predicated region
        $region57: #{interaction_mlp4d_forward.6} parent=51 // pred_check
          %p428 = pneg %p82
        $region58: #{interaction_mlp4d_forward.6} parent=51 // pred_check_branch
          %430 = sbr.rel (%p428) target = $region60
        $region59: #{interaction_mlp4d_forward.6} parent=51 // pred_region
          %431 = dma.done %s424, 256
        $region60: #{interaction_mlp4d_forward.6} parent=51 // pred_fallthru
          _
        // Predicated region
        $region61: #{interaction_mlp4d_forward.6} parent=51 // pred_check
          %p432 = pneg %p103
        $region62: #{interaction_mlp4d_forward.6} parent=51 // pred_check_branch
          %434 = sbr.rel (%p432) target = $region64
        $region63: #{interaction_mlp4d_forward.6} parent=51 // pred_region
          %435 = dma.done [#allocation6], 64
        $region64: #{interaction_mlp4d_forward.6} parent=51 // pred_fallthru
          _
        // Predicated region
        $region65: #{interaction_mlp4d_forward.6} parent=51 // pred_check
          %p436 = pneg %p124
        $region66: #{interaction_mlp4d_forward.6} parent=51 // pred_check_branch
          %438 = sbr.rel (%p436) target = $region68
        $region67: #{interaction_mlp4d_forward.6} parent=51 // pred_region
          %439 = dma.done [#allocation9], 128
        $region68: #{interaction_mlp4d_forward.6} parent=51 // pred_fallthru
          _
        // Predicated region
        $region69: #{interaction_mlp4d_forward.6} parent=51 // pred_check
          %p440 = pneg %p145
        $region70: #{interaction_mlp4d_forward.6} parent=51 // pred_check_branch
          %442 = sbr.rel (%p440) target = $region72
        $region71: #{interaction_mlp4d_forward.6} parent=51 // pred_region
          %443 = dma.done [#allocation9], 128
        $region72: #{interaction_mlp4d_forward.6} parent=51 // pred_fallthru
          _
        // Predicated region
        $region73: #{interaction_mlp4d_forward.6} parent=51 // pred_check
          %p444 = pneg %p166
        $region74: #{interaction_mlp4d_forward.6} parent=51 // pred_check_branch
          %446 = sbr.rel (%p444) target = $region76
        $region75: #{interaction_mlp4d_forward.6} parent=51 // pred_region
          %447 = dma.done [#allocation12], 16
        $region76: #{interaction_mlp4d_forward.6} parent=51 // pred_fallthru
          _
        // Predicated region
        $region77: #{interaction_mlp4d_forward.6} parent=51 // pred_check
          %p448 = pneg %p187
        $region78: #{interaction_mlp4d_forward.6} parent=51 // pred_check_branch
          %450 = sbr.rel (%p448) target = $region80
        $region79: #{interaction_mlp4d_forward.6} parent=51 // pred_region
          %451 = dma.done [#allocation12], 256
        $region80: #{interaction_mlp4d_forward.6} parent=51 // pred_fallthru
          _
        // Predicated region
        $region81: #{interaction_mlp4d_forward.6} parent=51 // pred_check
          %p452 = pneg %p208
        $region82: #{interaction_mlp4d_forward.6} parent=51 // pred_check_branch
          %454 = sbr.rel (%p452) target = $region84
        $region83: #{interaction_mlp4d_forward.6} parent=51 // pred_region
          %455 = dma.done [#allocation15], 16
        $region84: #{interaction_mlp4d_forward.6} parent=51 // pred_fallthru
          _
        %s456 = sand.u32 %s43, 1
        %s457 = scalar_lea.sflag [#allocation3], %s456
        %s458 = sand.u32 %s43, 1
        %s459 = smul.addr %s458, 16
        %s460 = scalar_lea.vmem [#allocation2], %s459
        %p461 = pneg %p56
        %p462 = pneg %p53
        %s463 = sand.u32 %s35, 1
        %s464 = scalar_lea.sflag [#allocation6], %s463
        %s465 = sand.u32 %s69, 1
        %s466 = smul.addr %s465, 16
        %s467 = scalar_lea.vmem [#allocation5], %s466
        %p468 = pneg %p82
        %p469 = pneg %p79
        %p470 = pneg %p103
        %p471 = pneg %p100
        %p472 = pneg %p124
        %p473 = pneg %p121
        %p474 = pneg %p145
        %p475 = pneg %p142
        %p476 = pneg %p166
        %p477 = pneg %p163
        %p478 = pneg %p187
        %p479 = pneg %p184
        %p480 = pneg %p208
        %p481 = pneg %p205
        %p482 = pneg %p234
        %p483 = pneg %p231
        %s484 = sand.u32 %s221, 1
        %s485 = scalar_lea.sflag [#allocation4], %s484
        %s486 = sand.u32 %s221, 1
        %s487 = smul.addr %s486, 2
        %s488 = scalar_lea.vmem [#allocation16], %s487
        %p489 = pneg %p255
        %p490 = pneg %p252
        %p491 = pneg %p276
        %p492 = pneg %p273
        %v494 = vld [vmem:[%s418] sm:$0xff]
        %v495 = vld [vmem:[%s418 + $0x8] sm:$0xff]
        %v496 = vld [vmem:[%s427] sm:$0xff]
        %v497 = vld [vmem:[%s427 + $0x8] sm:$0xff]
        %v498 = vld [vmem:[#allocation7] sm:$0xf]
        %v499 = vld [vmem:[#allocation8] sm:$0xff]
        %v500 = vld [vmem:[#allocation10] sm:$0xf]
        %v501 = vld [vmem:[#allocation10 + $0x4] sm:$0xf]
        %v502 = vld [vmem:[#allocation11] sm:$0x1]
        %v503 = vld [vmem:[#allocation13] sm:$0xf]
        %v504 = vld [vmem:[#allocation13 + $0x4] sm:$0xf]
        %v505 = vld [vmem:[#allocation13 + $0x8] sm:$0xf]
        %v506 = vld [vmem:[#allocation13 + $0xc] sm:$0xf]
        %v507 = vld [vmem:[#allocation14] sm:$0x1]
        %v508 = vpack.c.bf16 %v496, %v494
        %v509 = vpack.c.bf16 %v497, %v495
        %511 = vset.pattern.permute.xlu0 0
        %512 = vperm.xlu0 %511, %v499
        %v513 = vpop.permute.xlu0 %512
        %vm515 = vcmask 130048
        %v517 = vsel %vm515, %v498, 0
        %519 = vmatprep.subr.bf16.mxu0 0
        %520 = vmatpush1.bf16.msra.mxu0 %v508
        %521 = vmatprep.subr.bf16.mxu0 0
        %522 = vmatpush1.bf16.msra.mxu0 0
        %523 = vmatprep.subr.bf16.mxu0 0
        %524 = vmatpush1.bf16.msra.mxu0 0
        %525 = vmatprep.subr.bf16.mxu0 0
        %526 = vmatpush1.bf16.msra.mxu0 0
        %527 = vmatprep.subr.bf16.mxu0 0
        %528 = vmatpush1.bf16.msra.mxu0 0
        %529 = vmatprep.subr.bf16.mxu0 0
        %530 = vmatpush1.bf16.msra.mxu0 0
        %531 = vmatprep.subr.bf16.mxu0 0
        %532 = vmatpush1.bf16.msra.mxu0 0
        %533 = vmatprep.subr.bf16.mxu0 0
        %534 = vmatpush1.bf16.msra.mxu0 0
        %535 = vmatprep.subr.bf16.mxu0 0
        %536 = vmatpush1.bf16.msra.mxu0 0
        %537 = vmatprep.subr.bf16.mxu0 0
        %538 = vmatpush1.bf16.msra.mxu0 0
        %539 = vmatprep.subr.bf16.mxu0 0
        %540 = vmatpush1.bf16.msra.mxu0 0
        %541 = vmatprep.subr.bf16.mxu0 0
        %542 = vmatpush1.bf16.msra.mxu0 0
        %543 = vmatprep.subr.bf16.mxu0 0
        %544 = vmatpush1.bf16.msra.mxu0 0
        %545 = vmatprep.subr.bf16.mxu0 0
        %546 = vmatpush1.bf16.msra.mxu0 0
        %547 = vmatprep.subr.bf16.mxu0 0
        %548 = vmatpush1.bf16.msra.mxu0 0
        %549 = vmatprep.subr.bf16.mxu0 0
        %550 = vmatpush1.bf16.msra.mxu0 0
        %551 = vmatprep.mubr.bf16.mxu0 0
        %552 = vmatmul.mubr.bf16.gmra.mrb[0].mxu0 %v517
        %v553 = vpop.f32.mrb[0].mxu0
        %v554 = vadd.f32 %v513, %v553
        %v555 = vpop.f32.mrb[0].mxu0
        %v556 = vpop.f32.mrb[0].mxu0
        %v557 = vpop.f32.mrb[0].mxu0
        %558 = vdwg.mxu0
        %559 = vmatprep.subr.bf16.mxu0 0
        %560 = vmatpush1.bf16.msra.mxu0 %v509
        %561 = vmatprep.subr.bf16.mxu0 0
        %562 = vmatpush1.bf16.msra.mxu0 0
        %563 = vmatprep.subr.bf16.mxu0 0
        %564 = vmatpush1.bf16.msra.mxu0 0
        %565 = vmatprep.subr.bf16.mxu0 0
        %566 = vmatpush1.bf16.msra.mxu0 0
        %567 = vmatprep.subr.bf16.mxu0 0
        %568 = vmatpush1.bf16.msra.mxu0 0
        %569 = vmatprep.subr.bf16.mxu0 0
        %570 = vmatpush1.bf16.msra.mxu0 0
        %571 = vmatprep.subr.bf16.mxu0 0
        %572 = vmatpush1.bf16.msra.mxu0 0
        %573 = vmatprep.subr.bf16.mxu0 0
        %574 = vmatpush1.bf16.msra.mxu0 0
        %575 = vmatprep.subr.bf16.mxu0 0
        %576 = vmatpush1.bf16.msra.mxu0 0
        %577 = vmatprep.subr.bf16.mxu0 0
        %578 = vmatpush1.bf16.msra.mxu0 0
        %579 = vmatprep.subr.bf16.mxu0 0
        %580 = vmatpush1.bf16.msra.mxu0 0
        %581 = vmatprep.subr.bf16.mxu0 0
        %582 = vmatpush1.bf16.msra.mxu0 0
        %583 = vmatprep.subr.bf16.mxu0 0
        %584 = vmatpush1.bf16.msra.mxu0 0
        %585 = vmatprep.subr.bf16.mxu0 0
        %586 = vmatpush1.bf16.msra.mxu0 0
        %587 = vmatprep.subr.bf16.mxu0 0
        %588 = vmatpush1.bf16.msra.mxu0 0
        %589 = vmatprep.subr.bf16.mxu0 0
        %590 = vmatpush1.bf16.msra.mxu0 0
        %591 = vmatprep.mubr.bf16.mxu0 0
        %592 = vmatmul.mubr.bf16.gmra.mrb[0].mxu0 %v517
        %v593 = vpop.f32.mrb[0].mxu0
        %v594 = vadd.f32 %v513, %v593
        %v595 = vpop.f32.mrb[0].mxu0
        %v596 = vpop.f32.mrb[0].mxu0
        %v597 = vpop.f32.mrb[0].mxu0
        %598 = vdwg.mxu0
        %v599 = vsub.f32 0.0, %v554
        %v600 = vsub.f32 0.0, %v594
        %v601 = vmul.f32 %v599, 1.442695
        %v602 = vpow.pop %v601
        %v603 = vmul.f32 %v600, 1.442695
        %v604 = vpow.pop %v603
        %v605 = vadd.f32 %v602, 1.0
        %v606 = vadd.f32 %v604, 1.0
        %v607 = vrcp.pop %v605
        %v608 = vrcp.pop %v606
        %v609 = vmul.f32 %v554, %v607
        %v610 = vmul.f32 %v594, %v608
        %v611 = vpack.c.bf16 %v610, %v609
        %v613 = vlaneseq
        %v614 = vshrl.u32 %v613, 7
        %v615 = vsub.s32 0, %v614
        %v616 = vrot.slane %v502, %v615
        %v620 = vunpack.c.l.b16 %v500
        %v621 = vunpack.c.l.b16 %v501
        %v622 = vpack.c.b16 %v621, %v620
        %v625 = vsel %vm515, %v611, 0
        %627 = vmatprep.subr.bf16.mxu0 0
        %628 = vmatpush1.bf16.msra.mxu0 %v622
        %629 = vmatprep.subr.bf16.mxu0 0
        %630 = vmatpush1.bf16.msra.mxu0 0
        %631 = vmatprep.subr.bf16.mxu0 0
        %632 = vmatpush1.bf16.msra.mxu0 0
        %633 = vmatprep.subr.bf16.mxu0 0
        %634 = vmatpush1.bf16.msra.mxu0 0
        %635 = vmatprep.subr.bf16.mxu0 0
        %636 = vmatpush1.bf16.msra.mxu0 0
        %637 = vmatprep.subr.bf16.mxu0 0
        %638 = vmatpush1.bf16.msra.mxu0 0
        %639 = vmatprep.subr.bf16.mxu0 0
        %640 = vmatpush1.bf16.msra.mxu0 0
        %641 = vmatprep.subr.bf16.mxu0 0
        %642 = vmatpush1.bf16.msra.mxu0 0
        %643 = vmatprep.subr.bf16.mxu0 0
        %644 = vmatpush1.bf16.msra.mxu0 0
        %645 = vmatprep.subr.bf16.mxu0 0
        %646 = vmatpush1.bf16.msra.mxu0 0
        %647 = vmatprep.subr.bf16.mxu0 0
        %648 = vmatpush1.bf16.msra.mxu0 0
        %649 = vmatprep.subr.bf16.mxu0 0
        %650 = vmatpush1.bf16.msra.mxu0 0
        %651 = vmatprep.subr.bf16.mxu0 0
        %652 = vmatpush1.bf16.msra.mxu0 0
        %653 = vmatprep.subr.bf16.mxu0 0
        %654 = vmatpush1.bf16.msra.mxu0 0
        %655 = vmatprep.subr.bf16.mxu0 0
        %656 = vmatpush1.bf16.msra.mxu0 0
        %657 = vmatprep.subr.bf16.mxu0 0
        %658 = vmatpush1.bf16.msra.mxu0 0
        %659 = vmatprep.mubr.bf16.mxu0 0
        %660 = vmatmul.mubr.bf16.gmra.mrb[0].mxu0 %v625
        %v661 = vpop.f32.mrb[0].mxu0
        %v662 = vadd.f32 %v616, %v661
        %v663 = vpop.f32.mrb[0].mxu0
        %v664 = vpop.f32.mrb[0].mxu0
        %v665 = vadd.f32 %v616, %v664
        %v666 = vpop.f32.mrb[0].mxu0
        %667 = vdwg.mxu0
        %v668 = vsub.f32 0.0, %v662
        %v669 = vsub.f32 0.0, %v665
        %v670 = vmul.f32 %v668, 1.442695
        %v671 = vpow.pop %v670
        %v672 = vmul.f32 %v669, 1.442695
        %v673 = vpow.pop %v672
        %v674 = vadd.f32 %v671, 1.0
        %v675 = vadd.f32 %v673, 1.0
        %v676 = vrcp.pop %v674
        %v677 = vrcp.pop %v675
        %v678 = vmul.f32 %v662, %v676
        %v679 = vmul.f32 %v665, %v677
        %v680 = vpack.c.bf16 %v679, %v678
        %v682 = vlaneseq
        %v683 = vshrl.u32 %v682, 7
        %v684 = vsub.s32 0, %v683
        %v685 = vrot.slane %v507, %v684
        %v691 = vunpack.c.l.b16 %v503
        %v692 = vunpack.c.l.b16 %v504
        %v693 = vunpack.c.l.b16 %v505
        %v694 = vunpack.c.l.b16 %v506
        %v695 = vpack.c.b16 %v692, %v691
        %v696 = vpack.c.b16 %v694, %v693
        %vm699 = vcmask 261120
        %v701 = vsel %vm699, %v680, 0
        %703 = vmatprep.subr.bf16.mxu0 0
        %704 = vmatpush1.bf16.msra.mxu0 %v695
        %705 = vmatprep.subr.bf16.mxu0 0
        %706 = vmatpush1.bf16.msra.mxu0 %v696
        %707 = vmatprep.subr.bf16.mxu0 0
        %708 = vmatpush1.bf16.msra.mxu0 0
        %709 = vmatprep.subr.bf16.mxu0 0
        %710 = vmatpush1.bf16.msra.mxu0 0
        %711 = vmatprep.subr.bf16.mxu0 0
        %712 = vmatpush1.bf16.msra.mxu0 0
        %713 = vmatprep.subr.bf16.mxu0 0
        %714 = vmatpush1.bf16.msra.mxu0 0
        %715 = vmatprep.subr.bf16.mxu0 0
        %716 = vmatpush1.bf16.msra.mxu0 0
        %717 = vmatprep.subr.bf16.mxu0 0
        %718 = vmatpush1.bf16.msra.mxu0 0
        %719 = vmatprep.subr.bf16.mxu0 0
        %720 = vmatpush1.bf16.msra.mxu0 0
        %721 = vmatprep.subr.bf16.mxu0 0
        %722 = vmatpush1.bf16.msra.mxu0 0
        %723 = vmatprep.subr.bf16.mxu0 0
        %724 = vmatpush1.bf16.msra.mxu0 0
        %725 = vmatprep.subr.bf16.mxu0 0
        %726 = vmatpush1.bf16.msra.mxu0 0
        %727 = vmatprep.subr.bf16.mxu0 0
        %728 = vmatpush1.bf16.msra.mxu0 0
        %729 = vmatprep.subr.bf16.mxu0 0
        %730 = vmatpush1.bf16.msra.mxu0 0
        %731 = vmatprep.subr.bf16.mxu0 0
        %732 = vmatpush1.bf16.msra.mxu0 0
        %733 = vmatprep.subr.bf16.mxu0 0
        %734 = vmatpush1.bf16.msra.mxu0 0
        %735 = vmatprep.mubr.bf16.mxu0 0
        %736 = vmatmul.mubr.bf16.gmra.mrb[0].mxu0 %v701
        %v737 = vpop.f32.mrb[0].mxu0
        %v738 = vadd.f32 %v685, %v737
        %v739 = vpop.f32.mrb[0].mxu0
        %v740 = vpop.f32.mrb[0].mxu0
        %v741 = vadd.f32 %v685, %v740
        %v742 = vpop.f32.mrb[0].mxu0
        %743 = vdwg.mxu0
        %v744 = vsub.f32 0.0, %v738
        %v745 = vsub.f32 0.0, %v741
        %v746 = vmul.f32 %v744, 1.442695
        %v747 = vpow.pop %v746
        %v748 = vmul.f32 %v745, 1.442695
        %v749 = vpow.pop %v748
        %v750 = vadd.f32 %v747, 1.0
        %v751 = vadd.f32 %v749, 1.0
        %v752 = vrcp.pop %v750
        %v753 = vrcp.pop %v751
        %v754 = vmul.f32 %v738, %v752
        %v755 = vmul.f32 %v741, %v753
        %v758 = vrot.slane %v755, 7
        %vm759 = vcmask 1041409
        %v760 = vsel %vm759, %v758, %v754
        %v762 = vrot.slane %v754, 1
        %v763 = vsel %vm759, %v755, %v762
        %764 = vrot.lane.b32.xlu0 %v763, 16
        %v765 = vpop.permute.xlu0 %764
        %v767 = vrot.slane %v754, 2
        %v768 = vrot.slane %v755, 1
        %v769 = vsel %vm759, %v768, %v767
        %770 = vrot.lane.b32.xlu0 %v769, 32
        %v771 = vpop.permute.xlu0 %770
        %v773 = vrot.slane %v754, 3
        %v774 = vrot.slane %v755, 2
        %v775 = vsel %vm759, %v774, %v773
        %776 = vrot.lane.b32.xlu0 %v775, 48
        %v777 = vpop.permute.xlu0 %776
        %v779 = vrot.slane %v754, 4
        %v780 = vrot.slane %v755, 3
        %v781 = vsel %vm759, %v780, %v779
        %782 = vrot.lane.b32.xlu0 %v781, 64
        %v783 = vpop.permute.xlu0 %782
        %v785 = vrot.slane %v754, 5
        %v786 = vrot.slane %v755, 4
        %v787 = vsel %vm759, %v786, %v785
        %788 = vrot.lane.b32.xlu0 %v787, 80
        %v789 = vpop.permute.xlu0 %788
        %v791 = vrot.slane %v754, 6
        %v792 = vrot.slane %v755, 5
        %v793 = vsel %vm759, %v792, %v791
        %794 = vrot.lane.b32.xlu0 %v793, 96
        %v795 = vpop.permute.xlu0 %794
        %v797 = vrot.slane %v754, 7
        %v798 = vrot.slane %v755, 6
        %v799 = vsel %vm759, %v798, %v797
        %800 = vrot.lane.b32.xlu0 %v799, 112
        %v801 = vpop.permute.xlu0 %800
        %v803 = vsel %vm515, %v760, %v765
        %v804 = vsel %vm699, %v803, %v771
        %vm805 = vcmask 392192
        %v806 = vsel %vm805, %v804, %v777
        %vm807 = vcmask 523264
        %v808 = vsel %vm807, %v806, %v783
        %vm809 = vcmask 654336
        %v810 = vsel %vm809, %v808, %v789
        %vm811 = vcmask 785408
        %v812 = vsel %vm811, %v810, %v795
        %vm813 = vcmask 916480
        %v814 = vsel %vm813, %v812, %v801
        %815 = vst [vmem:[%s488] sm:$0x3] %v814
        %p816 = scmp.eq.s32.totalorder %s35, 0
        // Predicated region
        $region85: #{interaction_mlp4d_forward.6} parent=51 // pred_check
          %p817 = pneg %p816
        $region86: #{interaction_mlp4d_forward.6} parent=51 // pred_check_branch
          %819 = sbr.rel (%p817) target = $region88
        $region87: #{interaction_mlp4d_forward.6} parent=51 // pred_region
          %vm820 = vcmask 122880
          %821 = vst.msk [vmem:[#allocation17] sm:$0x1] %vm820, 0.0
          %822 = vst.msk [vmem:[#allocation19] sm:$0x1] %vm820, 0.0
        $region88: #{interaction_mlp4d_forward.6} parent=51 // pred_fallthru
          _
        %v823 = vld [vmem:[#allocation17] sm:$0x1]
        %v824 = vsel %vm515, %v754, 0.0
        %v825 = vsel %vm515, %v755, 0.0
        %v826 = vadd.f32 %v824, %v825
        %v827 = vrot.slane %v826, 4
        %v828 = vadd.f32 %v826, %v827
        %v829 = vrot.slane %v828, 2
        %v830 = vadd.f32 %v828, %v829
        %v831 = vrot.slane %v830, 1
        %v832 = vadd.f32 %v830, %v831
        %v833 = vadd.f32 %v823, %v832
        %vm834 = vcmask 122880
        %835 = vst.msk [vmem:[#allocation17] sm:$0x1] %vm834, %v833
        %v836 = vld [vmem:[#allocation19] sm:$0x1]
        %v837 = vmul.f32 %v754, %v754
        %v838 = vmul.f32 %v755, %v755
        %v839 = vsel %vm515, %v837, 0.0
        %v840 = vsel %vm515, %v838, 0.0
        %v841 = vadd.f32 %v839, %v840
        %v842 = vrot.slane %v841, 4
        %v843 = vadd.f32 %v841, %v842
        %v844 = vrot.slane %v843, 2
        %v845 = vadd.f32 %v843, %v844
        %v846 = vrot.slane %v845, 1
        %v847 = vadd.f32 %v845, %v846
        %v848 = vadd.f32 %v836, %v847
        %849 = vst.msk [vmem:[#allocation19] sm:$0x1] %vm834, %v848
        %s850 = sand.u32 %s221, 1
        %s851 = scalar_lea.sflag [#allocation4], %s850
        %s852 = sand.u32 %s221, 1
        %s853 = smul.addr %s852, 2
        %s854 = scalar_lea.vmem [#allocation16], %s853
        // Predicated region
        $region89: #{interaction_mlp4d_forward.6} parent=51 // pred_check
          %p855 = pneg %p231
        $region90: #{interaction_mlp4d_forward.6} parent=51 // pred_check_branch
          %857 = sbr.rel (%p855) target = $region92
        $region91: #{interaction_mlp4d_forward.6} parent=51 // pred_region
          %s859 = ssub.s32 32, 32
          %860 = vsyncadd %s851, %s859
          %s861 = smul.addr %s35, 32
          %s862 = scalar_lea.hbm %s8, %s861
          %s864 = sshll.u32 %s854, 4
          %s865 = int_to_ptr.vmem [resolvable:$true] %s864
          %867 = dma.vmem_to_hbm [thread:$0]  %s865, 32, %s862, %s851
        $region92: #{interaction_mlp4d_forward.6} parent=51 // pred_fallthru
          _
        // Predicated region
        $region93: #{interaction_mlp4d_forward.6} parent=51 // pred_check
          %p868 = pneg %p252
        $region94: #{interaction_mlp4d_forward.6} parent=51 // pred_check_branch
          %870 = sbr.rel (%p868) target = $region96
        $region95: #{interaction_mlp4d_forward.6} parent=51 // pred_region
          %s872 = ssub.s32 16, 16
          %873 = vsyncadd [#allocation18], %s872
          %s875 = sshll.u32 [#allocation17], 4
          %s876 = int_to_ptr.vmem [resolvable:$true] %s875
          %878 = dma.vmem_to_hbm [thread:$0]  %s876, 16, %s9, [#allocation18]
        $region96: #{interaction_mlp4d_forward.6} parent=51 // pred_fallthru
          _
        // Predicated region
        $region97: #{interaction_mlp4d_forward.6} parent=51 // pred_check
          %p879 = pneg %p273
        $region98: #{interaction_mlp4d_forward.6} parent=51 // pred_check_branch
          %881 = sbr.rel (%p879) target = $region100
        $region99: #{interaction_mlp4d_forward.6} parent=51 // pred_region
          %s883 = ssub.s32 16, 16
          %884 = vsyncadd [#allocation18], %s883
          %s886 = sshll.u32 [#allocation19], 4
          %s887 = int_to_ptr.vmem [resolvable:$true] %s886
          %889 = dma.vmem_to_hbm [thread:$0]  %s887, 16, %s10, [#allocation18]
        $region100: #{interaction_mlp4d_forward.6} parent=51 // pred_fallthru
          _
        // Predicated region
        $region101: #{interaction_mlp4d_forward.6} parent=51 // pred_check
          %p890 = pneg %p252
        $region102: #{interaction_mlp4d_forward.6} parent=51 // pred_check_branch
          %892 = sbr.rel (%p890) target = $region104
        $region103: #{interaction_mlp4d_forward.6} parent=51 // pred_region
          %893 = dma.done [#allocation18], 16
        $region104: #{interaction_mlp4d_forward.6} parent=51 // pred_fallthru
          _
        // Predicated region
        $region105: #{interaction_mlp4d_forward.6} parent=51 // pred_check
          %p894 = pneg %p273
        $region106: #{interaction_mlp4d_forward.6} parent=51 // pred_check_branch
          %896 = sbr.rel (%p894) target = $region108
        $region107: #{interaction_mlp4d_forward.6} parent=51 // pred_region
          %897 = dma.done [#allocation18], 16
        $region108: #{interaction_mlp4d_forward.6} parent=51 // pred_fallthru
          _
      $region52: #{interaction_mlp4d_forward.6} parent=5 // pred_fallthru
        _
      %p898 = scmp.le.s32.totalorder 2, %s30
      // Predicated region
      $region109: #{interaction_mlp4d_forward.6} parent=5 // pred_check
        %p899 = pneg %p898
      $region110: #{interaction_mlp4d_forward.6} parent=5 // pred_check_branch
        %901 = sbr.rel (%p899) target = $region112
      $region111: #{interaction_mlp4d_forward.6} parent=5 // pred_region
        %s902 = ssub.s32 %s30, 2
        // Predicated region
        $region113: #{interaction_mlp4d_forward.6} parent=111 // pred_check
          %p903 = pneg %p237
        $region114: #{interaction_mlp4d_forward.6} parent=111 // pred_check_branch
          %905 = sbr.rel (%p903) target = $region116
        $region115: #{interaction_mlp4d_forward.6} parent=111 // pred_region
          %s906 = sand.u32 %s222, 1
          %s907 = scalar_lea.sflag [#allocation4], %s906
          %s908 = sand.u32 %s222, 1
          %s909 = smul.addr %s908, 2
          %s910 = scalar_lea.vmem [#allocation16], %s909
          %911 = dma.done %s907, 32
        $region116: #{interaction_mlp4d_forward.6} parent=111 // pred_fallthru
          _
      $region112: #{interaction_mlp4d_forward.6} parent=5 // pred_fallthru
        _
    $region6: #{interaction_mlp4d_forward.6} parent=1 // loop_footer
      %s34 = sadd.s32 1, %s30
    $region7: #{interaction_mlp4d_forward.6} parent=1 // loop_footer_branch
      %29 = sbr.rel target = $region3
    $region8: #{interaction_mlp4d_forward.6} parent=1 // loop_exit
      _
    %912 = vsyncpa [#allocation3], 1
    %s913 = scalar_lea.sflag [#allocation3], 1
    %914 = vsyncpa %s913, 1
    %915 = vsyncpa [#allocation6], 1
    %s916 = scalar_lea.sflag [#allocation6], 1
    %917 = vsyncpa %s916, 1
    %918 = vsyncpa [#allocation9], 1
    %919 = vsyncpa [#allocation12], 1
    %920 = vsyncpa [#allocation15], 1
    %921 = vsyncpa [#allocation4], 1
    %s922 = scalar_lea.sflag [#allocation4], 1
    %923 = vsyncpa %s922, 1
    %924 = vsyncpa [#allocation18], 1

</llo_original>
